<compile_context>
chip_gen: v6e
topology: v6e:2x2x1
jax: 0.10.0
libtpu: 0.0.40
codegen_flags: <defaults>
</compile_context>

<pallas_src>
import jax
import jax.numpy as jnp
from jax.experimental import pallas as pl
from jax.experimental.pallas import tpu as pltpu

EPS = 1e-5   # BN eps (matches BN.__init__ default)
LANE = 128


def _round_up(x, m):
    return (x + m - 1) // m * m


def _conv3x3(hb, w_ref, H, W, C):
    """3x3 / stride 1 / pad 1 conv, no bias (biases are folded in the wrapper).

    hb:    (H, W, C) bf16 activation (C padded to a lane multiple).
    w_ref: (3, 3*C, Cout) bf16 weight ref, indexed [ky, kx*C + ci, co].
    Returns (H, W, Cout) f32.
    """
    Cout = w_ref.shape[-1]
    # Zero halo built as values (no scratch buffer, no full-buffer memset).
    zrow = jnp.zeros((1, W + 2, C), hb.dtype)
    zcol = jnp.zeros((H, 1, C), hb.dtype)
    p = jnp.concatenate(
        [zrow, jnp.concatenate([zcol, hb, zcol], axis=1), zrow], axis=0)
    # Fold the 3 kx taps into the channel axis: (H+2, W, 3*C).
    im2 = jnp.concatenate([p[:, 0:W], p[:, 1:W + 1], p[:, 2:W + 2]], axis=-1)
    # 3 MXU matmuls (K = 3*C, N = Cout, both 128-multiples after padding).
    acc = jnp.dot(im2[0:H].reshape(H * W, 3 * C), w_ref[0],
                  preferred_element_type=jnp.float32)
    for ky in (1, 2):
        acc = acc + jnp.dot(im2[ky:ky + H].reshape(H * W, 3 * C), w_ref[ky],
                            preferred_element_type=jnp.float32)
    return acc.reshape(H, W, Cout)


def _gblock_kernel(x_ref,                     # (1, H, W, Cin_p) bf16
                   s1_ref, t1_ref,            # folded bn1 scale/shift (1, Cin_p)
                   w1_ref,                    # conv1 (3, 3*Cin_p, Cout_p) bf16
                   s2_ref, t2_ref,            # folded bn2 (+b1) scale/shift (1, Cout_p)
                   w2_ref,                    # conv2 (3, 3*Cout_p, Cout_p) bf16
                   wsc_ref,                   # shortcut (Cin_p, Cout_p) bf16
                   bf_ref,                    # combined bias b2 + bsc (1, Cout_p)
                   out_ref):                  # (1, H, W, Cout_p) f32
    _, H, W, Cin = x_ref.shape
    Cout = out_ref.shape[-1]

    xb = x_ref[...].reshape(H, W, Cin)          # bf16 activation tile

    # 1x1 shortcut first; park it in out_ref (output block is resident for the
    # whole grid step) so no (H, W, Cout) f32 value stays live across the convs.
    sc = jnp.dot(xb.reshape(H * W, Cin), wsc_ref[...],
                 preferred_element_type=jnp.float32)
    out_ref[...] = sc.reshape(1, H, W, Cout).astype(out_ref.dtype)

    # h = relu(bn1(x))   (folded eval-mode BN, f32 on the VPU)
    h = jnp.maximum(xb.astype(jnp.float32) * s1_ref[...] + t1_ref[...], 0.0)
    # h = conv1(h)       (b1 folded into BN2's shift)
    h = _conv3x3(h.astype(jnp.bfloat16), w1_ref, H, W, Cin)
    # h = relu(bn2(h + b1))
    h = jnp.maximum(h * s2_ref[...] + t2_ref[...], 0.0)
    # h = conv2(h)
    h = _conv3x3(h.astype(jnp.bfloat16), w2_ref, H, W, Cout)

    # Residual add + single combined bias (b2 + bsc), added once.
    out_ref[...] = out_ref[...] + (h + bf_ref[...]).reshape(
        1, H, W, Cout).astype(out_ref.dtype)


def _vmem_limit_bytes():
    # ~3/4 of physical VMEM, capped at 96 MiB: ~96 MiB on v5e/v6e (128 MiB
    # physical), ~48 MiB on v7x (64 MiB).  Conservative 64 MiB fallback if the
    # query is unavailable.
    try:
        cap = pltpu.get_tpu_info().vmem_capacity_bytes
    except Exception:
        cap = 64 * 1024 * 1024
    return int(min(cap * 3 // 4, 96 * 1024 * 1024))


def gblock_forward(x, params):
    N, H, W, Cin = x.shape
    Cout = params["w1"].shape[-1]
    Cin_p, Cout_p = _round_up(Cin, LANE), _round_up(Cout, LANE)

    # learnable_sc = (in_channels != out_channels) or upsample; upsample=None.
    learnable_sc = Cin != Cout
    if learnable_sc:
        wsc, bsc = params["wsc"], params["bsc"]
    else:
        wsc = jnp.eye(Cin, dtype=jnp.float32)        # identity shortcut
        bsc = jnp.zeros((1, Cout), jnp.float32)

    # Fold eval-mode BN into one per-channel scale/shift (computed once),
    # absorb conv1's bias into BN2's shift, fuse (b2 + bsc) into one bias.
    s1 = params["g1"] * jax.lax.rsqrt(params["v1"] + EPS)
    t1 = params["be1"] - params["m1"] * s1
    s2 = params["g2"] * jax.lax.rsqrt(params["v2"] + EPS)
    t2 = params["be2"] - params["m2"] * s2 + params["b1"] * s2
    bf = params["b2"] + bsc

    def padc(a, tgt):  # zero-pad last axis up to tgt channels
        return jnp.pad(a, [(0, 0)] * (a.ndim - 1) + [(0, tgt - a.shape[-1])])

    # Pad all channel axes to a lane multiple (128): lane-dense stores and full
    # MXU N/K tiles.  Padded channels stay exactly zero end-to-end.
    x_p = padc(x, Cin_p).astype(jnp.bfloat16)
    s1p, t1p = padc(s1, Cin_p), padc(t1, Cin_p)
    s2p, t2p, bfp = padc(s2, Cout_p), padc(t2, Cout_p), padc(bf, Cout_p)
    # Pad channel dims BEFORE folding kx into the input-channel axis.
    w1p = jnp.pad(params["w1"],
                  ((0, 0), (0, 0), (0, Cin_p - Cin), (0, Cout_p - Cout))
                  ).reshape(3, 3 * Cin_p, Cout_p).astype(jnp.bfloat16)
    w2p = jnp.pad(params["w2"],
                  ((0, 0), (0, 0), (0, Cout_p - Cout), (0, Cout_p - Cout))
                  ).reshape(3, 3 * Cout_p, Cout_p).astype(jnp.bfloat16)
    wscp = jnp.pad(wsc, ((0, Cin_p - Cin), (0, Cout_p - Cout))
                   ).astype(jnp.bfloat16)

    args = (x_p, s1p, t1p, w1p, s2p, t2p, w2p, wscp, bfp)

    def const_spec(shape):
        nd = len(shape)
        return pl.BlockSpec(shape, lambda n, _nd=nd: (0,) * _nd)

    in_specs = [pl.BlockSpec((1, H, W, Cin_p), lambda n: (n, 0, 0, 0))]
    in_specs += [const_spec(a.shape) for a in args[1:]]

    out_p = pl.pallas_call(
        _gblock_kernel,
        out_shape=jax.ShapeDtypeStruct((N, H, W, Cout_p), jnp.float32),
        grid=(N,),
        in_specs=in_specs,
        out_specs=pl.BlockSpec((1, H, W, Cout_p), lambda n: (n, 0, 0, 0)),
        compiler_params=pltpu.CompilerParams(
            dimension_semantics=("parallel",),
            vmem_limit_bytes=_vmem_limit_bytes()),
    )(*args)
    return out_p[..., :Cout]


def _reference(x, p):
    """Pure-JAX reference with the same mixed-precision policy as the kernel
    (bf16 activation input and MXU operands, f32 accumulation, f32 BN/ReLU)."""
    xb = x.astype(jnp.bfloat16)

    def bn_relu(h, g, b, m, v):
        s = g * jax.lax.rsqrt(v + EPS)
        return jax.nn.relu(h.astype(jnp.float32) * s + (b - m * s))

    def conv(h, w, b):
        out = jax.lax.conv_general_dilated(
            h.astype(jnp.bfloat16), w.astype(jnp.bfloat16),
            (1, 1), ((1, 1), (1, 1)),
            dimension_numbers=("NHWC", "HWIO", "NHWC"),
            preferred_element_type=jnp.float32)
        return out + b

    h = bn_relu(xb, p["g1"], p["be1"], p["m1"], p["v1"])
    h = conv(h, p["w1"], p["b1"])
    h = bn_relu(h, p["g2"], p["be2"], p["m2"], p["v2"])
    h = conv(h, p["w2"], p["b2"])
    sc = jnp.dot(xb.reshape(-1, x.shape[-1]), p["wsc"].astype(jnp.bfloat16),
                 preferred_element_type=jnp.float32)
    sc = sc.reshape(x.shape[0], x.shape[1], x.shape[2], -1) + p["bsc"]
    return h + sc


if __name__ == "__main__":
    key = jax.random.PRNGKey(0)
    N, H, W = 2, 16, 16
    Cin, Cout = 4, 8          # Cin != Cout -> learnable_sc == True
    ks = jax.random.split(key, 16)

    x = jax.random.normal(ks[0], (N, H, W, Cin), jnp.float32)
    params = {
        # BN1 (over in_channels)
        "g1":  1.0 + 0.1 * jax.random.normal(ks[1], (1, Cin), jnp.float32),
        "be1": 0.1 * jax.random.normal(ks[2], (1, Cin), jnp.float32),
        "m1":  0.1 * jax.random.normal(ks[3], (1, Cin), jnp.float32),
        "v1":  jax.random.uniform(ks[4], (1, Cin), jnp.float32, 0.5, 1.5),
        # conv1: 3x3, Cin -> Cout
        "w1":  0.1 * jax.random.normal(ks[5], (3, 3, Cin, Cout), jnp.float32),
        "b1":  0.1 * jax.random.normal(ks[6], (1, Cout), jnp.float32),
        # BN2 (over out_channels)
        "g2":  1.0 + 0.1 * jax.random.normal(ks[7], (1, Cout), jnp.float32),
        "be2": 0.1 * jax.random.normal(ks[8], (1, Cout), jnp.float32),
        "m2":  0.1 * jax.random.normal(ks[9], (1, Cout), jnp.float32),
        "v2":  jax.random.uniform(ks[10], (1, Cout), jnp.float32, 0.5, 1.5),
        # conv2: 3x3, Cout -> Cout
        "w2":  0.1 * jax.random.normal(ks[11], (3, 3, Cout, Cout), jnp.float32),
        "b2":  0.1 * jax.random.normal(ks[12], (1, Cout), jnp.float32),
        # conv_sc: 1x1, Cin -> Cout
        "wsc": 0.1 * jax.random.normal(ks[13], (Cin, Cout), jnp.float32),
        "bsc": 0.1 * jax.random.normal(ks[14], (1, Cout), jnp.float32),
    }

    out = jax.block_until_ready(gblock_forward(x, params))
    ref = _reference(x, params)

    assert out.shape == (N, H, W, Cout), out.shape
    max_err = float(jnp.max(jnp.abs(out - ref)))
    assert jnp.allclose(out, ref, atol=2e-2, rtol=2e-2), max_err
    print("KERNEL_OK")
</pallas_src>

<mosaic_0001>
module attributes {stable_mosaic.version = 11 : i64} {
  func.func @_gblock_kernel(%arg0: i32, %arg1: memref<1x16x16x128xbf16, #tpu.memory_space<vmem>>, %arg2: memref<1x128xf32, #tpu.memory_space<vmem>>, %arg3: memref<1x128xf32, #tpu.memory_space<vmem>>, %arg4: memref<3x384x128xbf16, #tpu.memory_space<vmem>>, %arg5: memref<1x128xf32, #tpu.memory_space<vmem>>, %arg6: memref<1x128xf32, #tpu.memory_space<vmem>>, %arg7: memref<3x384x128xbf16, #tpu.memory_space<vmem>>, %arg8: memref<128x128xbf16, #tpu.memory_space<vmem>>, %arg9: memref<1x128xf32, #tpu.memory_space<vmem>>, %arg10: memref<1x16x16x128xf32, #tpu.memory_space<vmem>>) attributes {dimension_semantics = [#tpu.dimension_semantics<parallel>], iteration_bounds = array<i64: 2>, scalar_prefetch = 0 : i64, scratch_operands = 0 : i64, tpu.core_type = #tpu.core_type<tc>, window_params = [{transform_indices = @transform_0, window_bounds = array<i64: 1, 16, 16, 128>}, {pipeline_mode = #tpu.pipeline_mode<synchronous>, transform_indices = @transform_1, window_bounds = array<i64: 1, 128>}, {pipeline_mode = #tpu.pipeline_mode<synchronous>, transform_indices = @transform_2, window_bounds = array<i64: 1, 128>}, {pipeline_mode = #tpu.pipeline_mode<synchronous>, transform_indices = @transform_3, window_bounds = array<i64: 3, 384, 128>}, {pipeline_mode = #tpu.pipeline_mode<synchronous>, transform_indices = @transform_4, window_bounds = array<i64: 1, 128>}, {pipeline_mode = #tpu.pipeline_mode<synchronous>, transform_indices = @transform_5, window_bounds = array<i64: 1, 128>}, {pipeline_mode = #tpu.pipeline_mode<synchronous>, transform_indices = @transform_6, window_bounds = array<i64: 3, 384, 128>}, {pipeline_mode = #tpu.pipeline_mode<synchronous>, transform_indices = @transform_7, window_bounds = array<i64: 128, 128>}, {pipeline_mode = #tpu.pipeline_mode<synchronous>, transform_indices = @transform_8, window_bounds = array<i64: 1, 128>}, {transform_indices = @transform_9, window_bounds = array<i64: 1, 16, 16, 128>}]} {
    %c0 = arith.constant 0 : index
    %c0_0 = arith.constant 0 : index
    %c0_1 = arith.constant 0 : index
    %c0_2 = arith.constant 0 : index
    %0 = vector.load %arg1[%c0, %c0_0, %c0_1, %c0_2] : memref<1x16x16x128xbf16, #tpu.memory_space<vmem>>, vector<1x16x16x128xbf16>
    %1 = vector.shape_cast %0 : vector<1x16x16x128xbf16> to vector<16x16x128xbf16>
    %2 = vector.shape_cast %1 : vector<16x16x128xbf16> to vector<256x128xbf16>
    %c0_3 = arith.constant 0 : index
    %c0_4 = arith.constant 0 : index
    %3 = vector.load %arg8[%c0_3, %c0_4] : memref<128x128xbf16, #tpu.memory_space<vmem>>, vector<128x128xbf16>
    %cst = arith.constant dense<0.000000e+00> : vector<256x128xf32>
    %4 = tpu.matmul %2, %3, %cst {dimension_numbers = #tpu.dot_dimension_numbers<[1], [0], [0], [1], [0, 0, 1, 1], [], []>} : vector<256x128xbf16>, vector<128x128xbf16>, vector<256x128xf32> -> vector<256x128xf32>
    %5 = vector.shape_cast %4 : vector<256x128xf32> to vector<1x16x16x128xf32>
    %c0_5 = arith.constant 0 : index
    %c0_6 = arith.constant 0 : index
    %c0_7 = arith.constant 0 : index
    %c0_8 = arith.constant 0 : index
    %6 = vector.load %arg10[%c0_5, %c0_6, %c0_7, %c0_8] : memref<1x16x16x128xf32, #tpu.memory_space<vmem>>, vector<1x16x16x128xf32>
    tpu.vector_store %arg10[%c0_5, %c0_6, %c0_7, %c0_8], %5 {strides = array<i32>} : memref<1x16x16x128xf32, #tpu.memory_space<vmem>>, vector<1x16x16x128xf32>,
    %7 = arith.extf %1 : vector<16x16x128xbf16> to vector<16x16x128xf32>
    %c0_9 = arith.constant 0 : index
    %c0_10 = arith.constant 0 : index
    %8 = vector.load %arg2[%c0_9, %c0_10] : memref<1x128xf32, #tpu.memory_space<vmem>>, vector<1x128xf32>
    %9 = vector.shape_cast %8 : vector<1x128xf32> to vector<1x1x128xf32>
    %10 = vector.broadcast %9 : vector<1x1x128xf32> to vector<16x16x128xf32>
    %11 = arith.mulf %7, %10 : vector<16x16x128xf32>
    %c0_11 = arith.constant 0 : index
    %c0_12 = arith.constant 0 : index
    %12 = vector.load %arg3[%c0_11, %c0_12] : memref<1x128xf32, #tpu.memory_space<vmem>>, vector<1x128xf32>
    %13 = vector.shape_cast %12 : vector<1x128xf32> to vector<1x1x128xf32>
    %14 = vector.broadcast %13 : vector<1x1x128xf32> to vector<16x16x128xf32>
    %15 = arith.addf %11, %14 : vector<16x16x128xf32>
    %cst_13 = arith.constant 0.000000e+00 : f32
    %16 = vector.broadcast %cst_13 : f32 to vector<16x16x128xf32>
    %17 = arith.maximumf %15, %16 : vector<16x16x128xf32>
    %18 = arith.truncf %17 : vector<16x16x128xf32> to vector<16x16x128xbf16>
    %cst_14 = arith.constant 0.000000e+00 : bf16
    %19 = vector.broadcast %cst_14 : bf16 to vector<1x18x128xbf16>
    %cst_15 = arith.constant 0.000000e+00 : bf16
    %20 = vector.broadcast %cst_15 : bf16 to vector<16x1x128xbf16>
    %21 = tpu.concatenate %20, %18, %20 in 1 : vector<16x1x128xbf16>, vector<16x16x128xbf16>, vector<16x1x128xbf16> -> vector<16x18x128xbf16>
    %22 = tpu.concatenate %19, %21, %19 in 0 : vector<1x18x128xbf16>, vector<16x18x128xbf16>, vector<1x18x128xbf16> -> vector<18x18x128xbf16>
    %23 = vector.extract_strided_slice %22 {offsets = [0, 0, 0], sizes = [18, 16, 128], strides = [1, 1, 1]} : vector<18x18x128xbf16> to vector<18x16x128xbf16>
    %24 = vector.extract_strided_slice %22 {offsets = [0, 1, 0], sizes = [18, 16, 128], strides = [1, 1, 1]} : vector<18x18x128xbf16> to vector<18x16x128xbf16>
    %25 = vector.extract_strided_slice %22 {offsets = [0, 2, 0], sizes = [18, 16, 128], strides = [1, 1, 1]} : vector<18x18x128xbf16> to vector<18x16x128xbf16>
    %26 = tpu.concatenate %23, %24, %25 in 2 : vector<18x16x128xbf16>, vector<18x16x128xbf16>, vector<18x16x128xbf16> -> vector<18x16x384xbf16>
    %27 = vector.extract_strided_slice %26 {offsets = [0, 0, 0], sizes = [16, 16, 384], strides = [1, 1, 1]} : vector<18x16x384xbf16> to vector<16x16x384xbf16>
    %28 = vector.shape_cast %27 : vector<16x16x384xbf16> to vector<256x384xbf16>
    %c0_16 = arith.constant 0 : index
    %c0_17 = arith.constant 0 : index
    %c0_18 = arith.constant 0 : index
    %29 = vector.load %arg4[%c0_16, %c0_17, %c0_18] : memref<3x384x128xbf16, #tpu.memory_space<vmem>>, vector<1x384x128xbf16>
    %30 = vector.shape_cast %29 : vector<1x384x128xbf16> to vector<384x128xbf16>
    %cst_19 = arith.constant dense<0.000000e+00> : vector<256x128xf32>
    %31 = tpu.matmul %28, %30, %cst_19 {dimension_numbers = #tpu.dot_dimension_numbers<[1], [0], [0], [1], [0, 0, 1, 1], [], []>} : vector<256x384xbf16>, vector<384x128xbf16>, vector<256x128xf32> -> vector<256x128xf32>
    %32 = vector.extract_strided_slice %26 {offsets = [1, 0, 0], sizes = [16, 16, 384], strides = [1, 1, 1]} : vector<18x16x384xbf16> to vector<16x16x384xbf16>
    %33 = vector.shape_cast %32 : vector<16x16x384xbf16> to vector<256x384xbf16>
    %c1 = arith.constant 1 : index
    %c0_20 = arith.constant 0 : index
    %c0_21 = arith.constant 0 : index
    %34 = vector.load %arg4[%c1, %c0_20, %c0_21] : memref<3x384x128xbf16, #tpu.memory_space<vmem>>, vector<1x384x128xbf16>
    %35 = vector.shape_cast %34 : vector<1x384x128xbf16> to vector<384x128xbf16>
    %cst_22 = arith.constant dense<0.000000e+00> : vector<256x128xf32>
    %36 = tpu.matmul %33, %35, %cst_22 {dimension_numbers = #tpu.dot_dimension_numbers<[1], [0], [0], [1], [0, 0, 1, 1], [], []>} : vector<256x384xbf16>, vector<384x128xbf16>, vector<256x128xf32> -> vector<256x128xf32>
    %37 = arith.addf %31, %36 : vector<256x128xf32>
    %38 = vector.extract_strided_slice %26 {offsets = [2, 0, 0], sizes = [16, 16, 384], strides = [1, 1, 1]} : vector<18x16x384xbf16> to vector<16x16x384xbf16>
    %39 = vector.shape_cast %38 : vector<16x16x384xbf16> to vector<256x384xbf16>
    %c2 = arith.constant 2 : index
    %c0_23 = arith.constant 0 : index
    %c0_24 = arith.constant 0 : index
    %40 = vector.load %arg4[%c2, %c0_23, %c0_24] : memref<3x384x128xbf16, #tpu.memory_space<vmem>>, vector<1x384x128xbf16>
    %41 = vector.shape_cast %40 : vector<1x384x128xbf16> to vector<384x128xbf16>
    %cst_25 = arith.constant dense<0.000000e+00> : vector<256x128xf32>
    %42 = tpu.matmul %39, %41, %cst_25 {dimension_numbers = #tpu.dot_dimension_numbers<[1], [0], [0], [1], [0, 0, 1, 1], [], []>} : vector<256x384xbf16>, vector<384x128xbf16>, vector<256x128xf32> -> vector<256x128xf32>
    %43 = arith.addf %37, %42 : vector<256x128xf32>
    %44 = vector.shape_cast %43 : vector<256x128xf32> to vector<16x16x128xf32>
    %c0_26 = arith.constant 0 : index
    %c0_27 = arith.constant 0 : index
    %45 = vector.load %arg5[%c0_26, %c0_27] : memref<1x128xf32, #tpu.memory_space<vmem>>, vector<1x128xf32>
    %46 = vector.shape_cast %45 : vector<1x128xf32> to vector<1x1x128xf32>
    %47 = vector.broadcast %46 : vector<1x1x128xf32> to vector<16x16x128xf32>
    %48 = arith.mulf %44, %47 : vector<16x16x128xf32>
    %c0_28 = arith.constant 0 : index
    %c0_29 = arith.constant 0 : index
    %49 = vector.load %arg6[%c0_28, %c0_29] : memref<1x128xf32, #tpu.memory_space<vmem>>, vector<1x128xf32>
    %50 = vector.shape_cast %49 : vector<1x128xf32> to vector<1x1x128xf32>
    %51 = vector.broadcast %50 : vector<1x1x128xf32> to vector<16x16x128xf32>
    %52 = arith.addf %48, %51 : vector<16x16x128xf32>
    %cst_30 = arith.constant 0.000000e+00 : f32
    %53 = vector.broadcast %cst_30 : f32 to vector<16x16x128xf32>
    %54 = arith.maximumf %52, %53 : vector<16x16x128xf32>
    %55 = arith.truncf %54 : vector<16x16x128xf32> to vector<16x16x128xbf16>
    %cst_31 = arith.constant 0.000000e+00 : bf16
    %56 = vector.broadcast %cst_31 : bf16 to vector<1x18x128xbf16>
    %cst_32 = arith.constant 0.000000e+00 : bf16
    %57 = vector.broadcast %cst_32 : bf16 to vector<16x1x128xbf16>
    %58 = tpu.concatenate %57, %55, %57 in 1 : vector<16x1x128xbf16>, vector<16x16x128xbf16>, vector<16x1x128xbf16> -> vector<16x18x128xbf16>
    %59 = tpu.concatenate %56, %58, %56 in 0 : vector<1x18x128xbf16>, vector<16x18x128xbf16>, vector<1x18x128xbf16> -> vector<18x18x128xbf16>
    %60 = vector.extract_strided_slice %59 {offsets = [0, 0, 0], sizes = [18, 16, 128], strides = [1, 1, 1]} : vector<18x18x128xbf16> to vector<18x16x128xbf16>
    %61 = vector.extract_strided_slice %59 {offsets = [0, 1, 0], sizes = [18, 16, 128], strides = [1, 1, 1]} : vector<18x18x128xbf16> to vector<18x16x128xbf16>
    %62 = vector.extract_strided_slice %59 {offsets = [0, 2, 0], sizes = [18, 16, 128], strides = [1, 1, 1]} : vector<18x18x128xbf16> to vector<18x16x128xbf16>
    %63 = tpu.concatenate %60, %61, %62 in 2 : vector<18x16x128xbf16>, vector<18x16x128xbf16>, vector<18x16x128xbf16> -> vector<18x16x384xbf16>
    %64 = vector.extract_strided_slice %63 {offsets = [0, 0, 0], sizes = [16, 16, 384], strides = [1, 1, 1]} : vector<18x16x384xbf16> to vector<16x16x384xbf16>
    %65 = vector.shape_cast %64 : vector<16x16x384xbf16> to vector<256x384xbf16>
    %c0_33 = arith.constant 0 : index
    %c0_34 = arith.constant 0 : index
    %c0_35 = arith.constant 0 : index
    %66 = vector.load %arg7[%c0_33, %c0_34, %c0_35] : memref<3x384x128xbf16, #tpu.memory_space<vmem>>, vector<1x384x128xbf16>
    %67 = vector.shape_cast %66 : vector<1x384x128xbf16> to vector<384x128xbf16>
    %cst_36 = arith.constant dense<0.000000e+00> : vector<256x128xf32>
    %68 = tpu.matmul %65, %67, %cst_36 {dimension_numbers = #tpu.dot_dimension_numbers<[1], [0], [0], [1], [0, 0, 1, 1], [], []>} : vector<256x384xbf16>, vector<384x128xbf16>, vector<256x128xf32> -> vector<256x128xf32>
    %69 = vector.extract_strided_slice %63 {offsets = [1, 0, 0], sizes = [16, 16, 384], strides = [1, 1, 1]} : vector<18x16x384xbf16> to vector<16x16x384xbf16>
    %70 = vector.shape_cast %69 : vector<16x16x384xbf16> to vector<256x384xbf16>
    %c1_37 = arith.constant 1 : index
    %c0_38 = arith.constant 0 : index
    %c0_39 = arith.constant 0 : index
    %71 = vector.load %arg7[%c1_37, %c0_38, %c0_39] : memref<3x384x128xbf16, #tpu.memory_space<vmem>>, vector<1x384x128xbf16>
    %72 = vector.shape_cast %71 : vector<1x384x128xbf16> to vector<384x128xbf16>
    %cst_40 = arith.constant dense<0.000000e+00> : vector<256x128xf32>
    %73 = tpu.matmul %70, %72, %cst_40 {dimension_numbers = #tpu.dot_dimension_numbers<[1], [0], [0], [1], [0, 0, 1, 1], [], []>} : vector<256x384xbf16>, vector<384x128xbf16>, vector<256x128xf32> -> vector<256x128xf32>
    %74 = arith.addf %68, %73 : vector<256x128xf32>
    %75 = vector.extract_strided_slice %63 {offsets = [2, 0, 0], sizes = [16, 16, 384], strides = [1, 1, 1]} : vector<18x16x384xbf16> to vector<16x16x384xbf16>
    %76 = vector.shape_cast %75 : vector<16x16x384xbf16> to vector<256x384xbf16>
    %c2_41 = arith.constant 2 : index
    %c0_42 = arith.constant 0 : index
    %c0_43 = arith.constant 0 : index
    %77 = vector.load %arg7[%c2_41, %c0_42, %c0_43] : memref<3x384x128xbf16, #tpu.memory_space<vmem>>, vector<1x384x128xbf16>
    %78 = vector.shape_cast %77 : vector<1x384x128xbf16> to vector<384x128xbf16>
    %cst_44 = arith.constant dense<0.000000e+00> : vector<256x128xf32>
    %79 = tpu.matmul %76, %78, %cst_44 {dimension_numbers = #tpu.dot_dimension_numbers<[1], [0], [0], [1], [0, 0, 1, 1], [], []>} : vector<256x384xbf16>, vector<384x128xbf16>, vector<256x128xf32> -> vector<256x128xf32>
    %80 = arith.addf %74, %79 : vector<256x128xf32>
    %81 = vector.shape_cast %80 : vector<256x128xf32> to vector<16x16x128xf32>
    %c0_45 = arith.constant 0 : index
    %c0_46 = arith.constant 0 : index
    %c0_47 = arith.constant 0 : index
    %c0_48 = arith.constant 0 : index
    %82 = vector.load %arg10[%c0_45, %c0_46, %c0_47, %c0_48] : memref<1x16x16x128xf32, #tpu.memory_space<vmem>>, vector<1x16x16x128xf32>
    %c0_49 = arith.constant 0 : index
    %c0_50 = arith.constant 0 : index
    %83 = vector.load %arg9[%c0_49, %c0_50] : memref<1x128xf32, #tpu.memory_space<vmem>>, vector<1x128xf32>
    %84 = vector.shape_cast %83 : vector<1x128xf32> to vector<1x1x128xf32>
    %85 = vector.broadcast %84 : vector<1x1x128xf32> to vector<16x16x128xf32>
    %86 = arith.addf %81, %85 : vector<16x16x128xf32>
    %87 = vector.shape_cast %86 : vector<16x16x128xf32> to vector<1x16x16x128xf32>
    %88 = arith.addf %82, %87 : vector<1x16x16x128xf32>
    %c0_51 = arith.constant 0 : index
    %c0_52 = arith.constant 0 : index
    %c0_53 = arith.constant 0 : index
    %c0_54 = arith.constant 0 : index
    %89 = vector.load %arg10[%c0_51, %c0_52, %c0_53, %c0_54] : memref<1x16x16x128xf32, #tpu.memory_space<vmem>>, vector<1x16x16x128xf32>
    tpu.vector_store %arg10[%c0_51, %c0_52, %c0_53, %c0_54], %88 {strides = array<i32>} : memref<1x16x16x128xf32, #tpu.memory_space<vmem>>, vector<1x16x16x128xf32>,
    return
  }
  func.func @transform_0(%arg0: i32) -> (i32, i32, i32, i32) {
    %c0_i32 = arith.constant 0 : i32
    %c0_i32_0 = arith.constant 0 : i32
    %c0_i32_1 = arith.constant 0 : i32
    %c0_i32_2 = arith.constant 0 : i32
    return %arg0, %c0_i32, %c0_i32_0, %c0_i32_1 : i32, i32, i32, i32
  }
  func.func @transform_1(%arg0: i32) -> (i32, i32) {
    %c0_i32 = arith.constant 0 : i32
    %c0_i32_0 = arith.constant 0 : i32
    %c0_i32_1 = arith.constant 0 : i32
    return %c0_i32, %c0_i32_0 : i32, i32
  }
  func.func @transform_2(%arg0: i32) -> (i32, i32) {
    %c0_i32 = arith.constant 0 : i32
    %c0_i32_0 = arith.constant 0 : i32
    %c0_i32_1 = arith.constant 0 : i32
    return %c0_i32, %c0_i32_0 : i32, i32
  }
  func.func @transform_3(%arg0: i32) -> (i32, i32, i32) {
    %c0_i32 = arith.constant 0 : i32
    %c0_i32_0 = arith.constant 0 : i32
    %c0_i32_1 = arith.constant 0 : i32
    %c0_i32_2 = arith.constant 0 : i32
    return %c0_i32, %c0_i32_0, %c0_i32_1 : i32, i32, i32
  }
  func.func @transform_4(%arg0: i32) -> (i32, i32) {
    %c0_i32 = arith.constant 0 : i32
    %c0_i32_0 = arith.constant 0 : i32
    %c0_i32_1 = arith.constant 0 : i32
    return %c0_i32, %c0_i32_0 : i32, i32
  }
  func.func @transform_5(%arg0: i32) -> (i32, i32) {
    %c0_i32 = arith.constant 0 : i32
    %c0_i32_0 = arith.constant 0 : i32
    %c0_i32_1 = arith.constant 0 : i32
    return %c0_i32, %c0_i32_0 : i32, i32
  }
  func.func @transform_6(%arg0: i32) -> (i32, i32, i32) {
    %c0_i32 = arith.constant 0 : i32
    %c0_i32_0 = arith.constant 0 : i32
    %c0_i32_1 = arith.constant 0 : i32
    %c0_i32_2 = arith.constant 0 : i32
    return %c0_i32, %c0_i32_0, %c0_i32_1 : i32, i32, i32
  }
  func.func @transform_7(%arg0: i32) -> (i32, i32) {
    %c0_i32 = arith.constant 0 : i32
    %c0_i32_0 = arith.constant 0 : i32
    %c0_i32_1 = arith.constant 0 : i32
    return %c0_i32, %c0_i32_0 : i32, i32
  }
  func.func @transform_8(%arg0: i32) -> (i32, i32) {
    %c0_i32 = arith.constant 0 : i32
    %c0_i32_0 = arith.constant 0 : i32
    %c0_i32_1 = arith.constant 0 : i32
    return %c0_i32, %c0_i32_0 : i32, i32
  }
  func.func @transform_9(%arg0: i32) -> (i32, i32, i32, i32) {
    %c0_i32 = arith.constant 0 : i32
    %c0_i32_0 = arith.constant 0 : i32
    %c0_i32_1 = arith.constant 0 : i32
    %c0_i32_2 = arith.constant 0 : i32
    return %arg0, %c0_i32, %c0_i32_0, %c0_i32_1 : i32, i32, i32, i32
  }
}

</mosaic_0001>

<llo_original>
// kernel: tpu_custom_call.1
$region0: #{tpu_custom_call.1}
  #allocation0 [shape = 'u32[]', space=smem, size = 0x4, offset = 0x4, fixed_abs, tag = 'smem constant byte address 0x4 - core index']
  #allocation1 [shape = 'u32[144,128]{1,0:T(1,128)}', space=vmem, size = 0x12000, scoped, tag = 'internal scratch']
  %s0 = inlined_call_operand.hbm [shape: bf16[2,16,16,128], index: 0, kind: input, shape index: {}]
  %s1 = inlined_call_operand.vmem [shape: f32[1,128], index: 1, kind: input, shape index: {}]
  %s2 = inlined_call_operand.vmem [shape: f32[1,128], index: 2, kind: input, shape index: {}]
  %s3 = inlined_call_operand.hbm [shape: bf16[3,384,128], index: 3, kind: input, shape index: {}]
  %s4 = inlined_call_operand.vmem [shape: f32[1,128], index: 4, kind: input, shape index: {}]
  %s5 = inlined_call_operand.vmem [shape: f32[1,128], index: 5, kind: input, shape index: {}]
  %s6 = inlined_call_operand.hbm [shape: bf16[3,384,128], index: 6, kind: input, shape index: {}]
  %s7 = inlined_call_operand.hbm [shape: bf16[128,128], index: 7, kind: input, shape index: {}]
  %s8 = inlined_call_operand.vmem [shape: f32[1,128], index: 8, kind: input, shape index: {}]
  %s9 = inlined_call_operand.hbm [shape: f32[2,16,16,128], index: 9, kind: output, shape index: {}]
  %s10 = sld [smem:[#allocation0]]
  $region85: #{tpu_custom_call.1} parent=0
    _
  %s12 = ssub.s32 1, %s10
  %s13 = scalar_select 0, %s12, %s10
  $region1: #{tpu_custom_call.1} parent=0
    #allocation2 [shape = 'u8[131072]{0}', space=vmem, size = 0x20000, scoped, tag = 'input window, operand 0']
    #allocation3 [shape = 's32[2]{0}', space=sflag, size = 0x8, scoped, tag = 'scoped memory for tpu_custom_call.1']
    #allocation4 [shape = 's32[2]{0}', space=sflag, size = 0x8, scoped, tag = 'scoped memory for tpu_custom_call.1']
    #allocation5 [shape = 'u8[294912]{0}', space=vmem, size = 0x48000, scoped, tag = 'input window, operand 3, single buffered']
    #allocation6 [shape = 's32[1]{0}', space=sflag, size = 0x4, scoped, tag = 'scoped memory for tpu_custom_call.1']
    #allocation7 [shape = 'u8[294912]{0}', space=vmem, size = 0x48000, scoped, tag = 'input window, operand 6, single buffered']
    #allocation8 [shape = 'u8[32768]{0}', space=vmem, size = 0x8000, scoped, tag = 'input window, operand 7, single buffered']
    #allocation9 [shape = 's32[1]{0}', space=sflag, size = 0x4, scoped, tag = 'scoped memory for tpu_custom_call.1']
    #allocation10 [shape = 'u8[262144]{0}', space=vmem, size = 0x40000, scoped, tag = 'output window, operand 0']
    %14 = vsyncpa [#allocation3], 0
    %s15 = scalar_lea.sflag [#allocation3], 1
    %16 = vsyncpa %s15, 0
    %17 = vsyncpa [#allocation6], 0
    %18 = vsyncpa [#allocation9], 0
    %19 = vsyncpa [#allocation4], 0
    %s20 = scalar_lea.sflag [#allocation4], 1
    %21 = vsyncpa %s20, 0
    loop: start=0, step=1, limit=4
    $region2: #{tpu_custom_call.1} parent=1 // loop_pre_header
      _
    $region3: #{tpu_custom_call.1} parent=1 // loop_header
      %s23 = sphi 0, %s27
      %p24 = scmp.ge.s32.totalorder %s23, 4
      %s33 = sphi 0, %s35
      %s36 = sphi 0, %s33
      %s37 = sphi 0, %s36
      %s53 = sphi 0, %s37
      %s57 = sphi 0, %s57
      %s59 = sphi 0, %s57
      %s60 = sphi 0, %s59
      %s74 = sphi 0, %s60
      %s78 = sphi 0, %s78
      %s80 = sphi 0, %s78
      %s81 = sphi 0, %s80
      %s95 = sphi 0, %s81
      %s99 = sphi 0, %s99
      %s101 = sphi 0, %s99
      %s102 = sphi 0, %s101
      %s116 = sphi 0, %s102
      %s120 = sphi 0, %s120
      %s122 = sphi 0, %s120
      %s123 = sphi 0, %s122
      %s137 = sphi 0, %s123
      %s141 = sphi 0, %s141
      %s143 = sphi 0, %s141
      %s144 = sphi 0, %s143
      %s158 = sphi 0, %s144
      %s162 = sphi 0, %s162
      %s164 = sphi 0, %s162
      %s165 = sphi 0, %s164
      %s179 = sphi 0, %s165
      %s183 = sphi 0, %s183
      %s185 = sphi 0, %s183
      %s186 = sphi 0, %s185
      %s200 = sphi 0, %s186
      %s204 = sphi 0, %s204
      %s206 = sphi 0, %s204
      %s207 = sphi 0, %s206
      %s221 = sphi 0, %s207
      %s227 = sphi 0, %s229
      %s230 = sphi 0, %s227
      %s231 = sphi 0, %s230
      %s247 = sphi 0, %s231
    $region4: #{tpu_custom_call.1} parent=1 // loop_header_branch
      %26 = sbr.rel (%p24) target = $region8
    $region5: #{tpu_custom_call.1} parent=1 // loop_body
      %s28 = ssub.s32 %s23, 1
      %s29 = ssub.s32 %s23, 2
      %s30 = sadd.s32 %s23, 1
      %s31 = ssub.s32 %s23, %s30
      %p32 = scmp.eq.s32.totalorder %s31, 0
      %s34 = sadd.s32 %s33, 1
      %s35 = scalar_select %p32, %s33, %s34
      %p38 = pneg %p32
      %p39 = scmp.eq.s32.totalorder %s23, 1
      %p40 = por %p38, %p39
      %p41 = scmp.ne.s32.totalorder %s33, %s36
      %p42 = scmp.eq.s32.totalorder %s23, 0
      %p43 = por %p41, %p42
      %p44 = scmp.ne.s32.totalorder %s33, %s36
      %p45 = scmp.eq.s32.totalorder %s28, 1
      %p46 = por %p44, %p45
      %p47 = scmp.ne.s32.totalorder %s36, %s37
      %p48 = scmp.eq.s32.totalorder %s28, 0
      %p49 = por %p47, %p48
      %p50 = scmp.ne.s32.totalorder %s36, %s37
      %p51 = scmp.eq.s32.totalorder %s29, 1
      %p52 = por %p50, %p51
      %p54 = scmp.ne.s32.totalorder %s37, %s53
      %p55 = scmp.eq.s32.totalorder %s29, 0
      %p56 = por %p54, %p55
      %s58 = sadd.s32 %s57, 1
      %p61 = scmp.eq.s32.totalorder %s23, 1
      %p62 = scmp.ne.s32.totalorder %s57, %s59
      %p63 = scmp.eq.s32.totalorder %s23, 0
      %p64 = por %p62, %p63
      %p65 = scmp.ne.s32.totalorder %s57, %s59
      %p66 = scmp.eq.s32.totalorder %s28, 1
      %p67 = por %p65, %p66
      %p68 = scmp.ne.s32.totalorder %s59, %s60
      %p69 = scmp.eq.s32.totalorder %s28, 0
      %p70 = por %p68, %p69
      %p71 = scmp.ne.s32.totalorder %s59, %s60
      %p72 = scmp.eq.s32.totalorder %s29, 1
      %p73 = por %p71, %p72
      %p75 = scmp.ne.s32.totalorder %s60, %s74
      %p76 = scmp.eq.s32.totalorder %s29, 0
      %p77 = por %p75, %p76
      %s79 = sadd.s32 %s78, 1
      %p82 = scmp.eq.s32.totalorder %s23, 1
      %p83 = scmp.ne.s32.totalorder %s78, %s80
      %p84 = scmp.eq.s32.totalorder %s23, 0
      %p85 = por %p83, %p84
      %p86 = scmp.ne.s32.totalorder %s78, %s80
      %p87 = scmp.eq.s32.totalorder %s28, 1
      %p88 = por %p86, %p87
      %p89 = scmp.ne.s32.totalorder %s80, %s81
      %p90 = scmp.eq.s32.totalorder %s28, 0
      %p91 = por %p89, %p90
      %p92 = scmp.ne.s32.totalorder %s80, %s81
      %p93 = scmp.eq.s32.totalorder %s29, 1
      %p94 = por %p92, %p93
      %p96 = scmp.ne.s32.totalorder %s81, %s95
      %p97 = scmp.eq.s32.totalorder %s29, 0
      %p98 = por %p96, %p97
      %s100 = sadd.s32 %s99, 1
      %p103 = scmp.eq.s32.totalorder %s23, 1
      %p104 = scmp.ne.s32.totalorder %s99, %s101
      %p105 = scmp.eq.s32.totalorder %s23, 0
      %p106 = por %p104, %p105
      %p107 = scmp.ne.s32.totalorder %s99, %s101
      %p108 = scmp.eq.s32.totalorder %s28, 1
      %p109 = por %p107, %p108
      %p110 = scmp.ne.s32.totalorder %s101, %s102
      %p111 = scmp.eq.s32.totalorder %s28, 0
      %p112 = por %p110, %p111
      %p113 = scmp.ne.s32.totalorder %s101, %s102
      %p114 = scmp.eq.s32.totalorder %s29, 1
      %p115 = por %p113, %p114
      %p117 = scmp.ne.s32.totalorder %s102, %s116
      %p118 = scmp.eq.s32.totalorder %s29, 0
      %p119 = por %p117, %p118
      %s121 = sadd.s32 %s120, 1
      %p124 = scmp.eq.s32.totalorder %s23, 1
      %p125 = scmp.ne.s32.totalorder %s120, %s122
      %p126 = scmp.eq.s32.totalorder %s23, 0
      %p127 = por %p125, %p126
      %p128 = scmp.ne.s32.totalorder %s120, %s122
      %p129 = scmp.eq.s32.totalorder %s28, 1
      %p130 = por %p128, %p129
      %p131 = scmp.ne.s32.totalorder %s122, %s123
      %p132 = scmp.eq.s32.totalorder %s28, 0
      %p133 = por %p131, %p132
      %p134 = scmp.ne.s32.totalorder %s122, %s123
      %p135 = scmp.eq.s32.totalorder %s29, 1
      %p136 = por %p134, %p135
      %p138 = scmp.ne.s32.totalorder %s123, %s137
      %p139 = scmp.eq.s32.totalorder %s29, 0
      %p140 = por %p138, %p139
      %s142 = sadd.s32 %s141, 1
      %p145 = scmp.eq.s32.totalorder %s23, 1
      %p146 = scmp.ne.s32.totalorder %s141, %s143
      %p147 = scmp.eq.s32.totalorder %s23, 0
      %p148 = por %p146, %p147
      %p149 = scmp.ne.s32.totalorder %s141, %s143
      %p150 = scmp.eq.s32.totalorder %s28, 1
      %p151 = por %p149, %p150
      %p152 = scmp.ne.s32.totalorder %s143, %s144
      %p153 = scmp.eq.s32.totalorder %s28, 0
      %p154 = por %p152, %p153
      %p155 = scmp.ne.s32.totalorder %s143, %s144
      %p156 = scmp.eq.s32.totalorder %s29, 1
      %p157 = por %p155, %p156
      %p159 = scmp.ne.s32.totalorder %s144, %s158
      %p160 = scmp.eq.s32.totalorder %s29, 0
      %p161 = por %p159, %p160
      %s163 = sadd.s32 %s162, 1
      %p166 = scmp.eq.s32.totalorder %s23, 1
      %p167 = scmp.ne.s32.totalorder %s162, %s164
      %p168 = scmp.eq.s32.totalorder %s23, 0
      %p169 = por %p167, %p168
      %p170 = scmp.ne.s32.totalorder %s162, %s164
      %p171 = scmp.eq.s32.totalorder %s28, 1
      %p172 = por %p170, %p171
      %p173 = scmp.ne.s32.totalorder %s164, %s165
      %p174 = scmp.eq.s32.totalorder %s28, 0
      %p175 = por %p173, %p174
      %p176 = scmp.ne.s32.totalorder %s164, %s165
      %p177 = scmp.eq.s32.totalorder %s29, 1
      %p178 = por %p176, %p177
      %p180 = scmp.ne.s32.totalorder %s165, %s179
      %p181 = scmp.eq.s32.totalorder %s29, 0
      %p182 = por %p180, %p181
      %s184 = sadd.s32 %s183, 1
      %p187 = scmp.eq.s32.totalorder %s23, 1
      %p188 = scmp.ne.s32.totalorder %s183, %s185
      %p189 = scmp.eq.s32.totalorder %s23, 0
      %p190 = por %p188, %p189
      %p191 = scmp.ne.s32.totalorder %s183, %s185
      %p192 = scmp.eq.s32.totalorder %s28, 1
      %p193 = por %p191, %p192
      %p194 = scmp.ne.s32.totalorder %s185, %s186
      %p195 = scmp.eq.s32.totalorder %s28, 0
      %p196 = por %p194, %p195
      %p197 = scmp.ne.s32.totalorder %s185, %s186
      %p198 = scmp.eq.s32.totalorder %s29, 1
      %p199 = por %p197, %p198
      %p201 = scmp.ne.s32.totalorder %s186, %s200
      %p202 = scmp.eq.s32.totalorder %s29, 0
      %p203 = por %p201, %p202
      %s205 = sadd.s32 %s204, 1
      %p208 = scmp.eq.s32.totalorder %s23, 1
      %p209 = scmp.ne.s32.totalorder %s204, %s206
      %p210 = scmp.eq.s32.totalorder %s23, 0
      %p211 = por %p209, %p210
      %p212 = scmp.ne.s32.totalorder %s204, %s206
      %p213 = scmp.eq.s32.totalorder %s28, 1
      %p214 = por %p212, %p213
      %p215 = scmp.ne.s32.totalorder %s206, %s207
      %p216 = scmp.eq.s32.totalorder %s28, 0
      %p217 = por %p215, %p216
      %p218 = scmp.ne.s32.totalorder %s206, %s207
      %p219 = scmp.eq.s32.totalorder %s29, 1
      %p220 = por %p218, %p219
      %p222 = scmp.ne.s32.totalorder %s207, %s221
      %p223 = scmp.eq.s32.totalorder %s29, 0
      %p224 = por %p222, %p223
      %s225 = ssub.s32 %s23, %s30
      %p226 = scmp.eq.s32.totalorder %s225, 0
      %s228 = sadd.s32 %s227, 1
      %s229 = scalar_select %p226, %s227, %s228
      %p232 = pneg %p226
      %p233 = scmp.eq.s32.totalorder %s23, 1
      %p234 = por %p232, %p233
      %p235 = scmp.ne.s32.totalorder %s227, %s230
      %p236 = scmp.eq.s32.totalorder %s23, 0
      %p237 = por %p235, %p236
      %p238 = scmp.ne.s32.totalorder %s227, %s230
      %p239 = scmp.eq.s32.totalorder %s28, 1
      %p240 = por %p238, %p239
      %p241 = scmp.ne.s32.totalorder %s230, %s231
      %p242 = scmp.eq.s32.totalorder %s28, 0
      %p243 = por %p241, %p242
      %p244 = scmp.ne.s32.totalorder %s230, %s231
      %p245 = scmp.eq.s32.totalorder %s29, 1
      %p246 = por %p244, %p245
      %p248 = scmp.ne.s32.totalorder %s231, %s247
      %p249 = scmp.eq.s32.totalorder %s29, 0
      %p250 = por %p248, %p249
      %p251 = scmp.le.s32.totalorder 1, %s23
      %p252 = scmp.lt.s32.totalorder %s23, 3
      %p253 = pnand %p251, %p252
      %p254 = pneg %p253
      // Predicated region
      $region9: #{tpu_custom_call.1} parent=5 // pred_check
        _
      $region10: #{tpu_custom_call.1} parent=5 // pred_check_branch
        %256 = sbr.rel (%p253) target = $region12
      $region11: #{tpu_custom_call.1} parent=5 // pred_region
        %s257 = ssub.s32 %s23, 1
        // Predicated region
        $region13: #{tpu_custom_call.1} parent=11 // pred_check
          %p258 = pneg %p70
        $region14: #{tpu_custom_call.1} parent=11 // pred_check_branch
          %260 = sbr.rel (%p258) target = $region16
        $region15: #{tpu_custom_call.1} parent=11 // pred_region
          _
        $region16: #{tpu_custom_call.1} parent=11 // pred_fallthru
          _
        // Predicated region
        $region17: #{tpu_custom_call.1} parent=11 // pred_check
          %p261 = pneg %p91
        $region18: #{tpu_custom_call.1} parent=11 // pred_check_branch
          %263 = sbr.rel (%p261) target = $region20
        $region19: #{tpu_custom_call.1} parent=11 // pred_region
          _
        $region20: #{tpu_custom_call.1} parent=11 // pred_fallthru
          _
        // Predicated region
        $region21: #{tpu_custom_call.1} parent=11 // pred_check
          %p264 = pneg %p112
        $region22: #{tpu_custom_call.1} parent=11 // pred_check_branch
          %266 = sbr.rel (%p264) target = $region24
        $region23: #{tpu_custom_call.1} parent=11 // pred_region
          %s268 = ssub.s32 9216, 9216
          %269 = vsyncadd [#allocation6], %s268
          %s270 = sshll.u32 [#allocation5], 4
          %s271 = int_to_ptr.vmem [resolvable:$true] %s270
          %276 = dma.hbm_to_vmem [thread:$0]  %s3, 9216, %s271, [#allocation6], 64, 64, 4
        $region24: #{tpu_custom_call.1} parent=11 // pred_fallthru
          _
        // Predicated region
        $region25: #{tpu_custom_call.1} parent=11 // pred_check
          %p277 = pneg %p133
        $region26: #{tpu_custom_call.1} parent=11 // pred_check_branch
          %279 = sbr.rel (%p277) target = $region28
        $region27: #{tpu_custom_call.1} parent=11 // pred_region
          _
        $region28: #{tpu_custom_call.1} parent=11 // pred_fallthru
          _
        // Predicated region
        $region29: #{tpu_custom_call.1} parent=11 // pred_check
          %p280 = pneg %p154
        $region30: #{tpu_custom_call.1} parent=11 // pred_check_branch
          %282 = sbr.rel (%p280) target = $region32
        $region31: #{tpu_custom_call.1} parent=11 // pred_region
          _
        $region32: #{tpu_custom_call.1} parent=11 // pred_fallthru
          _
        // Predicated region
        $region33: #{tpu_custom_call.1} parent=11 // pred_check
          %p283 = pneg %p175
        $region34: #{tpu_custom_call.1} parent=11 // pred_check_branch
          %285 = sbr.rel (%p283) target = $region36
        $region35: #{tpu_custom_call.1} parent=11 // pred_region
          %s287 = ssub.s32 9216, 9216
          %288 = vsyncadd [#allocation6], %s287
          %s289 = sshll.u32 [#allocation7], 4
          %s290 = int_to_ptr.vmem [resolvable:$true] %s289
          %295 = dma.hbm_to_vmem [thread:$0]  %s6, 9216, %s290, [#allocation6], 64, 64, 4
        $region36: #{tpu_custom_call.1} parent=11 // pred_fallthru
          _
        // Predicated region
        $region37: #{tpu_custom_call.1} parent=11 // pred_check
          %p296 = pneg %p196
        $region38: #{tpu_custom_call.1} parent=11 // pred_check_branch
          %298 = sbr.rel (%p296) target = $region40
        $region39: #{tpu_custom_call.1} parent=11 // pred_region
          %s300 = ssub.s32 1024, 1024
          %301 = vsyncadd [#allocation9], %s300
          %s302 = sshll.u32 [#allocation8], 4
          %s303 = int_to_ptr.vmem [resolvable:$true] %s302
          %308 = dma.hbm_to_vmem [thread:$0]  %s7, 1024, %s303, [#allocation9], 64, 64, 4
        $region40: #{tpu_custom_call.1} parent=11 // pred_fallthru
          _
        // Predicated region
        $region41: #{tpu_custom_call.1} parent=11 // pred_check
          %p309 = pneg %p217
        $region42: #{tpu_custom_call.1} parent=11 // pred_check_branch
          %311 = sbr.rel (%p309) target = $region44
        $region43: #{tpu_custom_call.1} parent=11 // pred_region
          _
        $region44: #{tpu_custom_call.1} parent=11 // pred_fallthru
          _
      $region12: #{tpu_custom_call.1} parent=5 // pred_fallthru
        _
      %p312 = scmp.lt.s32.totalorder %s23, 2
      // Predicated region
      $region45: #{tpu_custom_call.1} parent=5 // pred_check
        %p313 = pneg %p312
      $region46: #{tpu_custom_call.1} parent=5 // pred_check_branch
        %315 = sbr.rel (%p313) target = $region48
      $region47: #{tpu_custom_call.1} parent=5 // pred_region
        // Predicated region
        $region49: #{tpu_custom_call.1} parent=47 // pred_check
          %p316 = pneg %p43
        $region50: #{tpu_custom_call.1} parent=47 // pred_check_branch
          %318 = sbr.rel (%p316) target = $region52
        $region51: #{tpu_custom_call.1} parent=47 // pred_region
          %s319 = sand.u32 %s33, 1
          %s320 = scalar_lea.sflag [#allocation3], %s319
          %s321 = sand.u32 %s33, 1
          %s322 = smul.addr %s321, 128
          %s323 = scalar_lea.vmem [#allocation2], %s322
          %s325 = ssub.s32 2048, 2048
          %326 = vsyncadd %s320, %s325
          %s327 = smul.addr %s23, 32
          %s328 = smul.addr %s327, 64
          %s329 = scalar_lea.hbm %s0, %s328
          %s330 = sshll.u32 %s323, 4
          %s331 = int_to_ptr.vmem [resolvable:$true] %s330
          %336 = dma.hbm_to_vmem [thread:$0]  %s329, 2048, %s331, %s320, 64, 64, 4
        $region52: #{tpu_custom_call.1} parent=47 // pred_fallthru
          _
      $region48: #{tpu_custom_call.1} parent=5 // pred_fallthru
        _
      %p337 = scmp.le.s32.totalorder 1, %s23
      %p338 = scmp.lt.s32.totalorder %s23, 3
      %p339 = pnand %p337, %p338
      %p340 = pneg %p339
      // Predicated region
      $region53: #{tpu_custom_call.1} parent=5 // pred_check
        _
      $region54: #{tpu_custom_call.1} parent=5 // pred_check_branch
        %342 = sbr.rel (%p339) target = $region56
      $region55: #{tpu_custom_call.1} parent=5 // pred_region
        %s343 = ssub.s32 %s23, 1
        %s344 = sand.u32 %s36, 1
        %s345 = scalar_lea.sflag [#allocation3], %s344
        %s346 = sand.u32 %s36, 1
        %s347 = smul.addr %s346, 128
        %s348 = scalar_lea.vmem [#allocation2], %s347
        // Predicated region
        $region57: #{tpu_custom_call.1} parent=55 // pred_check
          %p349 = pneg %p49
        $region58: #{tpu_custom_call.1} parent=55 // pred_check_branch
          %351 = sbr.rel (%p349) target = $region60
        $region59: #{tpu_custom_call.1} parent=55 // pred_region
          %352 = dma.done %s345, 2048
        $region60: #{tpu_custom_call.1} parent=55 // pred_fallthru
          _
        // Predicated region
        $region61: #{tpu_custom_call.1} parent=55 // pred_check
          %p353 = pneg %p112
        $region62: #{tpu_custom_call.1} parent=55 // pred_check_branch
          %355 = sbr.rel (%p353) target = $region64
        $region63: #{tpu_custom_call.1} parent=55 // pred_region
          %356 = dma.done [#allocation6], 9216
        $region64: #{tpu_custom_call.1} parent=55 // pred_fallthru
          _
        // Predicated region
        $region65: #{tpu_custom_call.1} parent=55 // pred_check
          %p357 = pneg %p175
        $region66: #{tpu_custom_call.1} parent=55 // pred_check_branch
          %359 = sbr.rel (%p357) target = $region68
        $region67: #{tpu_custom_call.1} parent=55 // pred_region
          %360 = dma.done [#allocation6], 9216
        $region68: #{tpu_custom_call.1} parent=55 // pred_fallthru
          _
        // Predicated region
        $region69: #{tpu_custom_call.1} parent=55 // pred_check
          %p361 = pneg %p196
        $region70: #{tpu_custom_call.1} parent=55 // pred_check_branch
          %363 = sbr.rel (%p361) target = $region72
        $region71: #{tpu_custom_call.1} parent=55 // pred_region
          %364 = dma.done [#allocation9], 1024
        $region72: #{tpu_custom_call.1} parent=55 // pred_fallthru
          _
        %s365 = sand.u32 %s36, 1
        %s366 = scalar_lea.sflag [#allocation3], %s365
        %s367 = sand.u32 %s36, 1
        %s368 = smul.addr %s367, 128
        %s369 = scalar_lea.vmem [#allocation2], %s368
        %p370 = pneg %p49
        %p371 = pneg %p46
        %p372 = pneg %p70
        %p373 = pneg %p67
        %p374 = pneg %p91
        %p375 = pneg %p88
        %p376 = pneg %p112
        %p377 = pneg %p109
        %p378 = pneg %p133
        %p379 = pneg %p130
        %p380 = pneg %p154
        %p381 = pneg %p151
        %p382 = pneg %p175
        %p383 = pneg %p172
        %p384 = pneg %p196
        %p385 = pneg %p193
        %p386 = pneg %p217
        %p387 = pneg %p214
        %p388 = pneg %p243
        %p389 = pneg %p240
        %s390 = sand.u32 %s230, 1
        %s391 = scalar_lea.sflag [#allocation4], %s390
        %s392 = sand.u32 %s230, 1
        %s393 = smul.addr %s392, 256
        %s394 = scalar_lea.vmem [#allocation10], %s393
        %v396 = vld [vmem:[%s348] sm:$0xf]
        %v397 = vld [vmem:[%s348 + $0x4] sm:$0xf]
        %v398 = vld [vmem:[%s348 + $0x8] sm:$0xf]
        %v399 = vld [vmem:[%s348 + $0xc] sm:$0xf]
        %v400 = vld [vmem:[%s348 + $0x10] sm:$0xf]
        %v401 = vld [vmem:[%s348 + $0x14] sm:$0xf]
        %v402 = vld [vmem:[%s348 + $0x18] sm:$0xf]
        %v403 = vld [vmem:[%s348 + $0x1c] sm:$0xf]
        %v404 = vld [vmem:[%s348 + $0x20] sm:$0xf]
        %v405 = vld [vmem:[%s348 + $0x24] sm:$0xf]
        %v406 = vld [vmem:[%s348 + $0x28] sm:$0xf]
        %v407 = vld [vmem:[%s348 + $0x2c] sm:$0xf]
        %v408 = vld [vmem:[%s348 + $0x30] sm:$0xf]
        %v409 = vld [vmem:[%s348 + $0x34] sm:$0xf]
        %v410 = vld [vmem:[%s348 + $0x38] sm:$0xf]
        %v411 = vld [vmem:[%s348 + $0x3c] sm:$0xf]
        %v412 = vld [vmem:[%s348 + $0x40] sm:$0xf]
        %v413 = vld [vmem:[%s348 + $0x44] sm:$0xf]
        %v414 = vld [vmem:[%s348 + $0x48] sm:$0xf]
        %v415 = vld [vmem:[%s348 + $0x4c] sm:$0xf]
        %v416 = vld [vmem:[%s348 + $0x50] sm:$0xf]
        %v417 = vld [vmem:[%s348 + $0x54] sm:$0xf]
        %v418 = vld [vmem:[%s348 + $0x58] sm:$0xf]
        %v419 = vld [vmem:[%s348 + $0x5c] sm:$0xf]
        %v420 = vld [vmem:[%s348 + $0x60] sm:$0xf]
        %v421 = vld [vmem:[%s348 + $0x64] sm:$0xf]
        %v422 = vld [vmem:[%s348 + $0x68] sm:$0xf]
        %v423 = vld [vmem:[%s348 + $0x6c] sm:$0xf]
        %v424 = vld [vmem:[%s348 + $0x70] sm:$0xf]
        %v425 = vld [vmem:[%s348 + $0x74] sm:$0xf]
        %v426 = vld [vmem:[%s348 + $0x78] sm:$0xf]
        %v427 = vld [vmem:[%s348 + $0x7c] sm:$0xf]
        %v428 = vld [vmem:[#allocation8] sm:$0xf]
        %v429 = vld [vmem:[#allocation8 + $0x4] sm:$0xf]
        %v430 = vld [vmem:[#allocation8 + $0x8] sm:$0xf]
        %v431 = vld [vmem:[#allocation8 + $0xc] sm:$0xf]
        %v432 = vld [vmem:[#allocation8 + $0x10] sm:$0xf]
        %v433 = vld [vmem:[#allocation8 + $0x14] sm:$0xf]
        %v434 = vld [vmem:[#allocation8 + $0x18] sm:$0xf]
        %v435 = vld [vmem:[#allocation8 + $0x1c] sm:$0xf]
        %v436 = vld [vmem:[#allocation8 + $0x20] sm:$0xf]
        %v437 = vld [vmem:[#allocation8 + $0x24] sm:$0xf]
        %v438 = vld [vmem:[#allocation8 + $0x28] sm:$0xf]
        %v439 = vld [vmem:[#allocation8 + $0x2c] sm:$0xf]
        %v440 = vld [vmem:[#allocation8 + $0x30] sm:$0xf]
        %v441 = vld [vmem:[#allocation8 + $0x34] sm:$0xf]
        %v442 = vld [vmem:[#allocation8 + $0x38] sm:$0xf]
        %v443 = vld [vmem:[#allocation8 + $0x3c] sm:$0xf]
        %v476 = vunpack.c.l.b16 %v396
        %v477 = vunpack.c.l.b16 %v397
        %v478 = vunpack.c.l.b16 %v398
        %v479 = vunpack.c.l.b16 %v399
        %v480 = vunpack.c.l.b16 %v400
        %v481 = vunpack.c.l.b16 %v401
        %v482 = vunpack.c.l.b16 %v402
        %v483 = vunpack.c.l.b16 %v403
        %v484 = vunpack.c.l.b16 %v404
        %v485 = vunpack.c.l.b16 %v405
        %v486 = vunpack.c.l.b16 %v406
        %v487 = vunpack.c.l.b16 %v407
        %v488 = vunpack.c.l.b16 %v408
        %v489 = vunpack.c.l.b16 %v409
        %v490 = vunpack.c.l.b16 %v410
        %v491 = vunpack.c.l.b16 %v411
        %v492 = vunpack.c.l.b16 %v412
        %v493 = vunpack.c.l.b16 %v413
        %v494 = vunpack.c.l.b16 %v414
        %v495 = vunpack.c.l.b16 %v415
        %v496 = vunpack.c.l.b16 %v416
        %v497 = vunpack.c.l.b16 %v417
        %v498 = vunpack.c.l.b16 %v418
        %v499 = vunpack.c.l.b16 %v419
        %v500 = vunpack.c.l.b16 %v420
        %v501 = vunpack.c.l.b16 %v421
        %v502 = vunpack.c.l.b16 %v422
        %v503 = vunpack.c.l.b16 %v423
        %v504 = vunpack.c.l.b16 %v424
        %v505 = vunpack.c.l.b16 %v425
        %v506 = vunpack.c.l.b16 %v426
        %v507 = vunpack.c.l.b16 %v427
        %v508 = vpack.c.b16 %v477, %v476
        %v509 = vpack.c.b16 %v479, %v478
        %v510 = vpack.c.b16 %v481, %v480
        %v511 = vpack.c.b16 %v483, %v482
        %v512 = vpack.c.b16 %v485, %v484
        %v513 = vpack.c.b16 %v487, %v486
        %v514 = vpack.c.b16 %v489, %v488
        %v515 = vpack.c.b16 %v491, %v490
        %v516 = vpack.c.b16 %v493, %v492
        %v517 = vpack.c.b16 %v495, %v494
        %v518 = vpack.c.b16 %v497, %v496
        %v519 = vpack.c.b16 %v499, %v498
        %v520 = vpack.c.b16 %v501, %v500
        %v521 = vpack.c.b16 %v503, %v502
        %v522 = vpack.c.b16 %v505, %v504
        %v523 = vpack.c.b16 %v507, %v506
        %v556 = vunpack.c.l.b16 %v428
        %v557 = vunpack.c.l.b16 %v429
        %v558 = vunpack.c.l.b16 %v430
        %v559 = vunpack.c.l.b16 %v431
        %v560 = vunpack.c.l.b16 %v432
        %v561 = vunpack.c.l.b16 %v433
        %v562 = vunpack.c.l.b16 %v434
        %v563 = vunpack.c.l.b16 %v435
        %v564 = vunpack.c.l.b16 %v436
        %v565 = vunpack.c.l.b16 %v437
        %v566 = vunpack.c.l.b16 %v438
        %v567 = vunpack.c.l.b16 %v439
        %v568 = vunpack.c.l.b16 %v440
        %v569 = vunpack.c.l.b16 %v441
        %v570 = vunpack.c.l.b16 %v442
        %v571 = vunpack.c.l.b16 %v443
        %v572 = vpack.c.b16 %v557, %v556
        %v573 = vpack.c.b16 %v559, %v558
        %v574 = vpack.c.b16 %v561, %v560
        %v575 = vpack.c.b16 %v563, %v562
        %v576 = vpack.c.b16 %v565, %v564
        %v577 = vpack.c.b16 %v567, %v566
        %v578 = vpack.c.b16 %v569, %v568
        %v579 = vpack.c.b16 %v571, %v570
        %588 = vmatprep.subr.bf16.mxu0 0
        %589 = vmatpush1.bf16.msra.mxu0 %v579
        %590 = vmatprep.subr.bf16.mxu0 0
        %591 = vmatpush1.bf16.msra.mxu0 %v578
        %592 = vmatprep.subr.bf16.mxu0 0
        %593 = vmatpush1.bf16.msra.mxu0 %v577
        %594 = vmatprep.subr.bf16.mxu0 0
        %595 = vmatpush1.bf16.msra.mxu0 %v576
        %596 = vmatprep.subr.bf16.mxu0 0
        %597 = vmatpush1.bf16.msra.mxu0 %v575
        %598 = vmatprep.subr.bf16.mxu0 0
        %599 = vmatpush1.bf16.msra.mxu0 %v574
        %600 = vmatprep.subr.bf16.mxu0 0
        %601 = vmatpush1.bf16.msra.mxu0 %v573
        %602 = vmatprep.subr.bf16.mxu0 0
        %603 = vmatpush1.bf16.msra.mxu0 %v572
        %604 = vmatprep.subr.bf16.mxu0 0
        %605 = vmatpush2.bf16.msra.mxu0 0
        %606 = vmatprep.subr.bf16.mxu0 0
        %607 = vmatpush2.bf16.msra.mxu0 0
        %608 = vmatprep.subr.bf16.mxu0 0
        %609 = vmatpush2.bf16.msra.mxu0 0
        %610 = vmatprep.subr.bf16.mxu0 0
        %611 = vmatpush2.bf16.msra.mxu0 0
        %612 = vmatprep.subr.bf16.mxu0 0
        %613 = vmatpush2.bf16.msra.mxu0 0
        %614 = vmatprep.subr.bf16.mxu0 0
        %615 = vmatpush2.bf16.msra.mxu0 0
        %616 = vmatprep.subr.bf16.mxu0 0
        %617 = vmatpush2.bf16.msra.mxu0 0
        %618 = vmatprep.subr.bf16.mxu0 0
        %619 = vmatpush2.bf16.msra.mxu0 0
        %620 = vmatprep.mubr.bf16.mxu0 0
        %621 = vmatmul.mubr.bf16.gmra.mxu0 %v508
        %v622 = vpop.f32.mrf.mxu0
        %v623 = vadd.f32 0.0, %v622
        %v624 = vpop.f32.mrf.mxu0
        %v625 = vpop.f32.mrf.mxu0
        %v626 = vadd.f32 0.0, %v625
        %v627 = vpop.f32.mrf.mxu0
        %628 = vmatprep.mubr.bf16.mxu0 0
        %629 = vmatmul.mubr.bf16.gmra.mxu0 %v509
        %v630 = vpop.f32.mrf.mxu0
        %v631 = vadd.f32 0.0, %v630
        %v632 = vpop.f32.mrf.mxu0
        %v633 = vpop.f32.mrf.mxu0
        %v634 = vadd.f32 0.0, %v633
        %v635 = vpop.f32.mrf.mxu0
        %636 = vmatprep.mubr.bf16.mxu0 0
        %637 = vmatmul.mubr.bf16.gmra.mxu0 %v510
        %v638 = vpop.f32.mrf.mxu0
        %v639 = vadd.f32 0.0, %v638
        %v640 = vpop.f32.mrf.mxu0
        %v641 = vpop.f32.mrf.mxu0
        %v642 = vadd.f32 0.0, %v641
        %v643 = vpop.f32.mrf.mxu0
        %644 = vmatprep.mubr.bf16.mxu0 0
        %645 = vmatmul.mubr.bf16.gmra.mxu0 %v511
        %v646 = vpop.f32.mrf.mxu0
        %v647 = vadd.f32 0.0, %v646
        %v648 = vpop.f32.mrf.mxu0
        %v649 = vpop.f32.mrf.mxu0
        %v650 = vadd.f32 0.0, %v649
        %v651 = vpop.f32.mrf.mxu0
        %652 = vmatprep.mubr.bf16.mxu0 0
        %653 = vmatmul.mubr.bf16.gmra.mxu0 %v512
        %v654 = vpop.f32.mrf.mxu0
        %v655 = vadd.f32 0.0, %v654
        %v656 = vpop.f32.mrf.mxu0
        %v657 = vpop.f32.mrf.mxu0
        %v658 = vadd.f32 0.0, %v657
        %v659 = vpop.f32.mrf.mxu0
        %660 = vmatprep.mubr.bf16.mxu0 0
        %661 = vmatmul.mubr.bf16.gmra.mxu0 %v513
        %v662 = vpop.f32.mrf.mxu0
        %v663 = vadd.f32 0.0, %v662
        %v664 = vpop.f32.mrf.mxu0
        %v665 = vpop.f32.mrf.mxu0
        %v666 = vadd.f32 0.0, %v665
        %v667 = vpop.f32.mrf.mxu0
        %668 = vmatprep.mubr.bf16.mxu0 0
        %669 = vmatmul.mubr.bf16.gmra.mxu0 %v514
        %v670 = vpop.f32.mrf.mxu0
        %v671 = vadd.f32 0.0, %v670
        %v672 = vpop.f32.mrf.mxu0
        %v673 = vpop.f32.mrf.mxu0
        %v674 = vadd.f32 0.0, %v673
        %v675 = vpop.f32.mrf.mxu0
        %676 = vmatprep.mubr.bf16.mxu0 0
        %677 = vmatmul.mubr.bf16.gmra.mxu0 %v515
        %v678 = vpop.f32.mrf.mxu0
        %v679 = vadd.f32 0.0, %v678
        %v680 = vpop.f32.mrf.mxu0
        %v681 = vpop.f32.mrf.mxu0
        %v682 = vadd.f32 0.0, %v681
        %v683 = vpop.f32.mrf.mxu0
        %684 = vmatprep.mubr.bf16.mxu0 0
        %685 = vmatmul.mubr.bf16.gmra.mxu0 %v516
        %v686 = vpop.f32.mrf.mxu0
        %v687 = vadd.f32 0.0, %v686
        %v688 = vpop.f32.mrf.mxu0
        %v689 = vpop.f32.mrf.mxu0
        %v690 = vadd.f32 0.0, %v689
        %v691 = vpop.f32.mrf.mxu0
        %692 = vmatprep.mubr.bf16.mxu0 0
        %693 = vmatmul.mubr.bf16.gmra.mxu0 %v517
        %v694 = vpop.f32.mrf.mxu0
        %v695 = vadd.f32 0.0, %v694
        %v696 = vpop.f32.mrf.mxu0
        %v697 = vpop.f32.mrf.mxu0
        %v698 = vadd.f32 0.0, %v697
        %v699 = vpop.f32.mrf.mxu0
        %700 = vmatprep.mubr.bf16.mxu0 0
        %701 = vmatmul.mubr.bf16.gmra.mxu0 %v518
        %v702 = vpop.f32.mrf.mxu0
        %v703 = vadd.f32 0.0, %v702
        %v704 = vpop.f32.mrf.mxu0
        %v705 = vpop.f32.mrf.mxu0
        %v706 = vadd.f32 0.0, %v705
        %v707 = vpop.f32.mrf.mxu0
        %708 = vmatprep.mubr.bf16.mxu0 0
        %709 = vmatmul.mubr.bf16.gmra.mxu0 %v519
        %v710 = vpop.f32.mrf.mxu0
        %v711 = vadd.f32 0.0, %v710
        %v712 = vpop.f32.mrf.mxu0
        %v713 = vpop.f32.mrf.mxu0
        %v714 = vadd.f32 0.0, %v713
        %v715 = vpop.f32.mrf.mxu0
        %716 = vmatprep.mubr.bf16.mxu0 0
        %717 = vmatmul.mubr.bf16.gmra.mxu0 %v520
        %v718 = vpop.f32.mrf.mxu0
        %v719 = vadd.f32 0.0, %v718
        %v720 = vpop.f32.mrf.mxu0
        %v721 = vpop.f32.mrf.mxu0
        %v722 = vadd.f32 0.0, %v721
        %v723 = vpop.f32.mrf.mxu0
        %724 = vmatprep.mubr.bf16.mxu0 0
        %725 = vmatmul.mubr.bf16.gmra.mxu0 %v521
        %v726 = vpop.f32.mrf.mxu0
        %v727 = vadd.f32 0.0, %v726
        %v728 = vpop.f32.mrf.mxu0
        %v729 = vpop.f32.mrf.mxu0
        %v730 = vadd.f32 0.0, %v729
        %v731 = vpop.f32.mrf.mxu0
        %732 = vmatprep.mubr.bf16.mxu0 0
        %733 = vmatmul.mubr.bf16.gmra.mxu0 %v522
        %v734 = vpop.f32.mrf.mxu0
        %v735 = vadd.f32 0.0, %v734
        %v736 = vpop.f32.mrf.mxu0
        %v737 = vpop.f32.mrf.mxu0
        %v738 = vadd.f32 0.0, %v737
        %v739 = vpop.f32.mrf.mxu0
        %740 = vmatprep.mubr.bf16.mxu0 0
        %741 = vmatmul.mubr.bf16.gmra.mxu0 %v523
        %v742 = vpop.f32.mrf.mxu0
        %v743 = vadd.f32 0.0, %v742
        %v744 = vpop.f32.mrf.mxu0
        %v745 = vpop.f32.mrf.mxu0
        %v746 = vadd.f32 0.0, %v745
        %v747 = vpop.f32.mrf.mxu0
        %748 = vdwg.mxu0
        %749 = vst [vmem:[%s394] sm:$0xff] %v623
        %750 = vst [vmem:[%s394 + $0x8] sm:$0xff] %v626
        %751 = vst [vmem:[%s394 + $0x10] sm:$0xff] %v631
        %752 = vst [vmem:[%s394 + $0x18] sm:$0xff] %v634
        %753 = vst [vmem:[%s394 + $0x20] sm:$0xff] %v639
        %754 = vst [vmem:[%s394 + $0x28] sm:$0xff] %v642
        %755 = vst [vmem:[%s394 + $0x30] sm:$0xff] %v647
        %756 = vst [vmem:[%s394 + $0x38] sm:$0xff] %v650
        %757 = vst [vmem:[%s394 + $0x40] sm:$0xff] %v655
        %758 = vst [vmem:[%s394 + $0x48] sm:$0xff] %v658
        %759 = vst [vmem:[%s394 + $0x50] sm:$0xff] %v663
        %760 = vst [vmem:[%s394 + $0x58] sm:$0xff] %v666
        %761 = vst [vmem:[%s394 + $0x60] sm:$0xff] %v671
        %762 = vst [vmem:[%s394 + $0x68] sm:$0xff] %v674
        %763 = vst [vmem:[%s394 + $0x70] sm:$0xff] %v679
        %764 = vst [vmem:[%s394 + $0x78] sm:$0xff] %v682
        %765 = vst [vmem:[%s394 + $0x80] sm:$0xff] %v687
        %766 = vst [vmem:[%s394 + $0x88] sm:$0xff] %v690
        %767 = vst [vmem:[%s394 + $0x90] sm:$0xff] %v695
        %768 = vst [vmem:[%s394 + $0x98] sm:$0xff] %v698
        %769 = vst [vmem:[%s394 + $0xa0] sm:$0xff] %v703
        %770 = vst [vmem:[%s394 + $0xa8] sm:$0xff] %v706
        %771 = vst [vmem:[%s394 + $0xb0] sm:$0xff] %v711
        %772 = vst [vmem:[%s394 + $0xb8] sm:$0xff] %v714
        %773 = vst [vmem:[%s394 + $0xc0] sm:$0xff] %v719
        %774 = vst [vmem:[%s394 + $0xc8] sm:$0xff] %v722
        %775 = vst [vmem:[%s394 + $0xd0] sm:$0xff] %v727
        %776 = vst [vmem:[%s394 + $0xd8] sm:$0xff] %v730
        %777 = vst [vmem:[%s394 + $0xe0] sm:$0xff] %v735
        %778 = vst [vmem:[%s394 + $0xe8] sm:$0xff] %v738
        %779 = vst [vmem:[%s394 + $0xf0] sm:$0xff] %v743
        %780 = vst [vmem:[%s394 + $0xf8] sm:$0xff] %v746
        %v781 = vunpack.c.l.bf16 %v396
        %v782 = vunpack.c.l.bf16 %v397
        %v783 = vunpack.c.l.bf16 %v398
        %v784 = vunpack.c.l.bf16 %v399
        %v785 = vunpack.c.l.bf16 %v400
        %v786 = vunpack.c.l.bf16 %v401
        %v787 = vunpack.c.l.bf16 %v402
        %v788 = vunpack.c.l.bf16 %v403
        %v789 = vunpack.c.l.bf16 %v404
        %v790 = vunpack.c.l.bf16 %v405
        %v791 = vunpack.c.l.bf16 %v406
        %v792 = vunpack.c.l.bf16 %v407
        %v793 = vunpack.c.l.bf16 %v408
        %v794 = vunpack.c.l.bf16 %v409
        %v795 = vunpack.c.l.bf16 %v410
        %v796 = vunpack.c.l.bf16 %v411
        %v797 = vunpack.c.l.bf16 %v412
        %v798 = vunpack.c.l.bf16 %v413
        %v799 = vunpack.c.l.bf16 %v414
        %v800 = vunpack.c.l.bf16 %v415
        %v801 = vunpack.c.l.bf16 %v416
        %v802 = vunpack.c.l.bf16 %v417
        %v803 = vunpack.c.l.bf16 %v418
        %v804 = vunpack.c.l.bf16 %v419
        %v805 = vunpack.c.l.bf16 %v420
        %v806 = vunpack.c.l.bf16 %v421
        %v807 = vunpack.c.l.bf16 %v422
        %v808 = vunpack.c.l.bf16 %v423
        %v809 = vunpack.c.l.bf16 %v424
        %v810 = vunpack.c.l.bf16 %v425
        %v811 = vunpack.c.l.bf16 %v426
        %v812 = vunpack.c.l.bf16 %v427
        %v813 = vld [vmem:[%s1] sm:$0x1]
        %v815 = vlaneseq
        %v816 = vshrl.u32 %v815, 7
        %v817 = vsub.s32 0, %v816
        %v818 = vrot.slane %v813, %v817
        %v820 = vmul.f32 %v781, %v818
        %v821 = vmul.f32 %v782, %v818
        %v822 = vmul.f32 %v783, %v818
        %v823 = vmul.f32 %v784, %v818
        %v824 = vmul.f32 %v785, %v818
        %v825 = vmul.f32 %v786, %v818
        %v826 = vmul.f32 %v787, %v818
        %v827 = vmul.f32 %v788, %v818
        %v828 = vmul.f32 %v789, %v818
        %v829 = vmul.f32 %v790, %v818
        %v830 = vmul.f32 %v791, %v818
        %v831 = vmul.f32 %v792, %v818
        %v832 = vmul.f32 %v793, %v818
        %v833 = vmul.f32 %v794, %v818
        %v834 = vmul.f32 %v795, %v818
        %v835 = vmul.f32 %v796, %v818
        %v836 = vmul.f32 %v797, %v818
        %v837 = vmul.f32 %v798, %v818
        %v838 = vmul.f32 %v799, %v818
        %v839 = vmul.f32 %v800, %v818
        %v840 = vmul.f32 %v801, %v818
        %v841 = vmul.f32 %v802, %v818
        %v842 = vmul.f32 %v803, %v818
        %v843 = vmul.f32 %v804, %v818
        %v844 = vmul.f32 %v805, %v818
        %v845 = vmul.f32 %v806, %v818
        %v846 = vmul.f32 %v807, %v818
        %v847 = vmul.f32 %v808, %v818
        %v848 = vmul.f32 %v809, %v818
        %v849 = vmul.f32 %v810, %v818
        %v850 = vmul.f32 %v811, %v818
        %v851 = vmul.f32 %v812, %v818
        %v852 = vld [vmem:[%s2] sm:$0x1]
        %v854 = vlaneseq
        %v855 = vshrl.u32 %v854, 7
        %v856 = vsub.s32 0, %v855
        %v857 = vrot.slane %v852, %v856
        %v859 = vadd.f32 %v820, %v857
        %v860 = vadd.f32 %v821, %v857
        %v861 = vadd.f32 %v822, %v857
        %v862 = vadd.f32 %v823, %v857
        %v863 = vadd.f32 %v824, %v857
        %v864 = vadd.f32 %v825, %v857
        %v865 = vadd.f32 %v826, %v857
        %v866 = vadd.f32 %v827, %v857
        %v867 = vadd.f32 %v828, %v857
        %v868 = vadd.f32 %v829, %v857
        %v869 = vadd.f32 %v830, %v857
        %v870 = vadd.f32 %v831, %v857
        %v871 = vadd.f32 %v832, %v857
        %v872 = vadd.f32 %v833, %v857
        %v873 = vadd.f32 %v834, %v857
        %v874 = vadd.f32 %v835, %v857
        %v875 = vadd.f32 %v836, %v857
        %v876 = vadd.f32 %v837, %v857
        %v877 = vadd.f32 %v838, %v857
        %v878 = vadd.f32 %v839, %v857
        %v879 = vadd.f32 %v840, %v857
        %v880 = vadd.f32 %v841, %v857
        %v881 = vadd.f32 %v842, %v857
        %v882 = vadd.f32 %v843, %v857
        %v883 = vadd.f32 %v844, %v857
        %v884 = vadd.f32 %v845, %v857
        %v885 = vadd.f32 %v846, %v857
        %v886 = vadd.f32 %v847, %v857
        %v887 = vadd.f32 %v848, %v857
        %v888 = vadd.f32 %v849, %v857
        %v889 = vadd.f32 %v850, %v857
        %v890 = vadd.f32 %v851, %v857
        %v891 = vmax.f32 %v859, 0.0
        %v892 = vmax.f32 %v860, 0.0
        %v893 = vmax.f32 %v861, 0.0
        %v894 = vmax.f32 %v862, 0.0
        %v895 = vmax.f32 %v863, 0.0
        %v896 = vmax.f32 %v864, 0.0
        %v897 = vmax.f32 %v865, 0.0
        %v898 = vmax.f32 %v866, 0.0
        %v899 = vmax.f32 %v867, 0.0
        %v900 = vmax.f32 %v868, 0.0
        %v901 = vmax.f32 %v869, 0.0
        %v902 = vmax.f32 %v870, 0.0
        %v903 = vmax.f32 %v871, 0.0
        %v904 = vmax.f32 %v872, 0.0
        %v905 = vmax.f32 %v873, 0.0
        %v906 = vmax.f32 %v874, 0.0
        %v907 = vmax.f32 %v875, 0.0
        %v908 = vmax.f32 %v876, 0.0
        %v909 = vmax.f32 %v877, 0.0
        %v910 = vmax.f32 %v878, 0.0
        %v911 = vmax.f32 %v879, 0.0
        %v912 = vmax.f32 %v880, 0.0
        %v913 = vmax.f32 %v881, 0.0
        %v914 = vmax.f32 %v882, 0.0
        %v915 = vmax.f32 %v883, 0.0
        %v916 = vmax.f32 %v884, 0.0
        %v917 = vmax.f32 %v885, 0.0
        %v918 = vmax.f32 %v886, 0.0
        %v919 = vmax.f32 %v887, 0.0
        %v920 = vmax.f32 %v888, 0.0
        %v921 = vmax.f32 %v889, 0.0
        %v922 = vmax.f32 %v890, 0.0
        %v923 = vpack.c.bf16 %v892, %v891
        %v924 = vpack.c.bf16 %v894, %v893
        %v925 = vpack.c.bf16 %v896, %v895
        %v926 = vpack.c.bf16 %v898, %v897
        %v927 = vpack.c.bf16 %v900, %v899
        %v928 = vpack.c.bf16 %v902, %v901
        %v929 = vpack.c.bf16 %v904, %v903
        %v930 = vpack.c.bf16 %v906, %v905
        %v931 = vpack.c.bf16 %v908, %v907
        %v932 = vpack.c.bf16 %v910, %v909
        %v933 = vpack.c.bf16 %v912, %v911
        %v934 = vpack.c.bf16 %v914, %v913
        %v935 = vpack.c.bf16 %v916, %v915
        %v936 = vpack.c.bf16 %v918, %v917
        %v937 = vpack.c.bf16 %v920, %v919
        %v938 = vpack.c.bf16 %v922, %v921
        %v940 = vshrl.u32 %v923, 16
        %v942 = vrot.slane %v940, 7
        %v943 = vshll.u32 %v923, 16
        %v945 = vor.u32 %v942, %v943
        %v947 = vshrl.u32 %v924, 16
        %v949 = vrot.slane %v947, 7
        %v950 = vshll.u32 %v924, 16
        %v952 = vor.u32 %v949, %v950
        %v954 = vshrl.u32 %v925, 16
        %v956 = vrot.slane %v954, 7
        %v957 = vshll.u32 %v925, 16
        %v959 = vor.u32 %v956, %v957
        %v961 = vshrl.u32 %v926, 16
        %v963 = vrot.slane %v961, 7
        %v964 = vshll.u32 %v926, 16
        %v966 = vor.u32 %v963, %v964
        %v968 = vshrl.u32 %v927, 16
        %v970 = vrot.slane %v968, 7
        %v971 = vshll.u32 %v927, 16
        %v973 = vor.u32 %v970, %v971
        %v975 = vshrl.u32 %v928, 16
        %v977 = vrot.slane %v975, 7
        %v978 = vshll.u32 %v928, 16
        %v980 = vor.u32 %v977, %v978
        %v982 = vshrl.u32 %v929, 16
        %v984 = vrot.slane %v982, 7
        %v985 = vshll.u32 %v929, 16
        %v987 = vor.u32 %v984, %v985
        %v989 = vshrl.u32 %v930, 16
        %v991 = vrot.slane %v989, 7
        %v992 = vshll.u32 %v930, 16
        %v994 = vor.u32 %v991, %v992
        %v996 = vshrl.u32 %v931, 16
        %v998 = vrot.slane %v996, 7
        %v999 = vshll.u32 %v931, 16
        %v1001 = vor.u32 %v998, %v999
        %v1003 = vshrl.u32 %v932, 16
        %v1005 = vrot.slane %v1003, 7
        %v1006 = vshll.u32 %v932, 16
        %v1008 = vor.u32 %v1005, %v1006
        %v1010 = vshrl.u32 %v933, 16
        %v1012 = vrot.slane %v1010, 7
        %v1013 = vshll.u32 %v933, 16
        %v1015 = vor.u32 %v1012, %v1013
        %v1017 = vshrl.u32 %v934, 16
        %v1019 = vrot.slane %v1017, 7
        %v1020 = vshll.u32 %v934, 16
        %v1022 = vor.u32 %v1019, %v1020
        %v1024 = vshrl.u32 %v935, 16
        %v1026 = vrot.slane %v1024, 7
        %v1027 = vshll.u32 %v935, 16
        %v1029 = vor.u32 %v1026, %v1027
        %v1031 = vshrl.u32 %v936, 16
        %v1033 = vrot.slane %v1031, 7
        %v1034 = vshll.u32 %v936, 16
        %v1036 = vor.u32 %v1033, %v1034
        %v1038 = vshrl.u32 %v937, 16
        %v1040 = vrot.slane %v1038, 7
        %v1041 = vshll.u32 %v937, 16
        %v1043 = vor.u32 %v1040, %v1041
        %v1045 = vshrl.u32 %v938, 16
        %v1047 = vrot.slane %v1045, 7
        %v1048 = vshll.u32 %v938, 16
        %v1050 = vor.u32 %v1047, %v1048
        %vm1083 = vcmask 1040384
        %vm1084 = vsmask.f32 256
        %vm1085 = vmand %vm1083, %vm1084
        %v1086 = vsel %vm1085, 0, %v945
        %v1087 = vsel %vm1085, 0, %v952
        %v1088 = vsel %vm1085, 0, %v959
        %v1089 = vsel %vm1085, 0, %v966
        %v1090 = vsel %vm1085, 0, %v973
        %v1091 = vsel %vm1085, 0, %v980
        %v1092 = vsel %vm1085, 0, %v987
        %v1093 = vsel %vm1085, 0, %v994
        %v1094 = vsel %vm1085, 0, %v1001
        %v1095 = vsel %vm1085, 0, %v1008
        %v1096 = vsel %vm1085, 0, %v1015
        %v1097 = vsel %vm1085, 0, %v1022
        %v1098 = vsel %vm1085, 0, %v1029
        %v1099 = vsel %vm1085, 0, %v1036
        %v1100 = vsel %vm1085, 0, %v1043
        %v1101 = vsel %vm1085, 0, %v1050
        %v1102 = vsel %vm1085, %v942, 0
        %v1103 = vsel %vm1085, %v949, 0
        %v1104 = vsel %vm1085, %v956, 0
        %v1105 = vsel %vm1085, %v963, 0
        %v1106 = vsel %vm1085, %v970, 0
        %v1107 = vsel %vm1085, %v977, 0
        %v1108 = vsel %vm1085, %v984, 0
        %v1109 = vsel %vm1085, %v991, 0
        %v1110 = vsel %vm1085, %v998, 0
        %v1111 = vsel %vm1085, %v1005, 0
        %v1112 = vsel %vm1085, %v1012, 0
        %v1113 = vsel %vm1085, %v1019, 0
        %v1114 = vsel %vm1085, %v1026, 0
        %v1115 = vsel %vm1085, %v1033, 0
        %v1116 = vsel %vm1085, %v1040, 0
        %v1117 = vsel %vm1085, %v1047, 0
        %vm1118 = vsmask.f32 7424
        %v1120 = vshrl.u32 0, 16
        %v1122 = vshll.u32 0, 16
        %v1124 = vrot.slane %v1122, 1
        %v1125 = vor.u32 %v1120, %v1124
        %v1126 = vsel %vm1118, %v1125, %v1124
        %v1128 = vshrl.u32 %v1086, 16
        %v1130 = vshll.u32 %v1086, 16
        %v1132 = vrot.slane %v1130, 1
        %v1133 = vor.u32 %v1128, %v1132
        %v1135 = vshll.u32 %v1102, 16
        %v1137 = vrot.slane %v1135, 1
        %v1138 = vsel %vm1118, %v1133, %v1137
        %v1140 = vshrl.u32 %v1087, 16
        %v1142 = vshll.u32 %v1087, 16
        %v1144 = vrot.slane %v1142, 1
        %v1145 = vor.u32 %v1140, %v1144
        %v1147 = vshll.u32 %v1103, 16
        %v1149 = vrot.slane %v1147, 1
        %v1150 = vsel %vm1118, %v1145, %v1149
        %v1152 = vshrl.u32 %v1088, 16
        %v1154 = vshll.u32 %v1088, 16
        %v1156 = vrot.slane %v1154, 1
        %v1157 = vor.u32 %v1152, %v1156
        %v1159 = vshll.u32 %v1104, 16
        %v1161 = vrot.slane %v1159, 1
        %v1162 = vsel %vm1118, %v1157, %v1161
        %v1164 = vshrl.u32 %v1089, 16
        %v1166 = vshll.u32 %v1089, 16
        %v1168 = vrot.slane %v1166, 1
        %v1169 = vor.u32 %v1164, %v1168
        %v1171 = vshll.u32 %v1105, 16
        %v1173 = vrot.slane %v1171, 1
        %v1174 = vsel %vm1118, %v1169, %v1173
        %v1176 = vshrl.u32 %v1090, 16
        %v1178 = vshll.u32 %v1090, 16
        %v1180 = vrot.slane %v1178, 1
        %v1181 = vor.u32 %v1176, %v1180
        %v1183 = vshll.u32 %v1106, 16
        %v1185 = vrot.slane %v1183, 1
        %v1186 = vsel %vm1118, %v1181, %v1185
        %v1188 = vshrl.u32 %v1091, 16
        %v1190 = vshll.u32 %v1091, 16
        %v1192 = vrot.slane %v1190, 1
        %v1193 = vor.u32 %v1188, %v1192
        %v1195 = vshll.u32 %v1107, 16
        %v1197 = vrot.slane %v1195, 1
        %v1198 = vsel %vm1118, %v1193, %v1197
        %v1200 = vshrl.u32 %v1092, 16
        %v1202 = vshll.u32 %v1092, 16
        %v1204 = vrot.slane %v1202, 1
        %v1205 = vor.u32 %v1200, %v1204
        %v1207 = vshll.u32 %v1108, 16
        %v1209 = vrot.slane %v1207, 1
        %v1210 = vsel %vm1118, %v1205, %v1209
        %v1212 = vshrl.u32 %v1093, 16
        %v1214 = vshll.u32 %v1093, 16
        %v1216 = vrot.slane %v1214, 1
        %v1217 = vor.u32 %v1212, %v1216
        %v1219 = vshll.u32 %v1109, 16
        %v1221 = vrot.slane %v1219, 1
        %v1222 = vsel %vm1118, %v1217, %v1221
        %v1224 = vshrl.u32 %v1094, 16
        %v1226 = vshll.u32 %v1094, 16
        %v1228 = vrot.slane %v1226, 1
        %v1229 = vor.u32 %v1224, %v1228
        %v1231 = vshll.u32 %v1110, 16
        %v1233 = vrot.slane %v1231, 1
        %v1234 = vsel %vm1118, %v1229, %v1233
        %v1236 = vshrl.u32 %v1095, 16
        %v1238 = vshll.u32 %v1095, 16
        %v1240 = vrot.slane %v1238, 1
        %v1241 = vor.u32 %v1236, %v1240
        %v1243 = vshll.u32 %v1111, 16
        %v1245 = vrot.slane %v1243, 1
        %v1246 = vsel %vm1118, %v1241, %v1245
        %v1248 = vshrl.u32 %v1096, 16
        %v1250 = vshll.u32 %v1096, 16
        %v1252 = vrot.slane %v1250, 1
        %v1253 = vor.u32 %v1248, %v1252
        %v1255 = vshll.u32 %v1112, 16
        %v1257 = vrot.slane %v1255, 1
        %v1258 = vsel %vm1118, %v1253, %v1257
        %v1260 = vshrl.u32 %v1097, 16
        %v1262 = vshll.u32 %v1097, 16
        %v1264 = vrot.slane %v1262, 1
        %v1265 = vor.u32 %v1260, %v1264
        %v1267 = vshll.u32 %v1113, 16
        %v1269 = vrot.slane %v1267, 1
        %v1270 = vsel %vm1118, %v1265, %v1269
        %v1272 = vshrl.u32 %v1098, 16
        %v1274 = vshll.u32 %v1098, 16
        %v1276 = vrot.slane %v1274, 1
        %v1277 = vor.u32 %v1272, %v1276
        %v1279 = vshll.u32 %v1114, 16
        %v1281 = vrot.slane %v1279, 1
        %v1282 = vsel %vm1118, %v1277, %v1281
        %v1284 = vshrl.u32 %v1099, 16
        %v1286 = vshll.u32 %v1099, 16
        %v1288 = vrot.slane %v1286, 1
        %v1289 = vor.u32 %v1284, %v1288
        %v1291 = vshll.u32 %v1115, 16
        %v1293 = vrot.slane %v1291, 1
        %v1294 = vsel %vm1118, %v1289, %v1293
        %v1296 = vshrl.u32 %v1100, 16
        %v1298 = vshll.u32 %v1100, 16
        %v1300 = vrot.slane %v1298, 1
        %v1301 = vor.u32 %v1296, %v1300
        %v1303 = vshll.u32 %v1116, 16
        %v1305 = vrot.slane %v1303, 1
        %v1306 = vsel %vm1118, %v1301, %v1305
        %v1308 = vshrl.u32 %v1101, 16
        %v1310 = vshll.u32 %v1101, 16
        %v1312 = vrot.slane %v1310, 1
        %v1313 = vor.u32 %v1308, %v1312
        %v1315 = vshll.u32 %v1117, 16
        %v1317 = vrot.slane %v1315, 1
        %v1318 = vsel %vm1118, %v1313, %v1317
        %vm1369 = vcmask 1046528
        %v1370 = vrot.slane 0, 1
        %v1371 = vsel %vm1369, %v1370, %v1370
        %v1372 = vrot.slane %v1086, 1
        %v1373 = vrot.slane %v1102, 1
        %v1374 = vsel %vm1369, %v1372, %v1373
        %v1375 = vrot.slane %v1087, 1
        %v1376 = vrot.slane %v1103, 1
        %v1377 = vsel %vm1369, %v1375, %v1376
        %v1378 = vrot.slane %v1088, 1
        %v1379 = vrot.slane %v1104, 1
        %v1380 = vsel %vm1369, %v1378, %v1379
        %v1381 = vrot.slane %v1089, 1
        %v1382 = vrot.slane %v1105, 1
        %v1383 = vsel %vm1369, %v1381, %v1382
        %v1384 = vrot.slane %v1090, 1
        %v1385 = vrot.slane %v1106, 1
        %v1386 = vsel %vm1369, %v1384, %v1385
        %v1387 = vrot.slane %v1091, 1
        %v1388 = vrot.slane %v1107, 1
        %v1389 = vsel %vm1369, %v1387, %v1388
        %v1390 = vrot.slane %v1092, 1
        %v1391 = vrot.slane %v1108, 1
        %v1392 = vsel %vm1369, %v1390, %v1391
        %v1393 = vrot.slane %v1093, 1
        %v1394 = vrot.slane %v1109, 1
        %v1395 = vsel %vm1369, %v1393, %v1394
        %v1396 = vrot.slane %v1094, 1
        %v1397 = vrot.slane %v1110, 1
        %v1398 = vsel %vm1369, %v1396, %v1397
        %v1399 = vrot.slane %v1095, 1
        %v1400 = vrot.slane %v1111, 1
        %v1401 = vsel %vm1369, %v1399, %v1400
        %v1402 = vrot.slane %v1096, 1
        %v1403 = vrot.slane %v1112, 1
        %v1404 = vsel %vm1369, %v1402, %v1403
        %v1405 = vrot.slane %v1097, 1
        %v1406 = vrot.slane %v1113, 1
        %v1407 = vsel %vm1369, %v1405, %v1406
        %v1408 = vrot.slane %v1098, 1
        %v1409 = vrot.slane %v1114, 1
        %v1410 = vsel %vm1369, %v1408, %v1409
        %v1411 = vrot.slane %v1099, 1
        %v1412 = vrot.slane %v1115, 1
        %v1413 = vsel %vm1369, %v1411, %v1412
        %v1414 = vrot.slane %v1100, 1
        %v1415 = vrot.slane %v1116, 1
        %v1416 = vsel %vm1369, %v1414, %v1415
        %v1417 = vrot.slane %v1101, 1
        %v1418 = vrot.slane %v1117, 1
        %v1419 = vsel %vm1369, %v1417, %v1418
        %v1437 = vld [vmem:[#allocation5] sm:$0xf]
        %v1438 = vld [vmem:[#allocation5 + $0x4] sm:$0xf]
        %v1439 = vld [vmem:[#allocation5 + $0x8] sm:$0xf]
        %v1440 = vld [vmem:[#allocation5 + $0xc] sm:$0xf]
        %v1441 = vld [vmem:[#allocation5 + $0x10] sm:$0xf]
        %v1442 = vld [vmem:[#allocation5 + $0x14] sm:$0xf]
        %v1443 = vld [vmem:[#allocation5 + $0x18] sm:$0xf]
        %v1444 = vld [vmem:[#allocation5 + $0x1c] sm:$0xf]
        %v1445 = vld [vmem:[#allocation5 + $0x20] sm:$0xf]
        %v1446 = vld [vmem:[#allocation5 + $0x24] sm:$0xf]
        %v1447 = vld [vmem:[#allocation5 + $0x28] sm:$0xf]
        %v1448 = vld [vmem:[#allocation5 + $0x2c] sm:$0xf]
        %v1449 = vld [vmem:[#allocation5 + $0x30] sm:$0xf]
        %v1450 = vld [vmem:[#allocation5 + $0x34] sm:$0xf]
        %v1451 = vld [vmem:[#allocation5 + $0x38] sm:$0xf]
        %v1452 = vld [vmem:[#allocation5 + $0x3c] sm:$0xf]
        %v1453 = vld [vmem:[#allocation5 + $0x40] sm:$0xf]
        %v1454 = vld [vmem:[#allocation5 + $0x44] sm:$0xf]
        %v1455 = vld [vmem:[#allocation5 + $0x48] sm:$0xf]
        %v1456 = vld [vmem:[#allocation5 + $0x4c] sm:$0xf]
        %v1457 = vld [vmem:[#allocation5 + $0x50] sm:$0xf]
        %v1458 = vld [vmem:[#allocation5 + $0x54] sm:$0xf]
        %v1459 = vld [vmem:[#allocation5 + $0x58] sm:$0xf]
        %v1460 = vld [vmem:[#allocation5 + $0x5c] sm:$0xf]
        %v1461 = vld [vmem:[#allocation5 + $0x60] sm:$0xf]
        %v1462 = vld [vmem:[#allocation5 + $0x64] sm:$0xf]
        %v1463 = vld [vmem:[#allocation5 + $0x68] sm:$0xf]
        %v1464 = vld [vmem:[#allocation5 + $0x6c] sm:$0xf]
        %v1465 = vld [vmem:[#allocation5 + $0x70] sm:$0xf]
        %v1466 = vld [vmem:[#allocation5 + $0x74] sm:$0xf]
        %v1467 = vld [vmem:[#allocation5 + $0x78] sm:$0xf]
        %v1468 = vld [vmem:[#allocation5 + $0x7c] sm:$0xf]
        %v1469 = vld [vmem:[#allocation5 + $0x80] sm:$0xf]
        %v1470 = vld [vmem:[#allocation5 + $0x84] sm:$0xf]
        %v1471 = vld [vmem:[#allocation5 + $0x88] sm:$0xf]
        %v1472 = vld [vmem:[#allocation5 + $0x8c] sm:$0xf]
        %v1473 = vld [vmem:[#allocation5 + $0x90] sm:$0xf]
        %v1474 = vld [vmem:[#allocation5 + $0x94] sm:$0xf]
        %v1475 = vld [vmem:[#allocation5 + $0x98] sm:$0xf]
        %v1476 = vld [vmem:[#allocation5 + $0x9c] sm:$0xf]
        %v1477 = vld [vmem:[#allocation5 + $0xa0] sm:$0xf]
        %v1478 = vld [vmem:[#allocation5 + $0xa4] sm:$0xf]
        %v1479 = vld [vmem:[#allocation5 + $0xa8] sm:$0xf]
        %v1480 = vld [vmem:[#allocation5 + $0xac] sm:$0xf]
        %v1481 = vld [vmem:[#allocation5 + $0xb0] sm:$0xf]
        %v1482 = vld [vmem:[#allocation5 + $0xb4] sm:$0xf]
        %v1483 = vld [vmem:[#allocation5 + $0xb8] sm:$0xf]
        %v1484 = vld [vmem:[#allocation5 + $0xbc] sm:$0xf]
        %s1485 = scalar_lea.vmem [#allocation5], 192
        %v1486 = vld [vmem:[%s1485] sm:$0xf]
        %v1487 = vld [vmem:[%s1485 + $0x4] sm:$0xf]
        %v1488 = vld [vmem:[%s1485 + $0x8] sm:$0xf]
        %v1489 = vld [vmem:[%s1485 + $0xc] sm:$0xf]
        %v1490 = vld [vmem:[%s1485 + $0x10] sm:$0xf]
        %v1491 = vld [vmem:[%s1485 + $0x14] sm:$0xf]
        %v1492 = vld [vmem:[%s1485 + $0x18] sm:$0xf]
        %v1493 = vld [vmem:[%s1485 + $0x1c] sm:$0xf]
        %v1494 = vld [vmem:[%s1485 + $0x20] sm:$0xf]
        %v1495 = vld [vmem:[%s1485 + $0x24] sm:$0xf]
        %v1496 = vld [vmem:[%s1485 + $0x28] sm:$0xf]
        %v1497 = vld [vmem:[%s1485 + $0x2c] sm:$0xf]
        %v1498 = vld [vmem:[%s1485 + $0x30] sm:$0xf]
        %v1499 = vld [vmem:[%s1485 + $0x34] sm:$0xf]
        %v1500 = vld [vmem:[%s1485 + $0x38] sm:$0xf]
        %v1501 = vld [vmem:[%s1485 + $0x3c] sm:$0xf]
        %v1502 = vld [vmem:[%s1485 + $0x40] sm:$0xf]
        %v1503 = vld [vmem:[%s1485 + $0x44] sm:$0xf]
        %v1504 = vld [vmem:[%s1485 + $0x48] sm:$0xf]
        %v1505 = vld [vmem:[%s1485 + $0x4c] sm:$0xf]
        %v1506 = vld [vmem:[%s1485 + $0x50] sm:$0xf]
        %v1507 = vld [vmem:[%s1485 + $0x54] sm:$0xf]
        %v1508 = vld [vmem:[%s1485 + $0x58] sm:$0xf]
        %v1509 = vld [vmem:[%s1485 + $0x5c] sm:$0xf]
        %v1510 = vld [vmem:[%s1485 + $0x60] sm:$0xf]
        %v1511 = vld [vmem:[%s1485 + $0x64] sm:$0xf]
        %v1512 = vld [vmem:[%s1485 + $0x68] sm:$0xf]
        %v1513 = vld [vmem:[%s1485 + $0x6c] sm:$0xf]
        %v1514 = vld [vmem:[%s1485 + $0x70] sm:$0xf]
        %v1515 = vld [vmem:[%s1485 + $0x74] sm:$0xf]
        %v1516 = vld [vmem:[%s1485 + $0x78] sm:$0xf]
        %v1517 = vld [vmem:[%s1485 + $0x7c] sm:$0xf]
        %v1518 = vld [vmem:[%s1485 + $0x80] sm:$0xf]
        %v1519 = vld [vmem:[%s1485 + $0x84] sm:$0xf]
        %v1520 = vld [vmem:[%s1485 + $0x88] sm:$0xf]
        %v1521 = vld [vmem:[%s1485 + $0x8c] sm:$0xf]
        %v1522 = vld [vmem:[%s1485 + $0x90] sm:$0xf]
        %v1523 = vld [vmem:[%s1485 + $0x94] sm:$0xf]
        %v1524 = vld [vmem:[%s1485 + $0x98] sm:$0xf]
        %v1525 = vld [vmem:[%s1485 + $0x9c] sm:$0xf]
        %v1526 = vld [vmem:[%s1485 + $0xa0] sm:$0xf]
        %v1527 = vld [vmem:[%s1485 + $0xa4] sm:$0xf]
        %v1528 = vld [vmem:[%s1485 + $0xa8] sm:$0xf]
        %v1529 = vld [vmem:[%s1485 + $0xac] sm:$0xf]
        %v1530 = vld [vmem:[%s1485 + $0xb0] sm:$0xf]
        %v1531 = vld [vmem:[%s1485 + $0xb4] sm:$0xf]
        %v1532 = vld [vmem:[%s1485 + $0xb8] sm:$0xf]
        %v1533 = vld [vmem:[%s1485 + $0xbc] sm:$0xf]
        %v1582 = vunpack.c.l.b16 %v1486
        %v1583 = vunpack.c.l.b16 %v1487
        %v1584 = vunpack.c.l.b16 %v1488
        %v1585 = vunpack.c.l.b16 %v1489
        %v1586 = vunpack.c.l.b16 %v1490
        %v1587 = vunpack.c.l.b16 %v1491
        %v1588 = vunpack.c.l.b16 %v1492
        %v1589 = vunpack.c.l.b16 %v1493
        %v1590 = vunpack.c.l.b16 %v1494
        %v1591 = vunpack.c.l.b16 %v1495
        %v1592 = vunpack.c.l.b16 %v1496
        %v1593 = vunpack.c.l.b16 %v1497
        %v1594 = vunpack.c.l.b16 %v1498
        %v1595 = vunpack.c.l.b16 %v1499
        %v1596 = vunpack.c.l.b16 %v1500
        %v1597 = vunpack.c.l.b16 %v1501
        %v1598 = vunpack.c.l.b16 %v1502
        %v1599 = vunpack.c.l.b16 %v1503
        %v1600 = vunpack.c.l.b16 %v1504
        %v1601 = vunpack.c.l.b16 %v1505
        %v1602 = vunpack.c.l.b16 %v1506
        %v1603 = vunpack.c.l.b16 %v1507
        %v1604 = vunpack.c.l.b16 %v1508
        %v1605 = vunpack.c.l.b16 %v1509
        %v1606 = vunpack.c.l.b16 %v1510
        %v1607 = vunpack.c.l.b16 %v1511
        %v1608 = vunpack.c.l.b16 %v1512
        %v1609 = vunpack.c.l.b16 %v1513
        %v1610 = vunpack.c.l.b16 %v1514
        %v1611 = vunpack.c.l.b16 %v1515
        %v1612 = vunpack.c.l.b16 %v1516
        %v1613 = vunpack.c.l.b16 %v1517
        %v1614 = vunpack.c.l.b16 %v1518
        %v1615 = vunpack.c.l.b16 %v1519
        %v1616 = vunpack.c.l.b16 %v1520
        %v1617 = vunpack.c.l.b16 %v1521
        %v1618 = vunpack.c.l.b16 %v1522
        %v1619 = vunpack.c.l.b16 %v1523
        %v1620 = vunpack.c.l.b16 %v1524
        %v1621 = vunpack.c.l.b16 %v1525
        %v1622 = vunpack.c.l.b16 %v1526
        %v1623 = vunpack.c.l.b16 %v1527
        %v1624 = vunpack.c.l.b16 %v1528
        %v1625 = vunpack.c.l.b16 %v1529
        %v1626 = vunpack.c.l.b16 %v1530
        %v1627 = vunpack.c.l.b16 %v1531
        %v1628 = vunpack.c.l.b16 %v1532
        %v1629 = vunpack.c.l.b16 %v1533
        %v1630 = vpack.c.b16 %v1583, %v1582
        %v1631 = vpack.c.b16 %v1585, %v1584
        %v1632 = vpack.c.b16 %v1587, %v1586
        %v1633 = vpack.c.b16 %v1589, %v1588
        %v1634 = vpack.c.b16 %v1591, %v1590
        %v1635 = vpack.c.b16 %v1593, %v1592
        %v1636 = vpack.c.b16 %v1595, %v1594
        %v1637 = vpack.c.b16 %v1597, %v1596
        %v1638 = vpack.c.b16 %v1599, %v1598
        %v1639 = vpack.c.b16 %v1601, %v1600
        %v1640 = vpack.c.b16 %v1603, %v1602
        %v1641 = vpack.c.b16 %v1605, %v1604
        %v1642 = vpack.c.b16 %v1607, %v1606
        %v1643 = vpack.c.b16 %v1609, %v1608
        %v1644 = vpack.c.b16 %v1611, %v1610
        %v1645 = vpack.c.b16 %v1613, %v1612
        %v1646 = vpack.c.b16 %v1615, %v1614
        %v1647 = vpack.c.b16 %v1617, %v1616
        %v1648 = vpack.c.b16 %v1619, %v1618
        %v1649 = vpack.c.b16 %v1621, %v1620
        %v1650 = vpack.c.b16 %v1623, %v1622
        %v1651 = vpack.c.b16 %v1625, %v1624
        %v1652 = vpack.c.b16 %v1627, %v1626
        %v1653 = vpack.c.b16 %v1629, %v1628
        %1678 = vmatprep.subr.bf16.mxu0 0
        %1679 = vmatpush1.bf16.msra.mxu0 %v1637
        %1680 = vmatprep.subr.bf16.mxu0 0
        %1681 = vmatpush1.bf16.msra.mxu0 %v1636
        %1682 = vmatprep.subr.bf16.mxu0 0
        %1683 = vmatpush1.bf16.msra.mxu0 %v1635
        %1684 = vmatprep.subr.bf16.mxu0 0
        %1685 = vmatpush1.bf16.msra.mxu0 %v1634
        %1686 = vmatprep.subr.bf16.mxu0 0
        %1687 = vmatpush1.bf16.msra.mxu0 %v1633
        %1688 = vmatprep.subr.bf16.mxu0 0
        %1689 = vmatpush1.bf16.msra.mxu0 %v1632
        %1690 = vmatprep.subr.bf16.mxu0 0
        %1691 = vmatpush1.bf16.msra.mxu0 %v1631
        %1692 = vmatprep.subr.bf16.mxu0 0
        %1693 = vmatpush1.bf16.msra.mxu0 %v1630
        %1694 = vmatprep.subr.bf16.mxu0 0
        %1695 = vmatpush2.bf16.msra.mxu0 %v1645
        %1696 = vmatprep.subr.bf16.mxu0 0
        %1697 = vmatpush2.bf16.msra.mxu0 %v1644
        %1698 = vmatprep.subr.bf16.mxu0 0
        %1699 = vmatpush2.bf16.msra.mxu0 %v1643
        %1700 = vmatprep.subr.bf16.mxu0 0
        %1701 = vmatpush2.bf16.msra.mxu0 %v1642
        %1702 = vmatprep.subr.bf16.mxu0 0
        %1703 = vmatpush2.bf16.msra.mxu0 %v1641
        %1704 = vmatprep.subr.bf16.mxu0 0
        %1705 = vmatpush2.bf16.msra.mxu0 %v1640
        %1706 = vmatprep.subr.bf16.mxu0 0
        %1707 = vmatpush2.bf16.msra.mxu0 %v1639
        %1708 = vmatprep.subr.bf16.mxu0 0
        %1709 = vmatpush2.bf16.msra.mxu0 %v1638
        %1710 = vmatprep.mubr.bf16.mxu0 %v1138
        %1711 = vmatmul.mubr.bf16.gmra.mxu0 %v1086
        %v1712 = vpop.f32.mrf.mxu0
        %v1713 = vadd.f32 0.0, %v1712
        %v1714 = vpop.f32.mrf.mxu0
        %v1715 = vpop.f32.mrf.mxu0
        %v1716 = vadd.f32 0.0, %v1715
        %v1717 = vpop.f32.mrf.mxu0
        %1718 = vmatprep.mubr.bf16.mxu0 %v1150
        %1719 = vmatmul.mubr.bf16.gmra.mxu0 %v1087
        %v1720 = vpop.f32.mrf.mxu0
        %v1721 = vadd.f32 0.0, %v1720
        %v1722 = vpop.f32.mrf.mxu0
        %v1723 = vpop.f32.mrf.mxu0
        %v1724 = vadd.f32 0.0, %v1723
        %v1725 = vpop.f32.mrf.mxu0
        %1726 = vmatprep.mubr.bf16.mxu0 %v1162
        %1727 = vmatmul.mubr.bf16.gmra.mxu0 %v1088
        %v1728 = vpop.f32.mrf.mxu0
        %v1729 = vadd.f32 0.0, %v1728
        %v1730 = vpop.f32.mrf.mxu0
        %v1731 = vpop.f32.mrf.mxu0
        %v1732 = vadd.f32 0.0, %v1731
        %v1733 = vpop.f32.mrf.mxu0
        %1734 = vmatprep.mubr.bf16.mxu0 %v1174
        %1735 = vmatmul.mubr.bf16.gmra.mxu0 %v1089
        %v1736 = vpop.f32.mrf.mxu0
        %v1737 = vadd.f32 0.0, %v1736
        %v1738 = vpop.f32.mrf.mxu0
        %v1739 = vpop.f32.mrf.mxu0
        %v1740 = vadd.f32 0.0, %v1739
        %v1741 = vpop.f32.mrf.mxu0
        %1742 = vmatprep.mubr.bf16.mxu0 %v1186
        %1743 = vmatmul.mubr.bf16.gmra.mxu0 %v1090
        %v1744 = vpop.f32.mrf.mxu0
        %v1745 = vadd.f32 0.0, %v1744
        %v1746 = vpop.f32.mrf.mxu0
        %v1747 = vpop.f32.mrf.mxu0
        %v1748 = vadd.f32 0.0, %v1747
        %v1749 = vpop.f32.mrf.mxu0
        %1750 = vmatprep.mubr.bf16.mxu0 %v1198
        %1751 = vmatmul.mubr.bf16.gmra.mxu0 %v1091
        %v1752 = vpop.f32.mrf.mxu0
        %v1753 = vadd.f32 0.0, %v1752
        %v1754 = vpop.f32.mrf.mxu0
        %v1755 = vpop.f32.mrf.mxu0
        %v1756 = vadd.f32 0.0, %v1755
        %v1757 = vpop.f32.mrf.mxu0
        %1758 = vmatprep.mubr.bf16.mxu0 %v1210
        %1759 = vmatmul.mubr.bf16.gmra.mxu0 %v1092
        %v1760 = vpop.f32.mrf.mxu0
        %v1761 = vadd.f32 0.0, %v1760
        %v1762 = vpop.f32.mrf.mxu0
        %v1763 = vpop.f32.mrf.mxu0
        %v1764 = vadd.f32 0.0, %v1763
        %v1765 = vpop.f32.mrf.mxu0
        %1766 = vmatprep.mubr.bf16.mxu0 %v1222
        %1767 = vmatmul.mubr.bf16.gmra.mxu0 %v1093
        %v1768 = vpop.f32.mrf.mxu0
        %v1769 = vadd.f32 0.0, %v1768
        %v1770 = vpop.f32.mrf.mxu0
        %v1771 = vpop.f32.mrf.mxu0
        %v1772 = vadd.f32 0.0, %v1771
        %v1773 = vpop.f32.mrf.mxu0
        %1774 = vmatprep.mubr.bf16.mxu0 %v1234
        %1775 = vmatmul.mubr.bf16.gmra.mxu0 %v1094
        %v1776 = vpop.f32.mrf.mxu0
        %v1777 = vadd.f32 0.0, %v1776
        %v1778 = vpop.f32.mrf.mxu0
        %v1779 = vpop.f32.mrf.mxu0
        %v1780 = vadd.f32 0.0, %v1779
        %v1781 = vpop.f32.mrf.mxu0
        %1782 = vmatprep.mubr.bf16.mxu0 %v1246
        %1783 = vmatmul.mubr.bf16.gmra.mxu0 %v1095
        %v1784 = vpop.f32.mrf.mxu0
        %v1785 = vadd.f32 0.0, %v1784
        %v1786 = vpop.f32.mrf.mxu0
        %v1787 = vpop.f32.mrf.mxu0
        %v1788 = vadd.f32 0.0, %v1787
        %v1789 = vpop.f32.mrf.mxu0
        %1790 = vmatprep.mubr.bf16.mxu0 %v1258
        %1791 = vmatmul.mubr.bf16.gmra.mxu0 %v1096
        %v1792 = vpop.f32.mrf.mxu0
        %v1793 = vadd.f32 0.0, %v1792
        %v1794 = vpop.f32.mrf.mxu0
        %v1795 = vpop.f32.mrf.mxu0
        %v1796 = vadd.f32 0.0, %v1795
        %v1797 = vpop.f32.mrf.mxu0
        %1798 = vmatprep.mubr.bf16.mxu0 %v1270
        %1799 = vmatmul.mubr.bf16.gmra.mxu0 %v1097
        %v1800 = vpop.f32.mrf.mxu0
        %v1801 = vadd.f32 0.0, %v1800
        %v1802 = vpop.f32.mrf.mxu0
        %v1803 = vpop.f32.mrf.mxu0
        %v1804 = vadd.f32 0.0, %v1803
        %v1805 = vpop.f32.mrf.mxu0
        %1806 = vmatprep.mubr.bf16.mxu0 %v1282
        %1807 = vmatmul.mubr.bf16.gmra.mxu0 %v1098
        %v1808 = vpop.f32.mrf.mxu0
        %v1809 = vadd.f32 0.0, %v1808
        %v1810 = vpop.f32.mrf.mxu0
        %v1811 = vpop.f32.mrf.mxu0
        %v1812 = vadd.f32 0.0, %v1811
        %v1813 = vpop.f32.mrf.mxu0
        %1814 = vmatprep.mubr.bf16.mxu0 %v1294
        %1815 = vmatmul.mubr.bf16.gmra.mxu0 %v1099
        %v1816 = vpop.f32.mrf.mxu0
        %v1817 = vadd.f32 0.0, %v1816
        %v1818 = vpop.f32.mrf.mxu0
        %v1819 = vpop.f32.mrf.mxu0
        %v1820 = vadd.f32 0.0, %v1819
        %v1821 = vpop.f32.mrf.mxu0
        %1822 = vmatprep.mubr.bf16.mxu0 %v1306
        %1823 = vmatmul.mubr.bf16.gmra.mxu0 %v1100
        %v1824 = vpop.f32.mrf.mxu0
        %v1825 = vadd.f32 0.0, %v1824
        %v1826 = vpop.f32.mrf.mxu0
        %v1827 = vpop.f32.mrf.mxu0
        %v1828 = vadd.f32 0.0, %v1827
        %v1829 = vpop.f32.mrf.mxu0
        %1830 = vmatprep.mubr.bf16.mxu0 %v1318
        %1831 = vmatmul.mubr.bf16.gmra.mxu0 %v1101
        %v1832 = vpop.f32.mrf.mxu0
        %v1833 = vadd.f32 0.0, %v1832
        %v1834 = vpop.f32.mrf.mxu0
        %v1835 = vpop.f32.mrf.mxu0
        %v1836 = vadd.f32 0.0, %v1835
        %v1837 = vpop.f32.mrf.mxu0
        %1838 = vdwg.mxu0
        %1839 = vmatprep.subr.bf16.mxu0 0
        %1840 = vmatpush1.bf16.msra.mxu0 %v1653
        %1841 = vmatprep.subr.bf16.mxu0 0
        %1842 = vmatpush1.bf16.msra.mxu0 %v1652
        %1843 = vmatprep.subr.bf16.mxu0 0
        %1844 = vmatpush1.bf16.msra.mxu0 %v1651
        %1845 = vmatprep.subr.bf16.mxu0 0
        %1846 = vmatpush1.bf16.msra.mxu0 %v1650
        %1847 = vmatprep.subr.bf16.mxu0 0
        %1848 = vmatpush1.bf16.msra.mxu0 %v1649
        %1849 = vmatprep.subr.bf16.mxu0 0
        %1850 = vmatpush1.bf16.msra.mxu0 %v1648
        %1851 = vmatprep.subr.bf16.mxu0 0
        %1852 = vmatpush1.bf16.msra.mxu0 %v1647
        %1853 = vmatprep.subr.bf16.mxu0 0
        %1854 = vmatpush1.bf16.msra.mxu0 %v1646
        %1855 = vmatprep.subr.bf16.mxu0 0
        %1856 = vmatpush2.bf16.msra.mxu0 0
        %1857 = vmatprep.subr.bf16.mxu0 0
        %1858 = vmatpush2.bf16.msra.mxu0 0
        %1859 = vmatprep.subr.bf16.mxu0 0
        %1860 = vmatpush2.bf16.msra.mxu0 0
        %1861 = vmatprep.subr.bf16.mxu0 0
        %1862 = vmatpush2.bf16.msra.mxu0 0
        %1863 = vmatprep.subr.bf16.mxu0 0
        %1864 = vmatpush2.bf16.msra.mxu0 0
        %1865 = vmatprep.subr.bf16.mxu0 0
        %1866 = vmatpush2.bf16.msra.mxu0 0
        %1867 = vmatprep.subr.bf16.mxu0 0
        %1868 = vmatpush2.bf16.msra.mxu0 0
        %1869 = vmatprep.subr.bf16.mxu0 0
        %1870 = vmatpush2.bf16.msra.mxu0 0
        %1871 = vmatprep.mubr.bf16.mxu0 0
        %1872 = vmatmul.mubr.bf16.gmra.mxu0 %v1374
        %v1873 = vpop.f32.mrf.mxu0
        %v1874 = vadd.f32 %v1713, %v1873
        %v1875 = vpop.f32.mrf.mxu0
        %v1876 = vpop.f32.mrf.mxu0
        %v1877 = vadd.f32 %v1716, %v1876
        %v1878 = vpop.f32.mrf.mxu0
        %1879 = vmatprep.mubr.bf16.mxu0 0
        %1880 = vmatmul.mubr.bf16.gmra.mxu0 %v1377
        %v1881 = vpop.f32.mrf.mxu0
        %v1882 = vadd.f32 %v1721, %v1881
        %v1883 = vpop.f32.mrf.mxu0
        %v1884 = vpop.f32.mrf.mxu0
        %v1885 = vadd.f32 %v1724, %v1884
        %v1886 = vpop.f32.mrf.mxu0
        %1887 = vmatprep.mubr.bf16.mxu0 0
        %1888 = vmatmul.mubr.bf16.gmra.mxu0 %v1380
        %v1889 = vpop.f32.mrf.mxu0
        %v1890 = vadd.f32 %v1729, %v1889
        %v1891 = vpop.f32.mrf.mxu0
        %v1892 = vpop.f32.mrf.mxu0
        %v1893 = vadd.f32 %v1732, %v1892
        %v1894 = vpop.f32.mrf.mxu0
        %1895 = vmatprep.mubr.bf16.mxu0 0
        %1896 = vmatmul.mubr.bf16.gmra.mxu0 %v1383
        %v1897 = vpop.f32.mrf.mxu0
        %v1898 = vadd.f32 %v1737, %v1897
        %v1899 = vpop.f32.mrf.mxu0
        %v1900 = vpop.f32.mrf.mxu0
        %v1901 = vadd.f32 %v1740, %v1900
        %v1902 = vpop.f32.mrf.mxu0
        %1903 = vmatprep.mubr.bf16.mxu0 0
        %1904 = vmatmul.mubr.bf16.gmra.mxu0 %v1386
        %v1905 = vpop.f32.mrf.mxu0
        %v1906 = vadd.f32 %v1745, %v1905
        %v1907 = vpop.f32.mrf.mxu0
        %v1908 = vpop.f32.mrf.mxu0
        %v1909 = vadd.f32 %v1748, %v1908
        %v1910 = vpop.f32.mrf.mxu0
        %1911 = vmatprep.mubr.bf16.mxu0 0
        %1912 = vmatmul.mubr.bf16.gmra.mxu0 %v1389
        %v1913 = vpop.f32.mrf.mxu0
        %v1914 = vadd.f32 %v1753, %v1913
        %v1915 = vpop.f32.mrf.mxu0
        %v1916 = vpop.f32.mrf.mxu0
        %v1917 = vadd.f32 %v1756, %v1916
        %v1918 = vpop.f32.mrf.mxu0
        %1919 = vmatprep.mubr.bf16.mxu0 0
        %1920 = vmatmul.mubr.bf16.gmra.mxu0 %v1392
        %v1921 = vpop.f32.mrf.mxu0
        %v1922 = vadd.f32 %v1761, %v1921
        %v1923 = vpop.f32.mrf.mxu0
        %v1924 = vpop.f32.mrf.mxu0
        %v1925 = vadd.f32 %v1764, %v1924
        %v1926 = vpop.f32.mrf.mxu0
        %1927 = vmatprep.mubr.bf16.mxu0 0
        %1928 = vmatmul.mubr.bf16.gmra.mxu0 %v1395
        %v1929 = vpop.f32.mrf.mxu0
        %v1930 = vadd.f32 %v1769, %v1929
        %v1931 = vpop.f32.mrf.mxu0
        %v1932 = vpop.f32.mrf.mxu0
        %v1933 = vadd.f32 %v1772, %v1932
        %v1934 = vpop.f32.mrf.mxu0
        %1935 = vmatprep.mubr.bf16.mxu0 0
        %1936 = vmatmul.mubr.bf16.gmra.mxu0 %v1398
        %v1937 = vpop.f32.mrf.mxu0
        %v1938 = vadd.f32 %v1777, %v1937
        %v1939 = vpop.f32.mrf.mxu0
        %v1940 = vpop.f32.mrf.mxu0
        %v1941 = vadd.f32 %v1780, %v1940
        %v1942 = vpop.f32.mrf.mxu0
        %1943 = vmatprep.mubr.bf16.mxu0 0
        %1944 = vmatmul.mubr.bf16.gmra.mxu0 %v1401
        %v1945 = vpop.f32.mrf.mxu0
        %v1946 = vadd.f32 %v1785, %v1945
        %v1947 = vpop.f32.mrf.mxu0
        %v1948 = vpop.f32.mrf.mxu0
        %v1949 = vadd.f32 %v1788, %v1948
        %v1950 = vpop.f32.mrf.mxu0
        %1951 = vmatprep.mubr.bf16.mxu0 0
        %1952 = vmatmul.mubr.bf16.gmra.mxu0 %v1404
        %v1953 = vpop.f32.mrf.mxu0
        %v1954 = vadd.f32 %v1793, %v1953
        %v1955 = vpop.f32.mrf.mxu0
        %v1956 = vpop.f32.mrf.mxu0
        %v1957 = vadd.f32 %v1796, %v1956
        %v1958 = vpop.f32.mrf.mxu0
        %1959 = vmatprep.mubr.bf16.mxu0 0
        %1960 = vmatmul.mubr.bf16.gmra.mxu0 %v1407
        %v1961 = vpop.f32.mrf.mxu0
        %v1962 = vadd.f32 %v1801, %v1961
        %v1963 = vpop.f32.mrf.mxu0
        %v1964 = vpop.f32.mrf.mxu0
        %v1965 = vadd.f32 %v1804, %v1964
        %v1966 = vpop.f32.mrf.mxu0
        %1967 = vmatprep.mubr.bf16.mxu0 0
        %1968 = vmatmul.mubr.bf16.gmra.mxu0 %v1410
        %v1969 = vpop.f32.mrf.mxu0
        %v1970 = vadd.f32 %v1809, %v1969
        %v1971 = vpop.f32.mrf.mxu0
        %v1972 = vpop.f32.mrf.mxu0
        %v1973 = vadd.f32 %v1812, %v1972
        %v1974 = vpop.f32.mrf.mxu0
        %1975 = vmatprep.mubr.bf16.mxu0 0
        %1976 = vmatmul.mubr.bf16.gmra.mxu0 %v1413
        %v1977 = vpop.f32.mrf.mxu0
        %v1978 = vadd.f32 %v1817, %v1977
        %v1979 = vpop.f32.mrf.mxu0
        %v1980 = vpop.f32.mrf.mxu0
        %v1981 = vadd.f32 %v1820, %v1980
        %v1982 = vpop.f32.mrf.mxu0
        %1983 = vmatprep.mubr.bf16.mxu0 0
        %1984 = vmatmul.mubr.bf16.gmra.mxu0 %v1416
        %v1985 = vpop.f32.mrf.mxu0
        %v1986 = vadd.f32 %v1825, %v1985
        %v1987 = vpop.f32.mrf.mxu0
        %v1988 = vpop.f32.mrf.mxu0
        %v1989 = vadd.f32 %v1828, %v1988
        %v1990 = vpop.f32.mrf.mxu0
        %1991 = vmatprep.mubr.bf16.mxu0 0
        %1992 = vmatmul.mubr.bf16.gmra.mxu0 %v1419
        %v1993 = vpop.f32.mrf.mxu0
        %v1994 = vadd.f32 %v1833, %v1993
        %v1995 = vpop.f32.mrf.mxu0
        %v1996 = vpop.f32.mrf.mxu0
        %v1997 = vadd.f32 %v1836, %v1996
        %v1998 = vpop.f32.mrf.mxu0
        %1999 = vdwg.mxu0
        %v2048 = vunpack.c.l.b16 %v1437
        %v2049 = vunpack.c.l.b16 %v1438
        %v2050 = vunpack.c.l.b16 %v1439
        %v2051 = vunpack.c.l.b16 %v1440
        %v2052 = vunpack.c.l.b16 %v1441
        %v2053 = vunpack.c.l.b16 %v1442
        %v2054 = vunpack.c.l.b16 %v1443
        %v2055 = vunpack.c.l.b16 %v1444
        %v2056 = vunpack.c.l.b16 %v1445
        %v2057 = vunpack.c.l.b16 %v1446
        %v2058 = vunpack.c.l.b16 %v1447
        %v2059 = vunpack.c.l.b16 %v1448
        %v2060 = vunpack.c.l.b16 %v1449
        %v2061 = vunpack.c.l.b16 %v1450
        %v2062 = vunpack.c.l.b16 %v1451
        %v2063 = vunpack.c.l.b16 %v1452
        %v2064 = vunpack.c.l.b16 %v1453
        %v2065 = vunpack.c.l.b16 %v1454
        %v2066 = vunpack.c.l.b16 %v1455
        %v2067 = vunpack.c.l.b16 %v1456
        %v2068 = vunpack.c.l.b16 %v1457
        %v2069 = vunpack.c.l.b16 %v1458
        %v2070 = vunpack.c.l.b16 %v1459
        %v2071 = vunpack.c.l.b16 %v1460
        %v2072 = vunpack.c.l.b16 %v1461
        %v2073 = vunpack.c.l.b16 %v1462
        %v2074 = vunpack.c.l.b16 %v1463
        %v2075 = vunpack.c.l.b16 %v1464
        %v2076 = vunpack.c.l.b16 %v1465
        %v2077 = vunpack.c.l.b16 %v1466
        %v2078 = vunpack.c.l.b16 %v1467
        %v2079 = vunpack.c.l.b16 %v1468
        %v2080 = vunpack.c.l.b16 %v1469
        %v2081 = vunpack.c.l.b16 %v1470
        %v2082 = vunpack.c.l.b16 %v1471
        %v2083 = vunpack.c.l.b16 %v1472
        %v2084 = vunpack.c.l.b16 %v1473
        %v2085 = vunpack.c.l.b16 %v1474
        %v2086 = vunpack.c.l.b16 %v1475
        %v2087 = vunpack.c.l.b16 %v1476
        %v2088 = vunpack.c.l.b16 %v1477
        %v2089 = vunpack.c.l.b16 %v1478
        %v2090 = vunpack.c.l.b16 %v1479
        %v2091 = vunpack.c.l.b16 %v1480
        %v2092 = vunpack.c.l.b16 %v1481
        %v2093 = vunpack.c.l.b16 %v1482
        %v2094 = vunpack.c.l.b16 %v1483
        %v2095 = vunpack.c.l.b16 %v1484
        %v2096 = vpack.c.b16 %v2049, %v2048
        %v2097 = vpack.c.b16 %v2051, %v2050
        %v2098 = vpack.c.b16 %v2053, %v2052
        %v2099 = vpack.c.b16 %v2055, %v2054
        %v2100 = vpack.c.b16 %v2057, %v2056
        %v2101 = vpack.c.b16 %v2059, %v2058
        %v2102 = vpack.c.b16 %v2061, %v2060
        %v2103 = vpack.c.b16 %v2063, %v2062
        %v2104 = vpack.c.b16 %v2065, %v2064
        %v2105 = vpack.c.b16 %v2067, %v2066
        %v2106 = vpack.c.b16 %v2069, %v2068
        %v2107 = vpack.c.b16 %v2071, %v2070
        %v2108 = vpack.c.b16 %v2073, %v2072
        %v2109 = vpack.c.b16 %v2075, %v2074
        %v2110 = vpack.c.b16 %v2077, %v2076
        %v2111 = vpack.c.b16 %v2079, %v2078
        %v2112 = vpack.c.b16 %v2081, %v2080
        %v2113 = vpack.c.b16 %v2083, %v2082
        %v2114 = vpack.c.b16 %v2085, %v2084
        %v2115 = vpack.c.b16 %v2087, %v2086
        %v2116 = vpack.c.b16 %v2089, %v2088
        %v2117 = vpack.c.b16 %v2091, %v2090
        %v2118 = vpack.c.b16 %v2093, %v2092
        %v2119 = vpack.c.b16 %v2095, %v2094
        %2144 = vmatprep.subr.bf16.mxu0 0
        %2145 = vmatpush1.bf16.msra.mxu0 %v2103
        %2146 = vmatprep.subr.bf16.mxu0 0
        %2147 = vmatpush1.bf16.msra.mxu0 %v2102
        %2148 = vmatprep.subr.bf16.mxu0 0
        %2149 = vmatpush1.bf16.msra.mxu0 %v2101
        %2150 = vmatprep.subr.bf16.mxu0 0
        %2151 = vmatpush1.bf16.msra.mxu0 %v2100
        %2152 = vmatprep.subr.bf16.mxu0 0
        %2153 = vmatpush1.bf16.msra.mxu0 %v2099
        %2154 = vmatprep.subr.bf16.mxu0 0
        %2155 = vmatpush1.bf16.msra.mxu0 %v2098
        %2156 = vmatprep.subr.bf16.mxu0 0
        %2157 = vmatpush1.bf16.msra.mxu0 %v2097
        %2158 = vmatprep.subr.bf16.mxu0 0
        %2159 = vmatpush1.bf16.msra.mxu0 %v2096
        %2160 = vmatprep.subr.bf16.mxu0 0
        %2161 = vmatpush2.bf16.msra.mxu0 %v2111
        %2162 = vmatprep.subr.bf16.mxu0 0
        %2163 = vmatpush2.bf16.msra.mxu0 %v2110
        %2164 = vmatprep.subr.bf16.mxu0 0
        %2165 = vmatpush2.bf16.msra.mxu0 %v2109
        %2166 = vmatprep.subr.bf16.mxu0 0
        %2167 = vmatpush2.bf16.msra.mxu0 %v2108
        %2168 = vmatprep.subr.bf16.mxu0 0
        %2169 = vmatpush2.bf16.msra.mxu0 %v2107
        %2170 = vmatprep.subr.bf16.mxu0 0
        %2171 = vmatpush2.bf16.msra.mxu0 %v2106
        %2172 = vmatprep.subr.bf16.mxu0 0
        %2173 = vmatpush2.bf16.msra.mxu0 %v2105
        %2174 = vmatprep.subr.bf16.mxu0 0
        %2175 = vmatpush2.bf16.msra.mxu0 %v2104
        %2176 = vmatprep.mubr.bf16.mxu0 %v1126
        %2177 = vmatmul.mubr.bf16.gmra.mxu0 0
        %v2178 = vpop.f32.mrf.mxu0
        %v2179 = vadd.f32 %v1874, %v2178
        %v2180 = vpop.f32.mrf.mxu0
        %v2181 = vpop.f32.mrf.mxu0
        %v2182 = vadd.f32 %v1877, %v2181
        %v2183 = vpop.f32.mrf.mxu0
        %2184 = vmatprep.mubr.bf16.mxu0 %v1138
        %2185 = vmatmul.mubr.bf16.gmra.mxu0 %v1086
        %v2186 = vpop.f32.mrf.mxu0
        %v2187 = vadd.f32 %v1882, %v2186
        %v2188 = vpop.f32.mrf.mxu0
        %v2189 = vpop.f32.mrf.mxu0
        %v2190 = vadd.f32 %v1885, %v2189
        %v2191 = vpop.f32.mrf.mxu0
        %2192 = vmatprep.mubr.bf16.mxu0 %v1150
        %2193 = vmatmul.mubr.bf16.gmra.mxu0 %v1087
        %v2194 = vpop.f32.mrf.mxu0
        %v2195 = vadd.f32 %v1890, %v2194
        %v2196 = vpop.f32.mrf.mxu0
        %v2197 = vpop.f32.mrf.mxu0
        %v2198 = vadd.f32 %v1893, %v2197
        %v2199 = vpop.f32.mrf.mxu0
        %2200 = vmatprep.mubr.bf16.mxu0 %v1162
        %2201 = vmatmul.mubr.bf16.gmra.mxu0 %v1088
        %v2202 = vpop.f32.mrf.mxu0
        %v2203 = vadd.f32 %v1898, %v2202
        %v2204 = vpop.f32.mrf.mxu0
        %v2205 = vpop.f32.mrf.mxu0
        %v2206 = vadd.f32 %v1901, %v2205
        %v2207 = vpop.f32.mrf.mxu0
        %2208 = vmatprep.mubr.bf16.mxu0 %v1174
        %2209 = vmatmul.mubr.bf16.gmra.mxu0 %v1089
        %v2210 = vpop.f32.mrf.mxu0
        %v2211 = vadd.f32 %v1906, %v2210
        %v2212 = vpop.f32.mrf.mxu0
        %v2213 = vpop.f32.mrf.mxu0
        %v2214 = vadd.f32 %v1909, %v2213
        %v2215 = vpop.f32.mrf.mxu0
        %2216 = vmatprep.mubr.bf16.mxu0 %v1186
        %2217 = vmatmul.mubr.bf16.gmra.mxu0 %v1090
        %v2218 = vpop.f32.mrf.mxu0
        %v2219 = vadd.f32 %v1914, %v2218
        %v2220 = vpop.f32.mrf.mxu0
        %v2221 = vpop.f32.mrf.mxu0
        %v2222 = vadd.f32 %v1917, %v2221
        %v2223 = vpop.f32.mrf.mxu0
        %2224 = vmatprep.mubr.bf16.mxu0 %v1198
        %2225 = vmatmul.mubr.bf16.gmra.mxu0 %v1091
        %v2226 = vpop.f32.mrf.mxu0
        %v2227 = vadd.f32 %v1922, %v2226
        %v2228 = vpop.f32.mrf.mxu0
        %v2229 = vpop.f32.mrf.mxu0
        %v2230 = vadd.f32 %v1925, %v2229
        %v2231 = vpop.f32.mrf.mxu0
        %2232 = vmatprep.mubr.bf16.mxu0 %v1210
        %2233 = vmatmul.mubr.bf16.gmra.mxu0 %v1092
        %v2234 = vpop.f32.mrf.mxu0
        %v2235 = vadd.f32 %v1930, %v2234
        %v2236 = vpop.f32.mrf.mxu0
        %v2237 = vpop.f32.mrf.mxu0
        %v2238 = vadd.f32 %v1933, %v2237
        %v2239 = vpop.f32.mrf.mxu0
        %2240 = vmatprep.mubr.bf16.mxu0 %v1222
        %2241 = vmatmul.mubr.bf16.gmra.mxu0 %v1093
        %v2242 = vpop.f32.mrf.mxu0
        %v2243 = vadd.f32 %v1938, %v2242
        %v2244 = vpop.f32.mrf.mxu0
        %v2245 = vpop.f32.mrf.mxu0
        %v2246 = vadd.f32 %v1941, %v2245
        %v2247 = vpop.f32.mrf.mxu0
        %2248 = vmatprep.mubr.bf16.mxu0 %v1234
        %2249 = vmatmul.mubr.bf16.gmra.mxu0 %v1094
        %v2250 = vpop.f32.mrf.mxu0
        %v2251 = vadd.f32 %v1946, %v2250
        %v2252 = vpop.f32.mrf.mxu0
        %v2253 = vpop.f32.mrf.mxu0
        %v2254 = vadd.f32 %v1949, %v2253
        %v2255 = vpop.f32.mrf.mxu0
        %2256 = vmatprep.mubr.bf16.mxu0 %v1246
        %2257 = vmatmul.mubr.bf16.gmra.mxu0 %v1095
        %v2258 = vpop.f32.mrf.mxu0
        %v2259 = vadd.f32 %v1954, %v2258
        %v2260 = vpop.f32.mrf.mxu0
        %v2261 = vpop.f32.mrf.mxu0
        %v2262 = vadd.f32 %v1957, %v2261
        %v2263 = vpop.f32.mrf.mxu0
        %2264 = vmatprep.mubr.bf16.mxu0 %v1258
        %2265 = vmatmul.mubr.bf16.gmra.mxu0 %v1096
        %v2266 = vpop.f32.mrf.mxu0
        %v2267 = vadd.f32 %v1962, %v2266
        %v2268 = vpop.f32.mrf.mxu0
        %v2269 = vpop.f32.mrf.mxu0
        %v2270 = vadd.f32 %v1965, %v2269
        %v2271 = vpop.f32.mrf.mxu0
        %2272 = vmatprep.mubr.bf16.mxu0 %v1270
        %2273 = vmatmul.mubr.bf16.gmra.mxu0 %v1097
        %v2274 = vpop.f32.mrf.mxu0
        %v2275 = vadd.f32 %v1970, %v2274
        %v2276 = vpop.f32.mrf.mxu0
        %v2277 = vpop.f32.mrf.mxu0
        %v2278 = vadd.f32 %v1973, %v2277
        %v2279 = vpop.f32.mrf.mxu0
        %2280 = vmatprep.mubr.bf16.mxu0 %v1282
        %2281 = vmatmul.mubr.bf16.gmra.mxu0 %v1098
        %v2282 = vpop.f32.mrf.mxu0
        %v2283 = vadd.f32 %v1978, %v2282
        %v2284 = vpop.f32.mrf.mxu0
        %v2285 = vpop.f32.mrf.mxu0
        %v2286 = vadd.f32 %v1981, %v2285
        %v2287 = vpop.f32.mrf.mxu0
        %2288 = vmatprep.mubr.bf16.mxu0 %v1294
        %2289 = vmatmul.mubr.bf16.gmra.mxu0 %v1099
        %v2290 = vpop.f32.mrf.mxu0
        %v2291 = vadd.f32 %v1986, %v2290
        %v2292 = vpop.f32.mrf.mxu0
        %v2293 = vpop.f32.mrf.mxu0
        %v2294 = vadd.f32 %v1989, %v2293
        %v2295 = vpop.f32.mrf.mxu0
        %2296 = vmatprep.mubr.bf16.mxu0 %v1306
        %2297 = vmatmul.mubr.bf16.gmra.mxu0 %v1100
        %v2298 = vpop.f32.mrf.mxu0
        %v2299 = vadd.f32 %v1994, %v2298
        %v2300 = vpop.f32.mrf.mxu0
        %v2301 = vpop.f32.mrf.mxu0
        %v2302 = vadd.f32 %v1997, %v2301
        %v2303 = vpop.f32.mrf.mxu0
        %2304 = vdwg.mxu0
        %2305 = vmatprep.subr.bf16.mxu0 0
        %2306 = vmatpush1.bf16.msra.mxu0 %v2119
        %2307 = vmatprep.subr.bf16.mxu0 0
        %2308 = vmatpush1.bf16.msra.mxu0 %v2118
        %2309 = vmatprep.subr.bf16.mxu0 0
        %2310 = vmatpush1.bf16.msra.mxu0 %v2117
        %2311 = vmatprep.subr.bf16.mxu0 0
        %2312 = vmatpush1.bf16.msra.mxu0 %v2116
        %2313 = vmatprep.subr.bf16.mxu0 0
        %2314 = vmatpush1.bf16.msra.mxu0 %v2115
        %2315 = vmatprep.subr.bf16.mxu0 0
        %2316 = vmatpush1.bf16.msra.mxu0 %v2114
        %2317 = vmatprep.subr.bf16.mxu0 0
        %2318 = vmatpush1.bf16.msra.mxu0 %v2113
        %2319 = vmatprep.subr.bf16.mxu0 0
        %2320 = vmatpush1.bf16.msra.mxu0 %v2112
        %2321 = vmatprep.subr.bf16.mxu0 0
        %2322 = vmatpush2.bf16.msra.mxu0 0
        %2323 = vmatprep.subr.bf16.mxu0 0
        %2324 = vmatpush2.bf16.msra.mxu0 0
        %2325 = vmatprep.subr.bf16.mxu0 0
        %2326 = vmatpush2.bf16.msra.mxu0 0
        %2327 = vmatprep.subr.bf16.mxu0 0
        %2328 = vmatpush2.bf16.msra.mxu0 0
        %2329 = vmatprep.subr.bf16.mxu0 0
        %2330 = vmatpush2.bf16.msra.mxu0 0
        %2331 = vmatprep.subr.bf16.mxu0 0
        %2332 = vmatpush2.bf16.msra.mxu0 0
        %2333 = vmatprep.subr.bf16.mxu0 0
        %2334 = vmatpush2.bf16.msra.mxu0 0
        %2335 = vmatprep.subr.bf16.mxu0 0
        %2336 = vmatpush2.bf16.msra.mxu0 0
        %2337 = vmatprep.mubr.bf16.mxu0 0
        %2338 = vmatmul.mubr.bf16.gmra.mxu0 %v1371
        %v2339 = vpop.f32.mrf.mxu0
        %v2340 = vadd.f32 %v2179, %v2339
        %v2341 = vpop.f32.mrf.mxu0
        %v2342 = vpop.f32.mrf.mxu0
        %v2343 = vadd.f32 %v2182, %v2342
        %v2344 = vpop.f32.mrf.mxu0
        %2345 = vmatprep.mubr.bf16.mxu0 0
        %2346 = vmatmul.mubr.bf16.gmra.mxu0 %v1374
        %v2347 = vpop.f32.mrf.mxu0
        %v2348 = vadd.f32 %v2187, %v2347
        %v2349 = vpop.f32.mrf.mxu0
        %v2350 = vpop.f32.mrf.mxu0
        %v2351 = vadd.f32 %v2190, %v2350
        %v2352 = vpop.f32.mrf.mxu0
        %2353 = vmatprep.mubr.bf16.mxu0 0
        %2354 = vmatmul.mubr.bf16.gmra.mxu0 %v1377
        %v2355 = vpop.f32.mrf.mxu0
        %v2356 = vadd.f32 %v2195, %v2355
        %v2357 = vpop.f32.mrf.mxu0
        %v2358 = vpop.f32.mrf.mxu0
        %v2359 = vadd.f32 %v2198, %v2358
        %v2360 = vpop.f32.mrf.mxu0
        %2361 = vmatprep.mubr.bf16.mxu0 0
        %2362 = vmatmul.mubr.bf16.gmra.mxu0 %v1380
        %v2363 = vpop.f32.mrf.mxu0
        %v2364 = vadd.f32 %v2203, %v2363
        %v2365 = vpop.f32.mrf.mxu0
        %v2366 = vpop.f32.mrf.mxu0
        %v2367 = vadd.f32 %v2206, %v2366
        %v2368 = vpop.f32.mrf.mxu0
        %2369 = vmatprep.mubr.bf16.mxu0 0
        %2370 = vmatmul.mubr.bf16.gmra.mxu0 %v1383
        %v2371 = vpop.f32.mrf.mxu0
        %v2372 = vadd.f32 %v2211, %v2371
        %v2373 = vpop.f32.mrf.mxu0
        %v2374 = vpop.f32.mrf.mxu0
        %v2375 = vadd.f32 %v2214, %v2374
        %v2376 = vpop.f32.mrf.mxu0
        %2377 = vmatprep.mubr.bf16.mxu0 0
        %2378 = vmatmul.mubr.bf16.gmra.mxu0 %v1386
        %v2379 = vpop.f32.mrf.mxu0
        %v2380 = vadd.f32 %v2219, %v2379
        %v2381 = vpop.f32.mrf.mxu0
        %v2382 = vpop.f32.mrf.mxu0
        %v2383 = vadd.f32 %v2222, %v2382
        %v2384 = vpop.f32.mrf.mxu0
        %2385 = vmatprep.mubr.bf16.mxu0 0
        %2386 = vmatmul.mubr.bf16.gmra.mxu0 %v1389
        %v2387 = vpop.f32.mrf.mxu0
        %v2388 = vadd.f32 %v2227, %v2387
        %v2389 = vpop.f32.mrf.mxu0
        %v2390 = vpop.f32.mrf.mxu0
        %v2391 = vadd.f32 %v2230, %v2390
        %v2392 = vpop.f32.mrf.mxu0
        %2393 = vmatprep.mubr.bf16.mxu0 0
        %2394 = vmatmul.mubr.bf16.gmra.mxu0 %v1392
        %v2395 = vpop.f32.mrf.mxu0
        %v2396 = vadd.f32 %v2235, %v2395
        %v2397 = vpop.f32.mrf.mxu0
        %v2398 = vpop.f32.mrf.mxu0
        %v2399 = vadd.f32 %v2238, %v2398
        %v2400 = vpop.f32.mrf.mxu0
        %2401 = vmatprep.mubr.bf16.mxu0 0
        %2402 = vmatmul.mubr.bf16.gmra.mxu0 %v1395
        %v2403 = vpop.f32.mrf.mxu0
        %v2404 = vadd.f32 %v2243, %v2403
        %v2405 = vpop.f32.mrf.mxu0
        %v2406 = vpop.f32.mrf.mxu0
        %v2407 = vadd.f32 %v2246, %v2406
        %v2408 = vpop.f32.mrf.mxu0
        %2409 = vmatprep.mubr.bf16.mxu0 0
        %2410 = vmatmul.mubr.bf16.gmra.mxu0 %v1398
        %v2411 = vpop.f32.mrf.mxu0
        %v2412 = vadd.f32 %v2251, %v2411
        %v2413 = vpop.f32.mrf.mxu0
        %v2414 = vpop.f32.mrf.mxu0
        %v2415 = vadd.f32 %v2254, %v2414
        %v2416 = vpop.f32.mrf.mxu0
        %2417 = vmatprep.mubr.bf16.mxu0 0
        %2418 = vmatmul.mubr.bf16.gmra.mxu0 %v1401
        %v2419 = vpop.f32.mrf.mxu0
        %v2420 = vadd.f32 %v2259, %v2419
        %v2421 = vpop.f32.mrf.mxu0
        %v2422 = vpop.f32.mrf.mxu0
        %v2423 = vadd.f32 %v2262, %v2422
        %v2424 = vpop.f32.mrf.mxu0
        %2425 = vmatprep.mubr.bf16.mxu0 0
        %2426 = vmatmul.mubr.bf16.gmra.mxu0 %v1404
        %v2427 = vpop.f32.mrf.mxu0
        %v2428 = vadd.f32 %v2267, %v2427
        %v2429 = vpop.f32.mrf.mxu0
        %v2430 = vpop.f32.mrf.mxu0
        %v2431 = vadd.f32 %v2270, %v2430
        %v2432 = vpop.f32.mrf.mxu0
        %2433 = vmatprep.mubr.bf16.mxu0 0
        %2434 = vmatmul.mubr.bf16.gmra.mxu0 %v1407
        %v2435 = vpop.f32.mrf.mxu0
        %v2436 = vadd.f32 %v2275, %v2435
        %v2437 = vpop.f32.mrf.mxu0
        %v2438 = vpop.f32.mrf.mxu0
        %v2439 = vadd.f32 %v2278, %v2438
        %v2440 = vpop.f32.mrf.mxu0
        %2441 = vmatprep.mubr.bf16.mxu0 0
        %2442 = vmatmul.mubr.bf16.gmra.mxu0 %v1410
        %v2443 = vpop.f32.mrf.mxu0
        %v2444 = vadd.f32 %v2283, %v2443
        %v2445 = vpop.f32.mrf.mxu0
        %v2446 = vpop.f32.mrf.mxu0
        %v2447 = vadd.f32 %v2286, %v2446
        %v2448 = vpop.f32.mrf.mxu0
        %2449 = vmatprep.mubr.bf16.mxu0 0
        %2450 = vmatmul.mubr.bf16.gmra.mxu0 %v1413
        %v2451 = vpop.f32.mrf.mxu0
        %v2452 = vadd.f32 %v2291, %v2451
        %v2453 = vpop.f32.mrf.mxu0
        %v2454 = vpop.f32.mrf.mxu0
        %v2455 = vadd.f32 %v2294, %v2454
        %v2456 = vpop.f32.mrf.mxu0
        %2457 = vmatprep.mubr.bf16.mxu0 0
        %2458 = vmatmul.mubr.bf16.gmra.mxu0 %v1416
        %v2459 = vpop.f32.mrf.mxu0
        %v2460 = vadd.f32 %v2299, %v2459
        %v2461 = vpop.f32.mrf.mxu0
        %v2462 = vpop.f32.mrf.mxu0
        %v2463 = vadd.f32 %v2302, %v2462
        %v2464 = vpop.f32.mrf.mxu0
        %2465 = vdwg.mxu0
        %s2466 = scalar_lea.vmem [#allocation5], 384
        %v2467 = vld [vmem:[%s2466] sm:$0xf]
        %v2468 = vld [vmem:[%s2466 + $0x4] sm:$0xf]
        %v2469 = vld [vmem:[%s2466 + $0x8] sm:$0xf]
        %v2470 = vld [vmem:[%s2466 + $0xc] sm:$0xf]
        %v2471 = vld [vmem:[%s2466 + $0x10] sm:$0xf]
        %v2472 = vld [vmem:[%s2466 + $0x14] sm:$0xf]
        %v2473 = vld [vmem:[%s2466 + $0x18] sm:$0xf]
        %v2474 = vld [vmem:[%s2466 + $0x1c] sm:$0xf]
        %v2475 = vld [vmem:[%s2466 + $0x20] sm:$0xf]
        %v2476 = vld [vmem:[%s2466 + $0x24] sm:$0xf]
        %v2477 = vld [vmem:[%s2466 + $0x28] sm:$0xf]
        %v2478 = vld [vmem:[%s2466 + $0x2c] sm:$0xf]
        %v2479 = vld [vmem:[%s2466 + $0x30] sm:$0xf]
        %v2480 = vld [vmem:[%s2466 + $0x34] sm:$0xf]
        %v2481 = vld [vmem:[%s2466 + $0x38] sm:$0xf]
        %v2482 = vld [vmem:[%s2466 + $0x3c] sm:$0xf]
        %v2483 = vld [vmem:[%s2466 + $0x40] sm:$0xf]
        %v2484 = vld [vmem:[%s2466 + $0x44] sm:$0xf]
        %v2485 = vld [vmem:[%s2466 + $0x48] sm:$0xf]
        %v2486 = vld [vmem:[%s2466 + $0x4c] sm:$0xf]
        %v2487 = vld [vmem:[%s2466 + $0x50] sm:$0xf]
        %v2488 = vld [vmem:[%s2466 + $0x54] sm:$0xf]
        %v2489 = vld [vmem:[%s2466 + $0x58] sm:$0xf]
        %v2490 = vld [vmem:[%s2466 + $0x5c] sm:$0xf]
        %v2491 = vld [vmem:[%s2466 + $0x60] sm:$0xf]
        %v2492 = vld [vmem:[%s2466 + $0x64] sm:$0xf]
        %v2493 = vld [vmem:[%s2466 + $0x68] sm:$0xf]
        %v2494 = vld [vmem:[%s2466 + $0x6c] sm:$0xf]
        %v2495 = vld [vmem:[%s2466 + $0x70] sm:$0xf]
        %v2496 = vld [vmem:[%s2466 + $0x74] sm:$0xf]
        %v2497 = vld [vmem:[%s2466 + $0x78] sm:$0xf]
        %v2498 = vld [vmem:[%s2466 + $0x7c] sm:$0xf]
        %v2499 = vld [vmem:[%s2466 + $0x80] sm:$0xf]
        %v2500 = vld [vmem:[%s2466 + $0x84] sm:$0xf]
        %v2501 = vld [vmem:[%s2466 + $0x88] sm:$0xf]
        %v2502 = vld [vmem:[%s2466 + $0x8c] sm:$0xf]
        %v2503 = vld [vmem:[%s2466 + $0x90] sm:$0xf]
        %v2504 = vld [vmem:[%s2466 + $0x94] sm:$0xf]
        %v2505 = vld [vmem:[%s2466 + $0x98] sm:$0xf]
        %v2506 = vld [vmem:[%s2466 + $0x9c] sm:$0xf]
        %v2507 = vld [vmem:[%s2466 + $0xa0] sm:$0xf]
        %v2508 = vld [vmem:[%s2466 + $0xa4] sm:$0xf]
        %v2509 = vld [vmem:[%s2466 + $0xa8] sm:$0xf]
        %v2510 = vld [vmem:[%s2466 + $0xac] sm:$0xf]
        %v2511 = vld [vmem:[%s2466 + $0xb0] sm:$0xf]
        %v2512 = vld [vmem:[%s2466 + $0xb4] sm:$0xf]
        %v2513 = vld [vmem:[%s2466 + $0xb8] sm:$0xf]
        %v2514 = vld [vmem:[%s2466 + $0xbc] sm:$0xf]
        %v2563 = vunpack.c.l.b16 %v2467
        %v2564 = vunpack.c.l.b16 %v2468
        %v2565 = vunpack.c.l.b16 %v2469
        %v2566 = vunpack.c.l.b16 %v2470
        %v2567 = vunpack.c.l.b16 %v2471
        %v2568 = vunpack.c.l.b16 %v2472
        %v2569 = vunpack.c.l.b16 %v2473
        %v2570 = vunpack.c.l.b16 %v2474
        %v2571 = vunpack.c.l.b16 %v2475
        %v2572 = vunpack.c.l.b16 %v2476
        %v2573 = vunpack.c.l.b16 %v2477
        %v2574 = vunpack.c.l.b16 %v2478
        %v2575 = vunpack.c.l.b16 %v2479
        %v2576 = vunpack.c.l.b16 %v2480
        %v2577 = vunpack.c.l.b16 %v2481
        %v2578 = vunpack.c.l.b16 %v2482
        %v2579 = vunpack.c.l.b16 %v2483
        %v2580 = vunpack.c.l.b16 %v2484
        %v2581 = vunpack.c.l.b16 %v2485
        %v2582 = vunpack.c.l.b16 %v2486
        %v2583 = vunpack.c.l.b16 %v2487
        %v2584 = vunpack.c.l.b16 %v2488
        %v2585 = vunpack.c.l.b16 %v2489
        %v2586 = vunpack.c.l.b16 %v2490
        %v2587 = vunpack.c.l.b16 %v2491
        %v2588 = vunpack.c.l.b16 %v2492
        %v2589 = vunpack.c.l.b16 %v2493
        %v2590 = vunpack.c.l.b16 %v2494
        %v2591 = vunpack.c.l.b16 %v2495
        %v2592 = vunpack.c.l.b16 %v2496
        %v2593 = vunpack.c.l.b16 %v2497
        %v2594 = vunpack.c.l.b16 %v2498
        %v2595 = vunpack.c.l.b16 %v2499
        %v2596 = vunpack.c.l.b16 %v2500
        %v2597 = vunpack.c.l.b16 %v2501
        %v2598 = vunpack.c.l.b16 %v2502
        %v2599 = vunpack.c.l.b16 %v2503
        %v2600 = vunpack.c.l.b16 %v2504
        %v2601 = vunpack.c.l.b16 %v2505
        %v2602 = vunpack.c.l.b16 %v2506
        %v2603 = vunpack.c.l.b16 %v2507
        %v2604 = vunpack.c.l.b16 %v2508
        %v2605 = vunpack.c.l.b16 %v2509
        %v2606 = vunpack.c.l.b16 %v2510
        %v2607 = vunpack.c.l.b16 %v2511
        %v2608 = vunpack.c.l.b16 %v2512
        %v2609 = vunpack.c.l.b16 %v2513
        %v2610 = vunpack.c.l.b16 %v2514
        %v2611 = vpack.c.b16 %v2564, %v2563
        %v2612 = vpack.c.b16 %v2566, %v2565
        %v2613 = vpack.c.b16 %v2568, %v2567
        %v2614 = vpack.c.b16 %v2570, %v2569
        %v2615 = vpack.c.b16 %v2572, %v2571
        %v2616 = vpack.c.b16 %v2574, %v2573
        %v2617 = vpack.c.b16 %v2576, %v2575
        %v2618 = vpack.c.b16 %v2578, %v2577
        %v2619 = vpack.c.b16 %v2580, %v2579
        %v2620 = vpack.c.b16 %v2582, %v2581
        %v2621 = vpack.c.b16 %v2584, %v2583
        %v2622 = vpack.c.b16 %v2586, %v2585
        %v2623 = vpack.c.b16 %v2588, %v2587
        %v2624 = vpack.c.b16 %v2590, %v2589
        %v2625 = vpack.c.b16 %v2592, %v2591
        %v2626 = vpack.c.b16 %v2594, %v2593
        %v2627 = vpack.c.b16 %v2596, %v2595
        %v2628 = vpack.c.b16 %v2598, %v2597
        %v2629 = vpack.c.b16 %v2600, %v2599
        %v2630 = vpack.c.b16 %v2602, %v2601
        %v2631 = vpack.c.b16 %v2604, %v2603
        %v2632 = vpack.c.b16 %v2606, %v2605
        %v2633 = vpack.c.b16 %v2608, %v2607
        %v2634 = vpack.c.b16 %v2610, %v2609
        %2659 = vmatprep.subr.bf16.mxu0 0
        %2660 = vmatpush1.bf16.msra.mxu0 %v2618
        %2661 = vmatprep.subr.bf16.mxu0 0
        %2662 = vmatpush1.bf16.msra.mxu0 %v2617
        %2663 = vmatprep.subr.bf16.mxu0 0
        %2664 = vmatpush1.bf16.msra.mxu0 %v2616
        %2665 = vmatprep.subr.bf16.mxu0 0
        %2666 = vmatpush1.bf16.msra.mxu0 %v2615
        %2667 = vmatprep.subr.bf16.mxu0 0
        %2668 = vmatpush1.bf16.msra.mxu0 %v2614
        %2669 = vmatprep.subr.bf16.mxu0 0
        %2670 = vmatpush1.bf16.msra.mxu0 %v2613
        %2671 = vmatprep.subr.bf16.mxu0 0
        %2672 = vmatpush1.bf16.msra.mxu0 %v2612
        %2673 = vmatprep.subr.bf16.mxu0 0
        %2674 = vmatpush1.bf16.msra.mxu0 %v2611
        %2675 = vmatprep.subr.bf16.mxu0 0
        %2676 = vmatpush2.bf16.msra.mxu0 %v2626
        %2677 = vmatprep.subr.bf16.mxu0 0
        %2678 = vmatpush2.bf16.msra.mxu0 %v2625
        %2679 = vmatprep.subr.bf16.mxu0 0
        %2680 = vmatpush2.bf16.msra.mxu0 %v2624
        %2681 = vmatprep.subr.bf16.mxu0 0
        %2682 = vmatpush2.bf16.msra.mxu0 %v2623
        %2683 = vmatprep.subr.bf16.mxu0 0
        %2684 = vmatpush2.bf16.msra.mxu0 %v2622
        %2685 = vmatprep.subr.bf16.mxu0 0
        %2686 = vmatpush2.bf16.msra.mxu0 %v2621
        %2687 = vmatprep.subr.bf16.mxu0 0
        %2688 = vmatpush2.bf16.msra.mxu0 %v2620
        %2689 = vmatprep.subr.bf16.mxu0 0
        %2690 = vmatpush2.bf16.msra.mxu0 %v2619
        %2691 = vmatprep.mubr.bf16.mxu0 %v1150
        %2692 = vmatmul.mubr.bf16.gmra.mxu0 %v1087
        %v2693 = vpop.f32.mrf.mxu0
        %v2694 = vadd.f32 0.0, %v2693
        %v2695 = vpop.f32.mrf.mxu0
        %v2696 = vpop.f32.mrf.mxu0
        %v2697 = vadd.f32 0.0, %v2696
        %v2698 = vpop.f32.mrf.mxu0
        %2699 = vmatprep.mubr.bf16.mxu0 %v1162
        %2700 = vmatmul.mubr.bf16.gmra.mxu0 %v1088
        %v2701 = vpop.f32.mrf.mxu0
        %v2702 = vadd.f32 0.0, %v2701
        %v2703 = vpop.f32.mrf.mxu0
        %v2704 = vpop.f32.mrf.mxu0
        %v2705 = vadd.f32 0.0, %v2704
        %v2706 = vpop.f32.mrf.mxu0
        %2707 = vmatprep.mubr.bf16.mxu0 %v1174
        %2708 = vmatmul.mubr.bf16.gmra.mxu0 %v1089
        %v2709 = vpop.f32.mrf.mxu0
        %v2710 = vadd.f32 0.0, %v2709
        %v2711 = vpop.f32.mrf.mxu0
        %v2712 = vpop.f32.mrf.mxu0
        %v2713 = vadd.f32 0.0, %v2712
        %v2714 = vpop.f32.mrf.mxu0
        %2715 = vmatprep.mubr.bf16.mxu0 %v1186
        %2716 = vmatmul.mubr.bf16.gmra.mxu0 %v1090
        %v2717 = vpop.f32.mrf.mxu0
        %v2718 = vadd.f32 0.0, %v2717
        %v2719 = vpop.f32.mrf.mxu0
        %v2720 = vpop.f32.mrf.mxu0
        %v2721 = vadd.f32 0.0, %v2720
        %v2722 = vpop.f32.mrf.mxu0
        %2723 = vmatprep.mubr.bf16.mxu0 %v1198
        %2724 = vmatmul.mubr.bf16.gmra.mxu0 %v1091
        %v2725 = vpop.f32.mrf.mxu0
        %v2726 = vadd.f32 0.0, %v2725
        %v2727 = vpop.f32.mrf.mxu0
        %v2728 = vpop.f32.mrf.mxu0
        %v2729 = vadd.f32 0.0, %v2728
        %v2730 = vpop.f32.mrf.mxu0
        %2731 = vmatprep.mubr.bf16.mxu0 %v1210
        %2732 = vmatmul.mubr.bf16.gmra.mxu0 %v1092
        %v2733 = vpop.f32.mrf.mxu0
        %v2734 = vadd.f32 0.0, %v2733
        %v2735 = vpop.f32.mrf.mxu0
        %v2736 = vpop.f32.mrf.mxu0
        %v2737 = vadd.f32 0.0, %v2736
        %v2738 = vpop.f32.mrf.mxu0
        %2739 = vmatprep.mubr.bf16.mxu0 %v1222
        %2740 = vmatmul.mubr.bf16.gmra.mxu0 %v1093
        %v2741 = vpop.f32.mrf.mxu0
        %v2742 = vadd.f32 0.0, %v2741
        %v2743 = vpop.f32.mrf.mxu0
        %v2744 = vpop.f32.mrf.mxu0
        %v2745 = vadd.f32 0.0, %v2744
        %v2746 = vpop.f32.mrf.mxu0
        %2747 = vmatprep.mubr.bf16.mxu0 %v1234
        %2748 = vmatmul.mubr.bf16.gmra.mxu0 %v1094
        %v2749 = vpop.f32.mrf.mxu0
        %v2750 = vadd.f32 0.0, %v2749
        %v2751 = vpop.f32.mrf.mxu0
        %v2752 = vpop.f32.mrf.mxu0
        %v2753 = vadd.f32 0.0, %v2752
        %v2754 = vpop.f32.mrf.mxu0
        %2755 = vmatprep.mubr.bf16.mxu0 %v1246
        %2756 = vmatmul.mubr.bf16.gmra.mxu0 %v1095
        %v2757 = vpop.f32.mrf.mxu0
        %v2758 = vadd.f32 0.0, %v2757
        %v2759 = vpop.f32.mrf.mxu0
        %v2760 = vpop.f32.mrf.mxu0
        %v2761 = vadd.f32 0.0, %v2760
        %v2762 = vpop.f32.mrf.mxu0
        %2763 = vmatprep.mubr.bf16.mxu0 %v1258
        %2764 = vmatmul.mubr.bf16.gmra.mxu0 %v1096
        %v2765 = vpop.f32.mrf.mxu0
        %v2766 = vadd.f32 0.0, %v2765
        %v2767 = vpop.f32.mrf.mxu0
        %v2768 = vpop.f32.mrf.mxu0
        %v2769 = vadd.f32 0.0, %v2768
        %v2770 = vpop.f32.mrf.mxu0
        %2771 = vmatprep.mubr.bf16.mxu0 %v1270
        %2772 = vmatmul.mubr.bf16.gmra.mxu0 %v1097
        %v2773 = vpop.f32.mrf.mxu0
        %v2774 = vadd.f32 0.0, %v2773
        %v2775 = vpop.f32.mrf.mxu0
        %v2776 = vpop.f32.mrf.mxu0
        %v2777 = vadd.f32 0.0, %v2776
        %v2778 = vpop.f32.mrf.mxu0
        %2779 = vmatprep.mubr.bf16.mxu0 %v1282
        %2780 = vmatmul.mubr.bf16.gmra.mxu0 %v1098
        %v2781 = vpop.f32.mrf.mxu0
        %v2782 = vadd.f32 0.0, %v2781
        %v2783 = vpop.f32.mrf.mxu0
        %v2784 = vpop.f32.mrf.mxu0
        %v2785 = vadd.f32 0.0, %v2784
        %v2786 = vpop.f32.mrf.mxu0
        %2787 = vmatprep.mubr.bf16.mxu0 %v1294
        %2788 = vmatmul.mubr.bf16.gmra.mxu0 %v1099
        %v2789 = vpop.f32.mrf.mxu0
        %v2790 = vadd.f32 0.0, %v2789
        %v2791 = vpop.f32.mrf.mxu0
        %v2792 = vpop.f32.mrf.mxu0
        %v2793 = vadd.f32 0.0, %v2792
        %v2794 = vpop.f32.mrf.mxu0
        %2795 = vmatprep.mubr.bf16.mxu0 %v1306
        %2796 = vmatmul.mubr.bf16.gmra.mxu0 %v1100
        %v2797 = vpop.f32.mrf.mxu0
        %v2798 = vadd.f32 0.0, %v2797
        %v2799 = vpop.f32.mrf.mxu0
        %v2800 = vpop.f32.mrf.mxu0
        %v2801 = vadd.f32 0.0, %v2800
        %v2802 = vpop.f32.mrf.mxu0
        %2803 = vmatprep.mubr.bf16.mxu0 %v1318
        %2804 = vmatmul.mubr.bf16.gmra.mxu0 %v1101
        %v2805 = vpop.f32.mrf.mxu0
        %v2806 = vadd.f32 0.0, %v2805
        %v2807 = vpop.f32.mrf.mxu0
        %v2808 = vpop.f32.mrf.mxu0
        %v2809 = vadd.f32 0.0, %v2808
        %v2810 = vpop.f32.mrf.mxu0
        %2811 = vmatprep.mubr.bf16.mxu0 %v1126
        %2812 = vmatmul.mubr.bf16.gmra.mxu0 0
        %v2813 = vpop.f32.mrf.mxu0
        %v2814 = vadd.f32 0.0, %v2813
        %v2815 = vpop.f32.mrf.mxu0
        %v2816 = vpop.f32.mrf.mxu0
        %v2817 = vadd.f32 0.0, %v2816
        %v2818 = vpop.f32.mrf.mxu0
        %2819 = vdwg.mxu0
        %2820 = vmatprep.subr.bf16.mxu0 0
        %2821 = vmatpush1.bf16.msra.mxu0 %v2634
        %2822 = vmatprep.subr.bf16.mxu0 0
        %2823 = vmatpush1.bf16.msra.mxu0 %v2633
        %2824 = vmatprep.subr.bf16.mxu0 0
        %2825 = vmatpush1.bf16.msra.mxu0 %v2632
        %2826 = vmatprep.subr.bf16.mxu0 0
        %2827 = vmatpush1.bf16.msra.mxu0 %v2631
        %2828 = vmatprep.subr.bf16.mxu0 0
        %2829 = vmatpush1.bf16.msra.mxu0 %v2630
        %2830 = vmatprep.subr.bf16.mxu0 0
        %2831 = vmatpush1.bf16.msra.mxu0 %v2629
        %2832 = vmatprep.subr.bf16.mxu0 0
        %2833 = vmatpush1.bf16.msra.mxu0 %v2628
        %2834 = vmatprep.subr.bf16.mxu0 0
        %2835 = vmatpush1.bf16.msra.mxu0 %v2627
        %2836 = vmatprep.subr.bf16.mxu0 0
        %2837 = vmatpush2.bf16.msra.mxu0 0
        %2838 = vmatprep.subr.bf16.mxu0 0
        %2839 = vmatpush2.bf16.msra.mxu0 0
        %2840 = vmatprep.subr.bf16.mxu0 0
        %2841 = vmatpush2.bf16.msra.mxu0 0
        %2842 = vmatprep.subr.bf16.mxu0 0
        %2843 = vmatpush2.bf16.msra.mxu0 0
        %2844 = vmatprep.subr.bf16.mxu0 0
        %2845 = vmatpush2.bf16.msra.mxu0 0
        %2846 = vmatprep.subr.bf16.mxu0 0
        %2847 = vmatpush2.bf16.msra.mxu0 0
        %2848 = vmatprep.subr.bf16.mxu0 0
        %2849 = vmatpush2.bf16.msra.mxu0 0
        %2850 = vmatprep.subr.bf16.mxu0 0
        %2851 = vmatpush2.bf16.msra.mxu0 0
        %2852 = vmatprep.mubr.bf16.mxu0 0
        %2853 = vmatmul.mubr.bf16.gmra.mxu0 %v1377
        %v2854 = vpop.f32.mrf.mxu0
        %v2855 = vadd.f32 %v2694, %v2854
        %v2856 = vpop.f32.mrf.mxu0
        %v2857 = vpop.f32.mrf.mxu0
        %v2858 = vadd.f32 %v2697, %v2857
        %v2859 = vpop.f32.mrf.mxu0
        %2860 = vmatprep.mubr.bf16.mxu0 0
        %2861 = vmatmul.mubr.bf16.gmra.mxu0 %v1380
        %v2862 = vpop.f32.mrf.mxu0
        %v2863 = vadd.f32 %v2702, %v2862
        %v2864 = vpop.f32.mrf.mxu0
        %v2865 = vpop.f32.mrf.mxu0
        %v2866 = vadd.f32 %v2705, %v2865
        %v2867 = vpop.f32.mrf.mxu0
        %2868 = vmatprep.mubr.bf16.mxu0 0
        %2869 = vmatmul.mubr.bf16.gmra.mxu0 %v1383
        %v2870 = vpop.f32.mrf.mxu0
        %v2871 = vadd.f32 %v2710, %v2870
        %v2872 = vpop.f32.mrf.mxu0
        %v2873 = vpop.f32.mrf.mxu0
        %v2874 = vadd.f32 %v2713, %v2873
        %v2875 = vpop.f32.mrf.mxu0
        %2876 = vmatprep.mubr.bf16.mxu0 0
        %2877 = vmatmul.mubr.bf16.gmra.mxu0 %v1386
        %v2878 = vpop.f32.mrf.mxu0
        %v2879 = vadd.f32 %v2718, %v2878
        %v2880 = vpop.f32.mrf.mxu0
        %v2881 = vpop.f32.mrf.mxu0
        %v2882 = vadd.f32 %v2721, %v2881
        %v2883 = vpop.f32.mrf.mxu0
        %2884 = vmatprep.mubr.bf16.mxu0 0
        %2885 = vmatmul.mubr.bf16.gmra.mxu0 %v1389
        %v2886 = vpop.f32.mrf.mxu0
        %v2887 = vadd.f32 %v2726, %v2886
        %v2888 = vpop.f32.mrf.mxu0
        %v2889 = vpop.f32.mrf.mxu0
        %v2890 = vadd.f32 %v2729, %v2889
        %v2891 = vpop.f32.mrf.mxu0
        %2892 = vmatprep.mubr.bf16.mxu0 0
        %2893 = vmatmul.mubr.bf16.gmra.mxu0 %v1392
        %v2894 = vpop.f32.mrf.mxu0
        %v2895 = vadd.f32 %v2734, %v2894
        %v2896 = vpop.f32.mrf.mxu0
        %v2897 = vpop.f32.mrf.mxu0
        %v2898 = vadd.f32 %v2737, %v2897
        %v2899 = vpop.f32.mrf.mxu0
        %2900 = vmatprep.mubr.bf16.mxu0 0
        %2901 = vmatmul.mubr.bf16.gmra.mxu0 %v1395
        %v2902 = vpop.f32.mrf.mxu0
        %v2903 = vadd.f32 %v2742, %v2902
        %v2904 = vpop.f32.mrf.mxu0
        %v2905 = vpop.f32.mrf.mxu0
        %v2906 = vadd.f32 %v2745, %v2905
        %v2907 = vpop.f32.mrf.mxu0
        %2908 = vmatprep.mubr.bf16.mxu0 0
        %2909 = vmatmul.mubr.bf16.gmra.mxu0 %v1398
        %v2910 = vpop.f32.mrf.mxu0
        %v2911 = vadd.f32 %v2750, %v2910
        %v2912 = vpop.f32.mrf.mxu0
        %v2913 = vpop.f32.mrf.mxu0
        %v2914 = vadd.f32 %v2753, %v2913
        %v2915 = vpop.f32.mrf.mxu0
        %2916 = vmatprep.mubr.bf16.mxu0 0
        %2917 = vmatmul.mubr.bf16.gmra.mxu0 %v1401
        %v2918 = vpop.f32.mrf.mxu0
        %v2919 = vadd.f32 %v2758, %v2918
        %v2920 = vpop.f32.mrf.mxu0
        %v2921 = vpop.f32.mrf.mxu0
        %v2922 = vadd.f32 %v2761, %v2921
        %v2923 = vpop.f32.mrf.mxu0
        %2924 = vmatprep.mubr.bf16.mxu0 0
        %2925 = vmatmul.mubr.bf16.gmra.mxu0 %v1404
        %v2926 = vpop.f32.mrf.mxu0
        %v2927 = vadd.f32 %v2766, %v2926
        %v2928 = vpop.f32.mrf.mxu0
        %v2929 = vpop.f32.mrf.mxu0
        %v2930 = vadd.f32 %v2769, %v2929
        %v2931 = vpop.f32.mrf.mxu0
        %2932 = vmatprep.mubr.bf16.mxu0 0
        %2933 = vmatmul.mubr.bf16.gmra.mxu0 %v1407
        %v2934 = vpop.f32.mrf.mxu0
        %v2935 = vadd.f32 %v2774, %v2934
        %v2936 = vpop.f32.mrf.mxu0
        %v2937 = vpop.f32.mrf.mxu0
        %v2938 = vadd.f32 %v2777, %v2937
        %v2939 = vpop.f32.mrf.mxu0
        %2940 = vmatprep.mubr.bf16.mxu0 0
        %2941 = vmatmul.mubr.bf16.gmra.mxu0 %v1410
        %v2942 = vpop.f32.mrf.mxu0
        %v2943 = vadd.f32 %v2782, %v2942
        %v2944 = vpop.f32.mrf.mxu0
        %v2945 = vpop.f32.mrf.mxu0
        %v2946 = vadd.f32 %v2785, %v2945
        %v2947 = vpop.f32.mrf.mxu0
        %2948 = vmatprep.mubr.bf16.mxu0 0
        %2949 = vmatmul.mubr.bf16.gmra.mxu0 %v1413
        %v2950 = vpop.f32.mrf.mxu0
        %v2951 = vadd.f32 %v2790, %v2950
        %v2952 = vpop.f32.mrf.mxu0
        %v2953 = vpop.f32.mrf.mxu0
        %v2954 = vadd.f32 %v2793, %v2953
        %v2955 = vpop.f32.mrf.mxu0
        %2956 = vmatprep.mubr.bf16.mxu0 0
        %2957 = vmatmul.mubr.bf16.gmra.mxu0 %v1416
        %v2958 = vpop.f32.mrf.mxu0
        %v2959 = vadd.f32 %v2798, %v2958
        %v2960 = vpop.f32.mrf.mxu0
        %v2961 = vpop.f32.mrf.mxu0
        %v2962 = vadd.f32 %v2801, %v2961
        %v2963 = vpop.f32.mrf.mxu0
        %2964 = vmatprep.mubr.bf16.mxu0 0
        %2965 = vmatmul.mubr.bf16.gmra.mxu0 %v1419
        %v2966 = vpop.f32.mrf.mxu0
        %v2967 = vadd.f32 %v2806, %v2966
        %v2968 = vpop.f32.mrf.mxu0
        %v2969 = vpop.f32.mrf.mxu0
        %v2970 = vadd.f32 %v2809, %v2969
        %v2971 = vpop.f32.mrf.mxu0
        %2972 = vmatprep.mubr.bf16.mxu0 0
        %2973 = vmatmul.mubr.bf16.gmra.mxu0 %v1371
        %v2974 = vpop.f32.mrf.mxu0
        %v2975 = vadd.f32 %v2814, %v2974
        %v2976 = vpop.f32.mrf.mxu0
        %v2977 = vpop.f32.mrf.mxu0
        %v2978 = vadd.f32 %v2817, %v2977
        %v2979 = vpop.f32.mrf.mxu0
        %2980 = vdwg.mxu0
        %v2981 = vadd.f32 %v2340, %v2855
        %v2982 = vadd.f32 %v2343, %v2858
        %v2983 = vadd.f32 %v2348, %v2863
        %v2984 = vadd.f32 %v2351, %v2866
        %v2985 = vadd.f32 %v2356, %v2871
        %v2986 = vadd.f32 %v2359, %v2874
        %v2987 = vadd.f32 %v2364, %v2879
        %v2988 = vadd.f32 %v2367, %v2882
        %v2989 = vadd.f32 %v2372, %v2887
        %v2990 = vadd.f32 %v2375, %v2890
        %v2991 = vadd.f32 %v2380, %v2895
        %v2992 = vadd.f32 %v2383, %v2898
        %v2993 = vadd.f32 %v2388, %v2903
        %v2994 = vadd.f32 %v2391, %v2906
        %v2995 = vadd.f32 %v2396, %v2911
        %v2996 = vadd.f32 %v2399, %v2914
        %v2997 = vadd.f32 %v2404, %v2919
        %v2998 = vadd.f32 %v2407, %v2922
        %v2999 = vadd.f32 %v2412, %v2927
        %v3000 = vadd.f32 %v2415, %v2930
        %v3001 = vadd.f32 %v2420, %v2935
        %v3002 = vadd.f32 %v2423, %v2938
        %v3003 = vadd.f32 %v2428, %v2943
        %v3004 = vadd.f32 %v2431, %v2946
        %v3005 = vadd.f32 %v2436, %v2951
        %v3006 = vadd.f32 %v2439, %v2954
        %v3007 = vadd.f32 %v2444, %v2959
        %v3008 = vadd.f32 %v2447, %v2962
        %v3009 = vadd.f32 %v2452, %v2967
        %v3010 = vadd.f32 %v2455, %v2970
        %v3011 = vadd.f32 %v2460, %v2975
        %v3012 = vadd.f32 %v2463, %v2978
        %v3013 = vld [vmem:[%s4] sm:$0x1]
        %v3015 = vlaneseq
        %v3016 = vshrl.u32 %v3015, 7
        %v3017 = vsub.s32 0, %v3016
        %v3018 = vrot.slane %v3013, %v3017
        %v3020 = vmul.f32 %v2981, %v3018
        %v3021 = vmul.f32 %v2982, %v3018
        %v3022 = vmul.f32 %v2983, %v3018
        %v3023 = vmul.f32 %v2984, %v3018
        %v3024 = vmul.f32 %v2985, %v3018
        %v3025 = vmul.f32 %v2986, %v3018
        %v3026 = vmul.f32 %v2987, %v3018
        %v3027 = vmul.f32 %v2988, %v3018
        %v3028 = vmul.f32 %v2989, %v3018
        %v3029 = vmul.f32 %v2990, %v3018
        %v3030 = vmul.f32 %v2991, %v3018
        %v3031 = vmul.f32 %v2992, %v3018
        %v3032 = vmul.f32 %v2993, %v3018
        %v3033 = vmul.f32 %v2994, %v3018
        %v3034 = vmul.f32 %v2995, %v3018
        %v3035 = vmul.f32 %v2996, %v3018
        %v3036 = vmul.f32 %v2997, %v3018
        %v3037 = vmul.f32 %v2998, %v3018
        %v3038 = vmul.f32 %v2999, %v3018
        %v3039 = vmul.f32 %v3000, %v3018
        %v3040 = vmul.f32 %v3001, %v3018
        %v3041 = vmul.f32 %v3002, %v3018
        %v3042 = vmul.f32 %v3003, %v3018
        %v3043 = vmul.f32 %v3004, %v3018
        %v3044 = vmul.f32 %v3005, %v3018
        %v3045 = vmul.f32 %v3006, %v3018
        %v3046 = vmul.f32 %v3007, %v3018
        %v3047 = vmul.f32 %v3008, %v3018
        %v3048 = vmul.f32 %v3009, %v3018
        %v3049 = vmul.f32 %v3010, %v3018
        %v3050 = vmul.f32 %v3011, %v3018
        %v3051 = vmul.f32 %v3012, %v3018
        %v3052 = vld [vmem:[%s5] sm:$0x1]
        %v3054 = vlaneseq
        %v3055 = vshrl.u32 %v3054, 7
        %v3056 = vsub.s32 0, %v3055
        %v3057 = vrot.slane %v3052, %v3056
        %v3059 = vadd.f32 %v3020, %v3057
        %v3060 = vadd.f32 %v3021, %v3057
        %v3061 = vadd.f32 %v3022, %v3057
        %v3062 = vadd.f32 %v3023, %v3057
        %v3063 = vadd.f32 %v3024, %v3057
        %v3064 = vadd.f32 %v3025, %v3057
        %v3065 = vadd.f32 %v3026, %v3057
        %v3066 = vadd.f32 %v3027, %v3057
        %v3067 = vadd.f32 %v3028, %v3057
        %v3068 = vadd.f32 %v3029, %v3057
        %v3069 = vadd.f32 %v3030, %v3057
        %v3070 = vadd.f32 %v3031, %v3057
        %v3071 = vadd.f32 %v3032, %v3057
        %v3072 = vadd.f32 %v3033, %v3057
        %v3073 = vadd.f32 %v3034, %v3057
        %v3074 = vadd.f32 %v3035, %v3057
        %v3075 = vadd.f32 %v3036, %v3057
        %v3076 = vadd.f32 %v3037, %v3057
        %v3077 = vadd.f32 %v3038, %v3057
        %v3078 = vadd.f32 %v3039, %v3057
        %v3079 = vadd.f32 %v3040, %v3057
        %v3080 = vadd.f32 %v3041, %v3057
        %v3081 = vadd.f32 %v3042, %v3057
        %v3082 = vadd.f32 %v3043, %v3057
        %v3083 = vadd.f32 %v3044, %v3057
        %v3084 = vadd.f32 %v3045, %v3057
        %v3085 = vadd.f32 %v3046, %v3057
        %v3086 = vadd.f32 %v3047, %v3057
        %v3087 = vadd.f32 %v3048, %v3057
        %v3088 = vadd.f32 %v3049, %v3057
        %v3089 = vadd.f32 %v3050, %v3057
        %v3090 = vadd.f32 %v3051, %v3057
        %v3091 = vmax.f32 %v3059, 0.0
        %v3092 = vmax.f32 %v3060, 0.0
        %v3093 = vmax.f32 %v3061, 0.0
        %v3094 = vmax.f32 %v3062, 0.0
        %v3095 = vmax.f32 %v3063, 0.0
        %v3096 = vmax.f32 %v3064, 0.0
        %v3097 = vmax.f32 %v3065, 0.0
        %v3098 = vmax.f32 %v3066, 0.0
        %v3099 = vmax.f32 %v3067, 0.0
        %v3100 = vmax.f32 %v3068, 0.0
        %v3101 = vmax.f32 %v3069, 0.0
        %v3102 = vmax.f32 %v3070, 0.0
        %v3103 = vmax.f32 %v3071, 0.0
        %v3104 = vmax.f32 %v3072, 0.0
        %v3105 = vmax.f32 %v3073, 0.0
        %v3106 = vmax.f32 %v3074, 0.0
        %v3107 = vmax.f32 %v3075, 0.0
        %v3108 = vmax.f32 %v3076, 0.0
        %v3109 = vmax.f32 %v3077, 0.0
        %v3110 = vmax.f32 %v3078, 0.0
        %v3111 = vmax.f32 %v3079, 0.0
        %v3112 = vmax.f32 %v3080, 0.0
        %v3113 = vmax.f32 %v3081, 0.0
        %v3114 = vmax.f32 %v3082, 0.0
        %v3115 = vmax.f32 %v3083, 0.0
        %v3116 = vmax.f32 %v3084, 0.0
        %v3117 = vmax.f32 %v3085, 0.0
        %v3118 = vmax.f32 %v3086, 0.0
        %v3119 = vmax.f32 %v3087, 0.0
        %v3120 = vmax.f32 %v3088, 0.0
        %v3121 = vmax.f32 %v3089, 0.0
        %v3122 = vmax.f32 %v3090, 0.0
        %v3123 = vpack.c.bf16 %v3092, %v3091
        %v3124 = vpack.c.bf16 %v3094, %v3093
        %v3125 = vpack.c.bf16 %v3096, %v3095
        %v3126 = vpack.c.bf16 %v3098, %v3097
        %v3127 = vpack.c.bf16 %v3100, %v3099
        %v3128 = vpack.c.bf16 %v3102, %v3101
        %v3129 = vpack.c.bf16 %v3104, %v3103
        %v3130 = vpack.c.bf16 %v3106, %v3105
        %v3131 = vpack.c.bf16 %v3108, %v3107
        %v3132 = vpack.c.bf16 %v3110, %v3109
        %v3133 = vpack.c.bf16 %v3112, %v3111
        %v3134 = vpack.c.bf16 %v3114, %v3113
        %v3135 = vpack.c.bf16 %v3116, %v3115
        %v3136 = vpack.c.bf16 %v3118, %v3117
        %v3137 = vpack.c.bf16 %v3120, %v3119
        %v3138 = vpack.c.bf16 %v3122, %v3121
        %v3140 = vshrl.u32 %v3123, 16
        %v3142 = vrot.slane %v3140, 7
        %v3143 = vshll.u32 %v3123, 16
        %v3145 = vor.u32 %v3142, %v3143
        %v3147 = vshrl.u32 %v3124, 16
        %v3149 = vrot.slane %v3147, 7
        %v3150 = vshll.u32 %v3124, 16
        %v3152 = vor.u32 %v3149, %v3150
        %v3154 = vshrl.u32 %v3125, 16
        %v3156 = vrot.slane %v3154, 7
        %v3157 = vshll.u32 %v3125, 16
        %v3159 = vor.u32 %v3156, %v3157
        %v3161 = vshrl.u32 %v3126, 16
        %v3163 = vrot.slane %v3161, 7
        %v3164 = vshll.u32 %v3126, 16
        %v3166 = vor.u32 %v3163, %v3164
        %v3168 = vshrl.u32 %v3127, 16
        %v3170 = vrot.slane %v3168, 7
        %v3171 = vshll.u32 %v3127, 16
        %v3173 = vor.u32 %v3170, %v3171
        %v3175 = vshrl.u32 %v3128, 16
        %v3177 = vrot.slane %v3175, 7
        %v3178 = vshll.u32 %v3128, 16
        %v3180 = vor.u32 %v3177, %v3178
        %v3182 = vshrl.u32 %v3129, 16
        %v3184 = vrot.slane %v3182, 7
        %v3185 = vshll.u32 %v3129, 16
        %v3187 = vor.u32 %v3184, %v3185
        %v3189 = vshrl.u32 %v3130, 16
        %v3191 = vrot.slane %v3189, 7
        %v3192 = vshll.u32 %v3130, 16
        %v3194 = vor.u32 %v3191, %v3192
        %v3196 = vshrl.u32 %v3131, 16
        %v3198 = vrot.slane %v3196, 7
        %v3199 = vshll.u32 %v3131, 16
        %v3201 = vor.u32 %v3198, %v3199
        %v3203 = vshrl.u32 %v3132, 16
        %v3205 = vrot.slane %v3203, 7
        %v3206 = vshll.u32 %v3132, 16
        %v3208 = vor.u32 %v3205, %v3206
        %v3210 = vshrl.u32 %v3133, 16
        %v3212 = vrot.slane %v3210, 7
        %v3213 = vshll.u32 %v3133, 16
        %v3215 = vor.u32 %v3212, %v3213
        %v3217 = vshrl.u32 %v3134, 16
        %v3219 = vrot.slane %v3217, 7
        %v3220 = vshll.u32 %v3134, 16
        %v3222 = vor.u32 %v3219, %v3220
        %v3224 = vshrl.u32 %v3135, 16
        %v3226 = vrot.slane %v3224, 7
        %v3227 = vshll.u32 %v3135, 16
        %v3229 = vor.u32 %v3226, %v3227
        %v3231 = vshrl.u32 %v3136, 16
        %v3233 = vrot.slane %v3231, 7
        %v3234 = vshll.u32 %v3136, 16
        %v3236 = vor.u32 %v3233, %v3234
        %v3238 = vshrl.u32 %v3137, 16
        %v3240 = vrot.slane %v3238, 7
        %v3241 = vshll.u32 %v3137, 16
        %v3243 = vor.u32 %v3240, %v3241
        %v3245 = vshrl.u32 %v3138, 16
        %v3247 = vrot.slane %v3245, 7
        %v3248 = vshll.u32 %v3138, 16
        %v3250 = vor.u32 %v3247, %v3248
        %v3283 = vsel %vm1085, 0, %v3145
        %v3284 = vsel %vm1085, 0, %v3152
        %v3285 = vsel %vm1085, 0, %v3159
        %v3286 = vsel %vm1085, 0, %v3166
        %v3287 = vsel %vm1085, 0, %v3173
        %v3288 = vsel %vm1085, 0, %v3180
        %v3289 = vsel %vm1085, 0, %v3187
        %v3290 = vsel %vm1085, 0, %v3194
        %v3291 = vsel %vm1085, 0, %v3201
        %v3292 = vsel %vm1085, 0, %v3208
        %v3293 = vsel %vm1085, 0, %v3215
        %v3294 = vsel %vm1085, 0, %v3222
        %v3295 = vsel %vm1085, 0, %v3229
        %v3296 = vsel %vm1085, 0, %v3236
        %v3297 = vsel %vm1085, 0, %v3243
        %v3298 = vsel %vm1085, 0, %v3250
        %v3299 = vsel %vm1085, %v3142, 0
        %v3300 = vsel %vm1085, %v3149, 0
        %v3301 = vsel %vm1085, %v3156, 0
        %v3302 = vsel %vm1085, %v3163, 0
        %v3303 = vsel %vm1085, %v3170, 0
        %v3304 = vsel %vm1085, %v3177, 0
        %v3305 = vsel %vm1085, %v3184, 0
        %v3306 = vsel %vm1085, %v3191, 0
        %v3307 = vsel %vm1085, %v3198, 0
        %v3308 = vsel %vm1085, %v3205, 0
        %v3309 = vsel %vm1085, %v3212, 0
        %v3310 = vsel %vm1085, %v3219, 0
        %v3311 = vsel %vm1085, %v3226, 0
        %v3312 = vsel %vm1085, %v3233, 0
        %v3313 = vsel %vm1085, %v3240, 0
        %v3314 = vsel %vm1085, %v3247, 0
        %v3316 = vshrl.u32 %v3283, 16
        %v3318 = vshll.u32 %v3283, 16
        %v3320 = vrot.slane %v3318, 1
        %v3321 = vor.u32 %v3316, %v3320
        %v3323 = vshll.u32 %v3299, 16
        %v3325 = vrot.slane %v3323, 1
        %v3326 = vsel %vm1118, %v3321, %v3325
        %v3328 = vshrl.u32 %v3284, 16
        %v3330 = vshll.u32 %v3284, 16
        %v3332 = vrot.slane %v3330, 1
        %v3333 = vor.u32 %v3328, %v3332
        %v3335 = vshll.u32 %v3300, 16
        %v3337 = vrot.slane %v3335, 1
        %v3338 = vsel %vm1118, %v3333, %v3337
        %v3340 = vshrl.u32 %v3285, 16
        %v3342 = vshll.u32 %v3285, 16
        %v3344 = vrot.slane %v3342, 1
        %v3345 = vor.u32 %v3340, %v3344
        %v3347 = vshll.u32 %v3301, 16
        %v3349 = vrot.slane %v3347, 1
        %v3350 = vsel %vm1118, %v3345, %v3349
        %v3352 = vshrl.u32 %v3286, 16
        %v3354 = vshll.u32 %v3286, 16
        %v3356 = vrot.slane %v3354, 1
        %v3357 = vor.u32 %v3352, %v3356
        %v3359 = vshll.u32 %v3302, 16
        %v3361 = vrot.slane %v3359, 1
        %v3362 = vsel %vm1118, %v3357, %v3361
        %v3364 = vshrl.u32 %v3287, 16
        %v3366 = vshll.u32 %v3287, 16
        %v3368 = vrot.slane %v3366, 1
        %v3369 = vor.u32 %v3364, %v3368
        %v3371 = vshll.u32 %v3303, 16
        %v3373 = vrot.slane %v3371, 1
        %v3374 = vsel %vm1118, %v3369, %v3373
        %v3376 = vshrl.u32 %v3288, 16
        %v3378 = vshll.u32 %v3288, 16
        %v3380 = vrot.slane %v3378, 1
        %v3381 = vor.u32 %v3376, %v3380
        %v3383 = vshll.u32 %v3304, 16
        %v3385 = vrot.slane %v3383, 1
        %v3386 = vsel %vm1118, %v3381, %v3385
        %v3388 = vshrl.u32 %v3289, 16
        %v3390 = vshll.u32 %v3289, 16
        %v3392 = vrot.slane %v3390, 1
        %v3393 = vor.u32 %v3388, %v3392
        %v3395 = vshll.u32 %v3305, 16
        %v3397 = vrot.slane %v3395, 1
        %v3398 = vsel %vm1118, %v3393, %v3397
        %v3400 = vshrl.u32 %v3290, 16
        %v3402 = vshll.u32 %v3290, 16
        %v3404 = vrot.slane %v3402, 1
        %v3405 = vor.u32 %v3400, %v3404
        %v3407 = vshll.u32 %v3306, 16
        %v3409 = vrot.slane %v3407, 1
        %v3410 = vsel %vm1118, %v3405, %v3409
        %v3412 = vshrl.u32 %v3291, 16
        %v3414 = vshll.u32 %v3291, 16
        %v3416 = vrot.slane %v3414, 1
        %v3417 = vor.u32 %v3412, %v3416
        %v3419 = vshll.u32 %v3307, 16
        %v3421 = vrot.slane %v3419, 1
        %v3422 = vsel %vm1118, %v3417, %v3421
        %v3424 = vshrl.u32 %v3292, 16
        %v3426 = vshll.u32 %v3292, 16
        %v3428 = vrot.slane %v3426, 1
        %v3429 = vor.u32 %v3424, %v3428
        %v3431 = vshll.u32 %v3308, 16
        %v3433 = vrot.slane %v3431, 1
        %v3434 = vsel %vm1118, %v3429, %v3433
        %v3436 = vshrl.u32 %v3293, 16
        %v3438 = vshll.u32 %v3293, 16
        %v3440 = vrot.slane %v3438, 1
        %v3441 = vor.u32 %v3436, %v3440
        %v3443 = vshll.u32 %v3309, 16
        %v3445 = vrot.slane %v3443, 1
        %v3446 = vsel %vm1118, %v3441, %v3445
        %v3448 = vshrl.u32 %v3294, 16
        %v3450 = vshll.u32 %v3294, 16
        %v3452 = vrot.slane %v3450, 1
        %v3453 = vor.u32 %v3448, %v3452
        %v3455 = vshll.u32 %v3310, 16
        %v3457 = vrot.slane %v3455, 1
        %v3458 = vsel %vm1118, %v3453, %v3457
        %v3460 = vshrl.u32 %v3295, 16
        %v3462 = vshll.u32 %v3295, 16
        %v3464 = vrot.slane %v3462, 1
        %v3465 = vor.u32 %v3460, %v3464
        %v3467 = vshll.u32 %v3311, 16
        %v3469 = vrot.slane %v3467, 1
        %v3470 = vsel %vm1118, %v3465, %v3469
        %v3472 = vshrl.u32 %v3296, 16
        %v3474 = vshll.u32 %v3296, 16
        %v3476 = vrot.slane %v3474, 1
        %v3477 = vor.u32 %v3472, %v3476
        %v3479 = vshll.u32 %v3312, 16
        %v3481 = vrot.slane %v3479, 1
        %v3482 = vsel %vm1118, %v3477, %v3481
        %v3484 = vshrl.u32 %v3297, 16
        %v3486 = vshll.u32 %v3297, 16
        %v3488 = vrot.slane %v3486, 1
        %v3489 = vor.u32 %v3484, %v3488
        %v3491 = vshll.u32 %v3313, 16
        %v3493 = vrot.slane %v3491, 1
        %v3494 = vsel %vm1118, %v3489, %v3493
        %v3496 = vshrl.u32 %v3298, 16
        %v3498 = vshll.u32 %v3298, 16
        %v3500 = vrot.slane %v3498, 1
        %v3501 = vor.u32 %v3496, %v3500
        %v3503 = vshll.u32 %v3314, 16
        %v3505 = vrot.slane %v3503, 1
        %v3506 = vsel %vm1118, %v3501, %v3505
        %v3555 = vrot.slane %v3283, 1
        %v3556 = vrot.slane %v3299, 1
        %v3557 = vsel %vm1369, %v3555, %v3556
        %v3558 = vrot.slane %v3284, 1
        %v3559 = vrot.slane %v3300, 1
        %v3560 = vsel %vm1369, %v3558, %v3559
        %v3561 = vrot.slane %v3285, 1
        %v3562 = vrot.slane %v3301, 1
        %v3563 = vsel %vm1369, %v3561, %v3562
        %v3564 = vrot.slane %v3286, 1
        %v3565 = vrot.slane %v3302, 1
        %v3566 = vsel %vm1369, %v3564, %v3565
        %v3567 = vrot.slane %v3287, 1
        %v3568 = vrot.slane %v3303, 1
        %v3569 = vsel %vm1369, %v3567, %v3568
        %v3570 = vrot.slane %v3288, 1
        %v3571 = vrot.slane %v3304, 1
        %v3572 = vsel %vm1369, %v3570, %v3571
        %v3573 = vrot.slane %v3289, 1
        %v3574 = vrot.slane %v3305, 1
        %v3575 = vsel %vm1369, %v3573, %v3574
        %v3576 = vrot.slane %v3290, 1
        %v3577 = vrot.slane %v3306, 1
        %v3578 = vsel %vm1369, %v3576, %v3577
        %v3579 = vrot.slane %v3291, 1
        %v3580 = vrot.slane %v3307, 1
        %v3581 = vsel %vm1369, %v3579, %v3580
        %v3582 = vrot.slane %v3292, 1
        %v3583 = vrot.slane %v3308, 1
        %v3584 = vsel %vm1369, %v3582, %v3583
        %v3585 = vrot.slane %v3293, 1
        %v3586 = vrot.slane %v3309, 1
        %v3587 = vsel %vm1369, %v3585, %v3586
        %v3588 = vrot.slane %v3294, 1
        %v3589 = vrot.slane %v3310, 1
        %v3590 = vsel %vm1369, %v3588, %v3589
        %v3591 = vrot.slane %v3295, 1
        %v3592 = vrot.slane %v3311, 1
        %v3593 = vsel %vm1369, %v3591, %v3592
        %v3594 = vrot.slane %v3296, 1
        %v3595 = vrot.slane %v3312, 1
        %v3596 = vsel %vm1369, %v3594, %v3595
        %v3597 = vrot.slane %v3297, 1
        %v3598 = vrot.slane %v3313, 1
        %v3599 = vsel %vm1369, %v3597, %v3598
        %v3600 = vrot.slane %v3298, 1
        %v3601 = vrot.slane %v3314, 1
        %v3602 = vsel %vm1369, %v3600, %v3601
        %v3619 = vld [vmem:[#allocation7] sm:$0xf]
        %v3620 = vld [vmem:[#allocation7 + $0x4] sm:$0xf]
        %v3621 = vld [vmem:[#allocation7 + $0x8] sm:$0xf]
        %v3622 = vld [vmem:[#allocation7 + $0xc] sm:$0xf]
        %v3623 = vld [vmem:[#allocation7 + $0x10] sm:$0xf]
        %v3624 = vld [vmem:[#allocation7 + $0x14] sm:$0xf]
        %v3625 = vld [vmem:[#allocation7 + $0x18] sm:$0xf]
        %v3626 = vld [vmem:[#allocation7 + $0x1c] sm:$0xf]
        %v3627 = vld [vmem:[#allocation7 + $0x20] sm:$0xf]
        %v3628 = vld [vmem:[#allocation7 + $0x24] sm:$0xf]
        %v3629 = vld [vmem:[#allocation7 + $0x28] sm:$0xf]
        %v3630 = vld [vmem:[#allocation7 + $0x2c] sm:$0xf]
        %v3631 = vld [vmem:[#allocation7 + $0x30] sm:$0xf]
        %v3632 = vld [vmem:[#allocation7 + $0x34] sm:$0xf]
        %v3633 = vld [vmem:[#allocation7 + $0x38] sm:$0xf]
        %v3634 = vld [vmem:[#allocation7 + $0x3c] sm:$0xf]
        %v3635 = vld [vmem:[#allocation7 + $0x40] sm:$0xf]
        %v3636 = vld [vmem:[#allocation7 + $0x44] sm:$0xf]
        %v3637 = vld [vmem:[#allocation7 + $0x48] sm:$0xf]
        %v3638 = vld [vmem:[#allocation7 + $0x4c] sm:$0xf]
        %v3639 = vld [vmem:[#allocation7 + $0x50] sm:$0xf]
        %v3640 = vld [vmem:[#allocation7 + $0x54] sm:$0xf]
        %v3641 = vld [vmem:[#allocation7 + $0x58] sm:$0xf]
        %v3642 = vld [vmem:[#allocation7 + $0x5c] sm:$0xf]
        %v3643 = vld [vmem:[#allocation7 + $0x60] sm:$0xf]
        %v3644 = vld [vmem:[#allocation7 + $0x64] sm:$0xf]
        %v3645 = vld [vmem:[#allocation7 + $0x68] sm:$0xf]
        %v3646 = vld [vmem:[#allocation7 + $0x6c] sm:$0xf]
        %v3647 = vld [vmem:[#allocation7 + $0x70] sm:$0xf]
        %v3648 = vld [vmem:[#allocation7 + $0x74] sm:$0xf]
        %v3649 = vld [vmem:[#allocation7 + $0x78] sm:$0xf]
        %v3650 = vld [vmem:[#allocation7 + $0x7c] sm:$0xf]
        %v3651 = vld [vmem:[#allocation7 + $0x80] sm:$0xf]
        %v3652 = vld [vmem:[#allocation7 + $0x84] sm:$0xf]
        %v3653 = vld [vmem:[#allocation7 + $0x88] sm:$0xf]
        %v3654 = vld [vmem:[#allocation7 + $0x8c] sm:$0xf]
        %v3655 = vld [vmem:[#allocation7 + $0x90] sm:$0xf]
        %v3656 = vld [vmem:[#allocation7 + $0x94] sm:$0xf]
        %v3657 = vld [vmem:[#allocation7 + $0x98] sm:$0xf]
        %v3658 = vld [vmem:[#allocation7 + $0x9c] sm:$0xf]
        %v3659 = vld [vmem:[#allocation7 + $0xa0] sm:$0xf]
        %v3660 = vld [vmem:[#allocation7 + $0xa4] sm:$0xf]
        %v3661 = vld [vmem:[#allocation7 + $0xa8] sm:$0xf]
        %v3662 = vld [vmem:[#allocation7 + $0xac] sm:$0xf]
        %v3663 = vld [vmem:[#allocation7 + $0xb0] sm:$0xf]
        %v3664 = vld [vmem:[#allocation7 + $0xb4] sm:$0xf]
        %v3665 = vld [vmem:[#allocation7 + $0xb8] sm:$0xf]
        %v3666 = vld [vmem:[#allocation7 + $0xbc] sm:$0xf]
        %s3667 = scalar_lea.vmem [#allocation7], 192
        %v3668 = vld [vmem:[%s3667] sm:$0xf]
        %v3669 = vld [vmem:[%s3667 + $0x4] sm:$0xf]
        %v3670 = vld [vmem:[%s3667 + $0x8] sm:$0xf]
        %v3671 = vld [vmem:[%s3667 + $0xc] sm:$0xf]
        %v3672 = vld [vmem:[%s3667 + $0x10] sm:$0xf]
        %v3673 = vld [vmem:[%s3667 + $0x14] sm:$0xf]
        %v3674 = vld [vmem:[%s3667 + $0x18] sm:$0xf]
        %v3675 = vld [vmem:[%s3667 + $0x1c] sm:$0xf]
        %v3676 = vld [vmem:[%s3667 + $0x20] sm:$0xf]
        %v3677 = vld [vmem:[%s3667 + $0x24] sm:$0xf]
        %v3678 = vld [vmem:[%s3667 + $0x28] sm:$0xf]
        %v3679 = vld [vmem:[%s3667 + $0x2c] sm:$0xf]
        %v3680 = vld [vmem:[%s3667 + $0x30] sm:$0xf]
        %v3681 = vld [vmem:[%s3667 + $0x34] sm:$0xf]
        %v3682 = vld [vmem:[%s3667 + $0x38] sm:$0xf]
        %v3683 = vld [vmem:[%s3667 + $0x3c] sm:$0xf]
        %v3684 = vld [vmem:[%s3667 + $0x40] sm:$0xf]
        %v3685 = vld [vmem:[%s3667 + $0x44] sm:$0xf]
        %v3686 = vld [vmem:[%s3667 + $0x48] sm:$0xf]
        %v3687 = vld [vmem:[%s3667 + $0x4c] sm:$0xf]
        %v3688 = vld [vmem:[%s3667 + $0x50] sm:$0xf]
        %v3689 = vld [vmem:[%s3667 + $0x54] sm:$0xf]
        %v3690 = vld [vmem:[%s3667 + $0x58] sm:$0xf]
        %v3691 = vld [vmem:[%s3667 + $0x5c] sm:$0xf]
        %v3692 = vld [vmem:[%s3667 + $0x60] sm:$0xf]
        %v3693 = vld [vmem:[%s3667 + $0x64] sm:$0xf]
        %v3694 = vld [vmem:[%s3667 + $0x68] sm:$0xf]
        %v3695 = vld [vmem:[%s3667 + $0x6c] sm:$0xf]
        %v3696 = vld [vmem:[%s3667 + $0x70] sm:$0xf]
        %v3697 = vld [vmem:[%s3667 + $0x74] sm:$0xf]
        %v3698 = vld [vmem:[%s3667 + $0x78] sm:$0xf]
        %v3699 = vld [vmem:[%s3667 + $0x7c] sm:$0xf]
        %v3700 = vld [vmem:[%s3667 + $0x80] sm:$0xf]
        %v3701 = vld [vmem:[%s3667 + $0x84] sm:$0xf]
        %v3702 = vld [vmem:[%s3667 + $0x88] sm:$0xf]
        %v3703 = vld [vmem:[%s3667 + $0x8c] sm:$0xf]
        %v3704 = vld [vmem:[%s3667 + $0x90] sm:$0xf]
        %v3705 = vld [vmem:[%s3667 + $0x94] sm:$0xf]
        %v3706 = vld [vmem:[%s3667 + $0x98] sm:$0xf]
        %v3707 = vld [vmem:[%s3667 + $0x9c] sm:$0xf]
        %v3708 = vld [vmem:[%s3667 + $0xa0] sm:$0xf]
        %v3709 = vld [vmem:[%s3667 + $0xa4] sm:$0xf]
        %v3710 = vld [vmem:[%s3667 + $0xa8] sm:$0xf]
        %v3711 = vld [vmem:[%s3667 + $0xac] sm:$0xf]
        %v3712 = vld [vmem:[%s3667 + $0xb0] sm:$0xf]
        %v3713 = vld [vmem:[%s3667 + $0xb4] sm:$0xf]
        %v3714 = vld [vmem:[%s3667 + $0xb8] sm:$0xf]
        %v3715 = vld [vmem:[%s3667 + $0xbc] sm:$0xf]
        %v3764 = vunpack.c.l.b16 %v3668
        %v3765 = vunpack.c.l.b16 %v3669
        %v3766 = vunpack.c.l.b16 %v3670
        %v3767 = vunpack.c.l.b16 %v3671
        %v3768 = vunpack.c.l.b16 %v3672
        %v3769 = vunpack.c.l.b16 %v3673
        %v3770 = vunpack.c.l.b16 %v3674
        %v3771 = vunpack.c.l.b16 %v3675
        %v3772 = vunpack.c.l.b16 %v3676
        %v3773 = vunpack.c.l.b16 %v3677
        %v3774 = vunpack.c.l.b16 %v3678
        %v3775 = vunpack.c.l.b16 %v3679
        %v3776 = vunpack.c.l.b16 %v3680
        %v3777 = vunpack.c.l.b16 %v3681
        %v3778 = vunpack.c.l.b16 %v3682
        %v3779 = vunpack.c.l.b16 %v3683
        %v3780 = vunpack.c.l.b16 %v3684
        %v3781 = vunpack.c.l.b16 %v3685
        %v3782 = vunpack.c.l.b16 %v3686
        %v3783 = vunpack.c.l.b16 %v3687
        %v3784 = vunpack.c.l.b16 %v3688
        %v3785 = vunpack.c.l.b16 %v3689
        %v3786 = vunpack.c.l.b16 %v3690
        %v3787 = vunpack.c.l.b16 %v3691
        %v3788 = vunpack.c.l.b16 %v3692
        %v3789 = vunpack.c.l.b16 %v3693
        %v3790 = vunpack.c.l.b16 %v3694
        %v3791 = vunpack.c.l.b16 %v3695
        %v3792 = vunpack.c.l.b16 %v3696
        %v3793 = vunpack.c.l.b16 %v3697
        %v3794 = vunpack.c.l.b16 %v3698
        %v3795 = vunpack.c.l.b16 %v3699
        %v3796 = vunpack.c.l.b16 %v3700
        %v3797 = vunpack.c.l.b16 %v3701
        %v3798 = vunpack.c.l.b16 %v3702
        %v3799 = vunpack.c.l.b16 %v3703
        %v3800 = vunpack.c.l.b16 %v3704
        %v3801 = vunpack.c.l.b16 %v3705
        %v3802 = vunpack.c.l.b16 %v3706
        %v3803 = vunpack.c.l.b16 %v3707
        %v3804 = vunpack.c.l.b16 %v3708
        %v3805 = vunpack.c.l.b16 %v3709
        %v3806 = vunpack.c.l.b16 %v3710
        %v3807 = vunpack.c.l.b16 %v3711
        %v3808 = vunpack.c.l.b16 %v3712
        %v3809 = vunpack.c.l.b16 %v3713
        %v3810 = vunpack.c.l.b16 %v3714
        %v3811 = vunpack.c.l.b16 %v3715
        %v3812 = vpack.c.b16 %v3765, %v3764
        %v3813 = vpack.c.b16 %v3767, %v3766
        %v3814 = vpack.c.b16 %v3769, %v3768
        %v3815 = vpack.c.b16 %v3771, %v3770
        %v3816 = vpack.c.b16 %v3773, %v3772
        %v3817 = vpack.c.b16 %v3775, %v3774
        %v3818 = vpack.c.b16 %v3777, %v3776
        %v3819 = vpack.c.b16 %v3779, %v3778
        %v3820 = vpack.c.b16 %v3781, %v3780
        %v3821 = vpack.c.b16 %v3783, %v3782
        %v3822 = vpack.c.b16 %v3785, %v3784
        %v3823 = vpack.c.b16 %v3787, %v3786
        %v3824 = vpack.c.b16 %v3789, %v3788
        %v3825 = vpack.c.b16 %v3791, %v3790
        %v3826 = vpack.c.b16 %v3793, %v3792
        %v3827 = vpack.c.b16 %v3795, %v3794
        %v3828 = vpack.c.b16 %v3797, %v3796
        %v3829 = vpack.c.b16 %v3799, %v3798
        %v3830 = vpack.c.b16 %v3801, %v3800
        %v3831 = vpack.c.b16 %v3803, %v3802
        %v3832 = vpack.c.b16 %v3805, %v3804
        %v3833 = vpack.c.b16 %v3807, %v3806
        %v3834 = vpack.c.b16 %v3809, %v3808
        %v3835 = vpack.c.b16 %v3811, %v3810
        %3860 = vmatprep.subr.bf16.mxu0 0
        %3861 = vmatpush1.bf16.msra.mxu0 %v3819
        %3862 = vmatprep.subr.bf16.mxu0 0
        %3863 = vmatpush1.bf16.msra.mxu0 %v3818
        %3864 = vmatprep.subr.bf16.mxu0 0
        %3865 = vmatpush1.bf16.msra.mxu0 %v3817
        %3866 = vmatprep.subr.bf16.mxu0 0
        %3867 = vmatpush1.bf16.msra.mxu0 %v3816
        %3868 = vmatprep.subr.bf16.mxu0 0
        %3869 = vmatpush1.bf16.msra.mxu0 %v3815
        %3870 = vmatprep.subr.bf16.mxu0 0
        %3871 = vmatpush1.bf16.msra.mxu0 %v3814
        %3872 = vmatprep.subr.bf16.mxu0 0
        %3873 = vmatpush1.bf16.msra.mxu0 %v3813
        %3874 = vmatprep.subr.bf16.mxu0 0
        %3875 = vmatpush1.bf16.msra.mxu0 %v3812
        %3876 = vmatprep.subr.bf16.mxu0 0
        %3877 = vmatpush2.bf16.msra.mxu0 %v3827
        %3878 = vmatprep.subr.bf16.mxu0 0
        %3879 = vmatpush2.bf16.msra.mxu0 %v3826
        %3880 = vmatprep.subr.bf16.mxu0 0
        %3881 = vmatpush2.bf16.msra.mxu0 %v3825
        %3882 = vmatprep.subr.bf16.mxu0 0
        %3883 = vmatpush2.bf16.msra.mxu0 %v3824
        %3884 = vmatprep.subr.bf16.mxu0 0
        %3885 = vmatpush2.bf16.msra.mxu0 %v3823
        %3886 = vmatprep.subr.bf16.mxu0 0
        %3887 = vmatpush2.bf16.msra.mxu0 %v3822
        %3888 = vmatprep.subr.bf16.mxu0 0
        %3889 = vmatpush2.bf16.msra.mxu0 %v3821
        %3890 = vmatprep.subr.bf16.mxu0 0
        %3891 = vmatpush2.bf16.msra.mxu0 %v3820
        %3892 = vmatprep.mubr.bf16.mxu0 %v3326
        %3893 = vmatmul.mubr.bf16.gmra.mxu0 %v3283
        %v3894 = vpop.f32.mrf.mxu0
        %v3895 = vadd.f32 0.0, %v3894
        %v3896 = vpop.f32.mrf.mxu0
        %v3897 = vpop.f32.mrf.mxu0
        %v3898 = vadd.f32 0.0, %v3897
        %v3899 = vpop.f32.mrf.mxu0
        %3900 = vmatprep.mubr.bf16.mxu0 %v3338
        %3901 = vmatmul.mubr.bf16.gmra.mxu0 %v3284
        %v3902 = vpop.f32.mrf.mxu0
        %v3903 = vadd.f32 0.0, %v3902
        %v3904 = vpop.f32.mrf.mxu0
        %v3905 = vpop.f32.mrf.mxu0
        %v3906 = vadd.f32 0.0, %v3905
        %v3907 = vpop.f32.mrf.mxu0
        %3908 = vmatprep.mubr.bf16.mxu0 %v3350
        %3909 = vmatmul.mubr.bf16.gmra.mxu0 %v3285
        %v3910 = vpop.f32.mrf.mxu0
        %v3911 = vadd.f32 0.0, %v3910
        %v3912 = vpop.f32.mrf.mxu0
        %v3913 = vpop.f32.mrf.mxu0
        %v3914 = vadd.f32 0.0, %v3913
        %v3915 = vpop.f32.mrf.mxu0
        %3916 = vmatprep.mubr.bf16.mxu0 %v3362
        %3917 = vmatmul.mubr.bf16.gmra.mxu0 %v3286
        %v3918 = vpop.f32.mrf.mxu0
        %v3919 = vadd.f32 0.0, %v3918
        %v3920 = vpop.f32.mrf.mxu0
        %v3921 = vpop.f32.mrf.mxu0
        %v3922 = vadd.f32 0.0, %v3921
        %v3923 = vpop.f32.mrf.mxu0
        %3924 = vmatprep.mubr.bf16.mxu0 %v3374
        %3925 = vmatmul.mubr.bf16.gmra.mxu0 %v3287
        %v3926 = vpop.f32.mrf.mxu0
        %v3927 = vadd.f32 0.0, %v3926
        %v3928 = vpop.f32.mrf.mxu0
        %v3929 = vpop.f32.mrf.mxu0
        %v3930 = vadd.f32 0.0, %v3929
        %v3931 = vpop.f32.mrf.mxu0
        %3932 = vmatprep.mubr.bf16.mxu0 %v3386
        %3933 = vmatmul.mubr.bf16.gmra.mxu0 %v3288
        %v3934 = vpop.f32.mrf.mxu0
        %v3935 = vadd.f32 0.0, %v3934
        %v3936 = vpop.f32.mrf.mxu0
        %v3937 = vpop.f32.mrf.mxu0
        %v3938 = vadd.f32 0.0, %v3937
        %v3939 = vpop.f32.mrf.mxu0
        %3940 = vmatprep.mubr.bf16.mxu0 %v3398
        %3941 = vmatmul.mubr.bf16.gmra.mxu0 %v3289
        %v3942 = vpop.f32.mrf.mxu0
        %v3943 = vadd.f32 0.0, %v3942
        %v3944 = vpop.f32.mrf.mxu0
        %v3945 = vpop.f32.mrf.mxu0
        %v3946 = vadd.f32 0.0, %v3945
        %v3947 = vpop.f32.mrf.mxu0
        %3948 = vmatprep.mubr.bf16.mxu0 %v3410
        %3949 = vmatmul.mubr.bf16.gmra.mxu0 %v3290
        %v3950 = vpop.f32.mrf.mxu0
        %v3951 = vadd.f32 0.0, %v3950
        %v3952 = vpop.f32.mrf.mxu0
        %v3953 = vpop.f32.mrf.mxu0
        %v3954 = vadd.f32 0.0, %v3953
        %v3955 = vpop.f32.mrf.mxu0
        %3956 = vmatprep.mubr.bf16.mxu0 %v3422
        %3957 = vmatmul.mubr.bf16.gmra.mxu0 %v3291
        %v3958 = vpop.f32.mrf.mxu0
        %v3959 = vadd.f32 0.0, %v3958
        %v3960 = vpop.f32.mrf.mxu0
        %v3961 = vpop.f32.mrf.mxu0
        %v3962 = vadd.f32 0.0, %v3961
        %v3963 = vpop.f32.mrf.mxu0
        %3964 = vmatprep.mubr.bf16.mxu0 %v3434
        %3965 = vmatmul.mubr.bf16.gmra.mxu0 %v3292
        %v3966 = vpop.f32.mrf.mxu0
        %v3967 = vadd.f32 0.0, %v3966
        %v3968 = vpop.f32.mrf.mxu0
        %v3969 = vpop.f32.mrf.mxu0
        %v3970 = vadd.f32 0.0, %v3969
        %v3971 = vpop.f32.mrf.mxu0
        %3972 = vmatprep.mubr.bf16.mxu0 %v3446
        %3973 = vmatmul.mubr.bf16.gmra.mxu0 %v3293
        %v3974 = vpop.f32.mrf.mxu0
        %v3975 = vadd.f32 0.0, %v3974
        %v3976 = vpop.f32.mrf.mxu0
        %v3977 = vpop.f32.mrf.mxu0
        %v3978 = vadd.f32 0.0, %v3977
        %v3979 = vpop.f32.mrf.mxu0
        %3980 = vmatprep.mubr.bf16.mxu0 %v3458
        %3981 = vmatmul.mubr.bf16.gmra.mxu0 %v3294
        %v3982 = vpop.f32.mrf.mxu0
        %v3983 = vadd.f32 0.0, %v3982
        %v3984 = vpop.f32.mrf.mxu0
        %v3985 = vpop.f32.mrf.mxu0
        %v3986 = vadd.f32 0.0, %v3985
        %v3987 = vpop.f32.mrf.mxu0
        %3988 = vmatprep.mubr.bf16.mxu0 %v3470
        %3989 = vmatmul.mubr.bf16.gmra.mxu0 %v3295
        %v3990 = vpop.f32.mrf.mxu0
        %v3991 = vadd.f32 0.0, %v3990
        %v3992 = vpop.f32.mrf.mxu0
        %v3993 = vpop.f32.mrf.mxu0
        %v3994 = vadd.f32 0.0, %v3993
        %v3995 = vpop.f32.mrf.mxu0
        %3996 = vmatprep.mubr.bf16.mxu0 %v3482
        %3997 = vmatmul.mubr.bf16.gmra.mxu0 %v3296
        %v3998 = vpop.f32.mrf.mxu0
        %v3999 = vadd.f32 0.0, %v3998
        %v4000 = vpop.f32.mrf.mxu0
        %v4001 = vpop.f32.mrf.mxu0
        %v4002 = vadd.f32 0.0, %v4001
        %v4003 = vpop.f32.mrf.mxu0
        %4004 = vmatprep.mubr.bf16.mxu0 %v3494
        %4005 = vmatmul.mubr.bf16.gmra.mxu0 %v3297
        %v4006 = vpop.f32.mrf.mxu0
        %v4007 = vadd.f32 0.0, %v4006
        %v4008 = vpop.f32.mrf.mxu0
        %v4009 = vpop.f32.mrf.mxu0
        %v4010 = vadd.f32 0.0, %v4009
        %v4011 = vpop.f32.mrf.mxu0
        %4012 = vmatprep.mubr.bf16.mxu0 %v3506
        %4013 = vmatmul.mubr.bf16.gmra.mxu0 %v3298
        %v4014 = vpop.f32.mrf.mxu0
        %v4015 = vadd.f32 0.0, %v4014
        %v4016 = vpop.f32.mrf.mxu0
        %v4017 = vpop.f32.mrf.mxu0
        %v4018 = vadd.f32 0.0, %v4017
        %v4019 = vpop.f32.mrf.mxu0
        %4020 = vdwg.mxu0
        %4021 = vmatprep.subr.bf16.mxu0 0
        %4022 = vmatpush1.bf16.msra.mxu0 %v3835
        %4023 = vmatprep.subr.bf16.mxu0 0
        %4024 = vmatpush1.bf16.msra.mxu0 %v3834
        %4025 = vmatprep.subr.bf16.mxu0 0
        %4026 = vmatpush1.bf16.msra.mxu0 %v3833
        %4027 = vmatprep.subr.bf16.mxu0 0
        %4028 = vmatpush1.bf16.msra.mxu0 %v3832
        %4029 = vmatprep.subr.bf16.mxu0 0
        %4030 = vmatpush1.bf16.msra.mxu0 %v3831
        %4031 = vmatprep.subr.bf16.mxu0 0
        %4032 = vmatpush1.bf16.msra.mxu0 %v3830
        %4033 = vmatprep.subr.bf16.mxu0 0
        %4034 = vmatpush1.bf16.msra.mxu0 %v3829
        %4035 = vmatprep.subr.bf16.mxu0 0
        %4036 = vmatpush1.bf16.msra.mxu0 %v3828
        %4037 = vmatprep.subr.bf16.mxu0 0
        %4038 = vmatpush2.bf16.msra.mxu0 0
        %4039 = vmatprep.subr.bf16.mxu0 0
        %4040 = vmatpush2.bf16.msra.mxu0 0
        %4041 = vmatprep.subr.bf16.mxu0 0
        %4042 = vmatpush2.bf16.msra.mxu0 0
        %4043 = vmatprep.subr.bf16.mxu0 0
        %4044 = vmatpush2.bf16.msra.mxu0 0
        %4045 = vmatprep.subr.bf16.mxu0 0
        %4046 = vmatpush2.bf16.msra.mxu0 0
        %4047 = vmatprep.subr.bf16.mxu0 0
        %4048 = vmatpush2.bf16.msra.mxu0 0
        %4049 = vmatprep.subr.bf16.mxu0 0
        %4050 = vmatpush2.bf16.msra.mxu0 0
        %4051 = vmatprep.subr.bf16.mxu0 0
        %4052 = vmatpush2.bf16.msra.mxu0 0
        %4053 = vmatprep.mubr.bf16.mxu0 0
        %4054 = vmatmul.mubr.bf16.gmra.mxu0 %v3557
        %v4055 = vpop.f32.mrf.mxu0
        %v4056 = vadd.f32 %v3895, %v4055
        %v4057 = vpop.f32.mrf.mxu0
        %v4058 = vpop.f32.mrf.mxu0
        %v4059 = vadd.f32 %v3898, %v4058
        %v4060 = vpop.f32.mrf.mxu0
        %4061 = vmatprep.mubr.bf16.mxu0 0
        %4062 = vmatmul.mubr.bf16.gmra.mxu0 %v3560
        %v4063 = vpop.f32.mrf.mxu0
        %v4064 = vadd.f32 %v3903, %v4063
        %v4065 = vpop.f32.mrf.mxu0
        %v4066 = vpop.f32.mrf.mxu0
        %v4067 = vadd.f32 %v3906, %v4066
        %v4068 = vpop.f32.mrf.mxu0
        %4069 = vmatprep.mubr.bf16.mxu0 0
        %4070 = vmatmul.mubr.bf16.gmra.mxu0 %v3563
        %v4071 = vpop.f32.mrf.mxu0
        %v4072 = vadd.f32 %v3911, %v4071
        %v4073 = vpop.f32.mrf.mxu0
        %v4074 = vpop.f32.mrf.mxu0
        %v4075 = vadd.f32 %v3914, %v4074
        %v4076 = vpop.f32.mrf.mxu0
        %4077 = vmatprep.mubr.bf16.mxu0 0
        %4078 = vmatmul.mubr.bf16.gmra.mxu0 %v3566
        %v4079 = vpop.f32.mrf.mxu0
        %v4080 = vadd.f32 %v3919, %v4079
        %v4081 = vpop.f32.mrf.mxu0
        %v4082 = vpop.f32.mrf.mxu0
        %v4083 = vadd.f32 %v3922, %v4082
        %v4084 = vpop.f32.mrf.mxu0
        %4085 = vmatprep.mubr.bf16.mxu0 0
        %4086 = vmatmul.mubr.bf16.gmra.mxu0 %v3569
        %v4087 = vpop.f32.mrf.mxu0
        %v4088 = vadd.f32 %v3927, %v4087
        %v4089 = vpop.f32.mrf.mxu0
        %v4090 = vpop.f32.mrf.mxu0
        %v4091 = vadd.f32 %v3930, %v4090
        %v4092 = vpop.f32.mrf.mxu0
        %4093 = vmatprep.mubr.bf16.mxu0 0
        %4094 = vmatmul.mubr.bf16.gmra.mxu0 %v3572
        %v4095 = vpop.f32.mrf.mxu0
        %v4096 = vadd.f32 %v3935, %v4095
        %v4097 = vpop.f32.mrf.mxu0
        %v4098 = vpop.f32.mrf.mxu0
        %v4099 = vadd.f32 %v3938, %v4098
        %v4100 = vpop.f32.mrf.mxu0
        %4101 = vmatprep.mubr.bf16.mxu0 0
        %4102 = vmatmul.mubr.bf16.gmra.mxu0 %v3575
        %v4103 = vpop.f32.mrf.mxu0
        %v4104 = vadd.f32 %v3943, %v4103
        %v4105 = vpop.f32.mrf.mxu0
        %v4106 = vpop.f32.mrf.mxu0
        %v4107 = vadd.f32 %v3946, %v4106
        %v4108 = vpop.f32.mrf.mxu0
        %4109 = vmatprep.mubr.bf16.mxu0 0
        %4110 = vmatmul.mubr.bf16.gmra.mxu0 %v3578
        %v4111 = vpop.f32.mrf.mxu0
        %v4112 = vadd.f32 %v3951, %v4111
        %v4113 = vpop.f32.mrf.mxu0
        %v4114 = vpop.f32.mrf.mxu0
        %v4115 = vadd.f32 %v3954, %v4114
        %v4116 = vpop.f32.mrf.mxu0
        %4117 = vmatprep.mubr.bf16.mxu0 0
        %4118 = vmatmul.mubr.bf16.gmra.mxu0 %v3581
        %v4119 = vpop.f32.mrf.mxu0
        %v4120 = vadd.f32 %v3959, %v4119
        %v4121 = vpop.f32.mrf.mxu0
        %v4122 = vpop.f32.mrf.mxu0
        %v4123 = vadd.f32 %v3962, %v4122
        %v4124 = vpop.f32.mrf.mxu0
        %4125 = vmatprep.mubr.bf16.mxu0 0
        %4126 = vmatmul.mubr.bf16.gmra.mxu0 %v3584
        %v4127 = vpop.f32.mrf.mxu0
        %v4128 = vadd.f32 %v3967, %v4127
        %v4129 = vpop.f32.mrf.mxu0
        %v4130 = vpop.f32.mrf.mxu0
        %v4131 = vadd.f32 %v3970, %v4130
        %v4132 = vpop.f32.mrf.mxu0
        %4133 = vmatprep.mubr.bf16.mxu0 0
        %4134 = vmatmul.mubr.bf16.gmra.mxu0 %v3587
        %v4135 = vpop.f32.mrf.mxu0
        %v4136 = vadd.f32 %v3975, %v4135
        %v4137 = vpop.f32.mrf.mxu0
        %v4138 = vpop.f32.mrf.mxu0
        %v4139 = vadd.f32 %v3978, %v4138
        %v4140 = vpop.f32.mrf.mxu0
        %4141 = vmatprep.mubr.bf16.mxu0 0
        %4142 = vmatmul.mubr.bf16.gmra.mxu0 %v3590
        %v4143 = vpop.f32.mrf.mxu0
        %v4144 = vadd.f32 %v3983, %v4143
        %v4145 = vpop.f32.mrf.mxu0
        %v4146 = vpop.f32.mrf.mxu0
        %v4147 = vadd.f32 %v3986, %v4146
        %v4148 = vpop.f32.mrf.mxu0
        %4149 = vmatprep.mubr.bf16.mxu0 0
        %4150 = vmatmul.mubr.bf16.gmra.mxu0 %v3593
        %v4151 = vpop.f32.mrf.mxu0
        %v4152 = vadd.f32 %v3991, %v4151
        %v4153 = vpop.f32.mrf.mxu0
        %v4154 = vpop.f32.mrf.mxu0
        %v4155 = vadd.f32 %v3994, %v4154
        %v4156 = vpop.f32.mrf.mxu0
        %4157 = vmatprep.mubr.bf16.mxu0 0
        %4158 = vmatmul.mubr.bf16.gmra.mxu0 %v3596
        %v4159 = vpop.f32.mrf.mxu0
        %v4160 = vadd.f32 %v3999, %v4159
        %v4161 = vpop.f32.mrf.mxu0
        %v4162 = vpop.f32.mrf.mxu0
        %v4163 = vadd.f32 %v4002, %v4162
        %v4164 = vpop.f32.mrf.mxu0
        %4165 = vmatprep.mubr.bf16.mxu0 0
        %4166 = vmatmul.mubr.bf16.gmra.mxu0 %v3599
        %v4167 = vpop.f32.mrf.mxu0
        %v4168 = vadd.f32 %v4007, %v4167
        %v4169 = vpop.f32.mrf.mxu0
        %v4170 = vpop.f32.mrf.mxu0
        %v4171 = vadd.f32 %v4010, %v4170
        %v4172 = vpop.f32.mrf.mxu0
        %4173 = vmatprep.mubr.bf16.mxu0 0
        %4174 = vmatmul.mubr.bf16.gmra.mxu0 %v3602
        %v4175 = vpop.f32.mrf.mxu0
        %v4176 = vadd.f32 %v4015, %v4175
        %v4177 = vpop.f32.mrf.mxu0
        %v4178 = vpop.f32.mrf.mxu0
        %v4179 = vadd.f32 %v4018, %v4178
        %v4180 = vpop.f32.mrf.mxu0
        %4181 = vdwg.mxu0
        %v4230 = vunpack.c.l.b16 %v3619
        %v4231 = vunpack.c.l.b16 %v3620
        %v4232 = vunpack.c.l.b16 %v3621
        %v4233 = vunpack.c.l.b16 %v3622
        %v4234 = vunpack.c.l.b16 %v3623
        %v4235 = vunpack.c.l.b16 %v3624
        %v4236 = vunpack.c.l.b16 %v3625
        %v4237 = vunpack.c.l.b16 %v3626
        %v4238 = vunpack.c.l.b16 %v3627
        %v4239 = vunpack.c.l.b16 %v3628
        %v4240 = vunpack.c.l.b16 %v3629
        %v4241 = vunpack.c.l.b16 %v3630
        %v4242 = vunpack.c.l.b16 %v3631
        %v4243 = vunpack.c.l.b16 %v3632
        %v4244 = vunpack.c.l.b16 %v3633
        %v4245 = vunpack.c.l.b16 %v3634
        %v4246 = vunpack.c.l.b16 %v3635
        %v4247 = vunpack.c.l.b16 %v3636
        %v4248 = vunpack.c.l.b16 %v3637
        %v4249 = vunpack.c.l.b16 %v3638
        %v4250 = vunpack.c.l.b16 %v3639
        %v4251 = vunpack.c.l.b16 %v3640
        %v4252 = vunpack.c.l.b16 %v3641
        %v4253 = vunpack.c.l.b16 %v3642
        %v4254 = vunpack.c.l.b16 %v3643
        %v4255 = vunpack.c.l.b16 %v3644
        %v4256 = vunpack.c.l.b16 %v3645
        %v4257 = vunpack.c.l.b16 %v3646
        %v4258 = vunpack.c.l.b16 %v3647
        %v4259 = vunpack.c.l.b16 %v3648
        %v4260 = vunpack.c.l.b16 %v3649
        %v4261 = vunpack.c.l.b16 %v3650
        %v4262 = vunpack.c.l.b16 %v3651
        %v4263 = vunpack.c.l.b16 %v3652
        %v4264 = vunpack.c.l.b16 %v3653
        %v4265 = vunpack.c.l.b16 %v3654
        %v4266 = vunpack.c.l.b16 %v3655
        %v4267 = vunpack.c.l.b16 %v3656
        %v4268 = vunpack.c.l.b16 %v3657
        %v4269 = vunpack.c.l.b16 %v3658
        %v4270 = vunpack.c.l.b16 %v3659
        %v4271 = vunpack.c.l.b16 %v3660
        %v4272 = vunpack.c.l.b16 %v3661
        %v4273 = vunpack.c.l.b16 %v3662
        %v4274 = vunpack.c.l.b16 %v3663
        %v4275 = vunpack.c.l.b16 %v3664
        %v4276 = vunpack.c.l.b16 %v3665
        %v4277 = vunpack.c.l.b16 %v3666
        %v4278 = vpack.c.b16 %v4231, %v4230
        %v4279 = vpack.c.b16 %v4233, %v4232
        %v4280 = vpack.c.b16 %v4235, %v4234
        %v4281 = vpack.c.b16 %v4237, %v4236
        %v4282 = vpack.c.b16 %v4239, %v4238
        %v4283 = vpack.c.b16 %v4241, %v4240
        %v4284 = vpack.c.b16 %v4243, %v4242
        %v4285 = vpack.c.b16 %v4245, %v4244
        %v4286 = vpack.c.b16 %v4247, %v4246
        %v4287 = vpack.c.b16 %v4249, %v4248
        %v4288 = vpack.c.b16 %v4251, %v4250
        %v4289 = vpack.c.b16 %v4253, %v4252
        %v4290 = vpack.c.b16 %v4255, %v4254
        %v4291 = vpack.c.b16 %v4257, %v4256
        %v4292 = vpack.c.b16 %v4259, %v4258
        %v4293 = vpack.c.b16 %v4261, %v4260
        %v4294 = vpack.c.b16 %v4263, %v4262
        %v4295 = vpack.c.b16 %v4265, %v4264
        %v4296 = vpack.c.b16 %v4267, %v4266
        %v4297 = vpack.c.b16 %v4269, %v4268
        %v4298 = vpack.c.b16 %v4271, %v4270
        %v4299 = vpack.c.b16 %v4273, %v4272
        %v4300 = vpack.c.b16 %v4275, %v4274
        %v4301 = vpack.c.b16 %v4277, %v4276
        %4326 = vmatprep.subr.bf16.mxu0 0
        %4327 = vmatpush1.bf16.msra.mxu0 %v4285
        %4328 = vmatprep.subr.bf16.mxu0 0
        %4329 = vmatpush1.bf16.msra.mxu0 %v4284
        %4330 = vmatprep.subr.bf16.mxu0 0
        %4331 = vmatpush1.bf16.msra.mxu0 %v4283
        %4332 = vmatprep.subr.bf16.mxu0 0
        %4333 = vmatpush1.bf16.msra.mxu0 %v4282
        %4334 = vmatprep.subr.bf16.mxu0 0
        %4335 = vmatpush1.bf16.msra.mxu0 %v4281
        %4336 = vmatprep.subr.bf16.mxu0 0
        %4337 = vmatpush1.bf16.msra.mxu0 %v4280
        %4338 = vmatprep.subr.bf16.mxu0 0
        %4339 = vmatpush1.bf16.msra.mxu0 %v4279
        %4340 = vmatprep.subr.bf16.mxu0 0
        %4341 = vmatpush1.bf16.msra.mxu0 %v4278
        %4342 = vmatprep.subr.bf16.mxu0 0
        %4343 = vmatpush2.bf16.msra.mxu0 %v4293
        %4344 = vmatprep.subr.bf16.mxu0 0
        %4345 = vmatpush2.bf16.msra.mxu0 %v4292
        %4346 = vmatprep.subr.bf16.mxu0 0
        %4347 = vmatpush2.bf16.msra.mxu0 %v4291
        %4348 = vmatprep.subr.bf16.mxu0 0
        %4349 = vmatpush2.bf16.msra.mxu0 %v4290
        %4350 = vmatprep.subr.bf16.mxu0 0
        %4351 = vmatpush2.bf16.msra.mxu0 %v4289
        %4352 = vmatprep.subr.bf16.mxu0 0
        %4353 = vmatpush2.bf16.msra.mxu0 %v4288
        %4354 = vmatprep.subr.bf16.mxu0 0
        %4355 = vmatpush2.bf16.msra.mxu0 %v4287
        %4356 = vmatprep.subr.bf16.mxu0 0
        %4357 = vmatpush2.bf16.msra.mxu0 %v4286
        %4358 = vmatprep.mubr.bf16.mxu0 %v1126
        %4359 = vmatmul.mubr.bf16.gmra.mxu0 0
        %v4360 = vpop.f32.mrf.mxu0
        %v4361 = vadd.f32 %v4056, %v4360
        %v4362 = vpop.f32.mrf.mxu0
        %v4363 = vpop.f32.mrf.mxu0
        %v4364 = vadd.f32 %v4059, %v4363
        %v4365 = vpop.f32.mrf.mxu0
        %4366 = vmatprep.mubr.bf16.mxu0 %v3326
        %4367 = vmatmul.mubr.bf16.gmra.mxu0 %v3283
        %v4368 = vpop.f32.mrf.mxu0
        %v4369 = vadd.f32 %v4064, %v4368
        %v4370 = vpop.f32.mrf.mxu0
        %v4371 = vpop.f32.mrf.mxu0
        %v4372 = vadd.f32 %v4067, %v4371
        %v4373 = vpop.f32.mrf.mxu0
        %4374 = vmatprep.mubr.bf16.mxu0 %v3338
        %4375 = vmatmul.mubr.bf16.gmra.mxu0 %v3284
        %v4376 = vpop.f32.mrf.mxu0
        %v4377 = vadd.f32 %v4072, %v4376
        %v4378 = vpop.f32.mrf.mxu0
        %v4379 = vpop.f32.mrf.mxu0
        %v4380 = vadd.f32 %v4075, %v4379
        %v4381 = vpop.f32.mrf.mxu0
        %4382 = vmatprep.mubr.bf16.mxu0 %v3350
        %4383 = vmatmul.mubr.bf16.gmra.mxu0 %v3285
        %v4384 = vpop.f32.mrf.mxu0
        %v4385 = vadd.f32 %v4080, %v4384
        %v4386 = vpop.f32.mrf.mxu0
        %v4387 = vpop.f32.mrf.mxu0
        %v4388 = vadd.f32 %v4083, %v4387
        %v4389 = vpop.f32.mrf.mxu0
        %4390 = vmatprep.mubr.bf16.mxu0 %v3362
        %4391 = vmatmul.mubr.bf16.gmra.mxu0 %v3286
        %v4392 = vpop.f32.mrf.mxu0
        %v4393 = vadd.f32 %v4088, %v4392
        %v4394 = vpop.f32.mrf.mxu0
        %v4395 = vpop.f32.mrf.mxu0
        %v4396 = vadd.f32 %v4091, %v4395
        %v4397 = vpop.f32.mrf.mxu0
        %4398 = vmatprep.mubr.bf16.mxu0 %v3374
        %4399 = vmatmul.mubr.bf16.gmra.mxu0 %v3287
        %v4400 = vpop.f32.mrf.mxu0
        %v4401 = vadd.f32 %v4096, %v4400
        %v4402 = vpop.f32.mrf.mxu0
        %v4403 = vpop.f32.mrf.mxu0
        %v4404 = vadd.f32 %v4099, %v4403
        %v4405 = vpop.f32.mrf.mxu0
        %4406 = vmatprep.mubr.bf16.mxu0 %v3386
        %4407 = vmatmul.mubr.bf16.gmra.mxu0 %v3288
        %v4408 = vpop.f32.mrf.mxu0
        %v4409 = vadd.f32 %v4104, %v4408
        %v4410 = vpop.f32.mrf.mxu0
        %v4411 = vpop.f32.mrf.mxu0
        %v4412 = vadd.f32 %v4107, %v4411
        %v4413 = vpop.f32.mrf.mxu0
        %4414 = vmatprep.mubr.bf16.mxu0 %v3398
        %4415 = vmatmul.mubr.bf16.gmra.mxu0 %v3289
        %v4416 = vpop.f32.mrf.mxu0
        %v4417 = vadd.f32 %v4112, %v4416
        %v4418 = vpop.f32.mrf.mxu0
        %v4419 = vpop.f32.mrf.mxu0
        %v4420 = vadd.f32 %v4115, %v4419
        %v4421 = vpop.f32.mrf.mxu0
        %4422 = vmatprep.mubr.bf16.mxu0 %v3410
        %4423 = vmatmul.mubr.bf16.gmra.mxu0 %v3290
        %v4424 = vpop.f32.mrf.mxu0
        %v4425 = vadd.f32 %v4120, %v4424
        %v4426 = vpop.f32.mrf.mxu0
        %v4427 = vpop.f32.mrf.mxu0
        %v4428 = vadd.f32 %v4123, %v4427
        %v4429 = vpop.f32.mrf.mxu0
        %4430 = vmatprep.mubr.bf16.mxu0 %v3422
        %4431 = vmatmul.mubr.bf16.gmra.mxu0 %v3291
        %v4432 = vpop.f32.mrf.mxu0
        %v4433 = vadd.f32 %v4128, %v4432
        %v4434 = vpop.f32.mrf.mxu0
        %v4435 = vpop.f32.mrf.mxu0
        %v4436 = vadd.f32 %v4131, %v4435
        %v4437 = vpop.f32.mrf.mxu0
        %4438 = vmatprep.mubr.bf16.mxu0 %v3434
        %4439 = vmatmul.mubr.bf16.gmra.mxu0 %v3292
        %v4440 = vpop.f32.mrf.mxu0
        %v4441 = vadd.f32 %v4136, %v4440
        %v4442 = vpop.f32.mrf.mxu0
        %v4443 = vpop.f32.mrf.mxu0
        %v4444 = vadd.f32 %v4139, %v4443
        %v4445 = vpop.f32.mrf.mxu0
        %4446 = vmatprep.mubr.bf16.mxu0 %v3446
        %4447 = vmatmul.mubr.bf16.gmra.mxu0 %v3293
        %v4448 = vpop.f32.mrf.mxu0
        %v4449 = vadd.f32 %v4144, %v4448
        %v4450 = vpop.f32.mrf.mxu0
        %v4451 = vpop.f32.mrf.mxu0
        %v4452 = vadd.f32 %v4147, %v4451
        %v4453 = vpop.f32.mrf.mxu0
        %4454 = vmatprep.mubr.bf16.mxu0 %v3458
        %4455 = vmatmul.mubr.bf16.gmra.mxu0 %v3294
        %v4456 = vpop.f32.mrf.mxu0
        %v4457 = vadd.f32 %v4152, %v4456
        %v4458 = vpop.f32.mrf.mxu0
        %v4459 = vpop.f32.mrf.mxu0
        %v4460 = vadd.f32 %v4155, %v4459
        %v4461 = vpop.f32.mrf.mxu0
        %4462 = vmatprep.mubr.bf16.mxu0 %v3470
        %4463 = vmatmul.mubr.bf16.gmra.mxu0 %v3295
        %v4464 = vpop.f32.mrf.mxu0
        %v4465 = vadd.f32 %v4160, %v4464
        %v4466 = vpop.f32.mrf.mxu0
        %v4467 = vpop.f32.mrf.mxu0
        %v4468 = vadd.f32 %v4163, %v4467
        %v4469 = vpop.f32.mrf.mxu0
        %4470 = vmatprep.mubr.bf16.mxu0 %v3482
        %4471 = vmatmul.mubr.bf16.gmra.mxu0 %v3296
        %v4472 = vpop.f32.mrf.mxu0
        %v4473 = vadd.f32 %v4168, %v4472
        %v4474 = vpop.f32.mrf.mxu0
        %v4475 = vpop.f32.mrf.mxu0
        %v4476 = vadd.f32 %v4171, %v4475
        %v4477 = vpop.f32.mrf.mxu0
        %4478 = vmatprep.mubr.bf16.mxu0 %v3494
        %4479 = vmatmul.mubr.bf16.gmra.mxu0 %v3297
        %v4480 = vpop.f32.mrf.mxu0
        %v4481 = vadd.f32 %v4176, %v4480
        %v4482 = vpop.f32.mrf.mxu0
        %v4483 = vpop.f32.mrf.mxu0
        %v4484 = vadd.f32 %v4179, %v4483
        %v4485 = vpop.f32.mrf.mxu0
        %4486 = vdwg.mxu0
        %4487 = vmatprep.subr.bf16.mxu0 0
        %4488 = vmatpush1.bf16.msra.mxu0 %v4301
        %4489 = vmatprep.subr.bf16.mxu0 0
        %4490 = vmatpush1.bf16.msra.mxu0 %v4300
        %4491 = vmatprep.subr.bf16.mxu0 0
        %4492 = vmatpush1.bf16.msra.mxu0 %v4299
        %4493 = vmatprep.subr.bf16.mxu0 0
        %4494 = vmatpush1.bf16.msra.mxu0 %v4298
        %4495 = vmatprep.subr.bf16.mxu0 0
        %4496 = vmatpush1.bf16.msra.mxu0 %v4297
        %4497 = vmatprep.subr.bf16.mxu0 0
        %4498 = vmatpush1.bf16.msra.mxu0 %v4296
        %4499 = vmatprep.subr.bf16.mxu0 0
        %4500 = vmatpush1.bf16.msra.mxu0 %v4295
        %4501 = vmatprep.subr.bf16.mxu0 0
        %4502 = vmatpush1.bf16.msra.mxu0 %v4294
        %4503 = vmatprep.subr.bf16.mxu0 0
        %4504 = vmatpush2.bf16.msra.mxu0 0
        %4505 = vmatprep.subr.bf16.mxu0 0
        %4506 = vmatpush2.bf16.msra.mxu0 0
        %4507 = vmatprep.subr.bf16.mxu0 0
        %4508 = vmatpush2.bf16.msra.mxu0 0
        %4509 = vmatprep.subr.bf16.mxu0 0
        %4510 = vmatpush2.bf16.msra.mxu0 0
        %4511 = vmatprep.subr.bf16.mxu0 0
        %4512 = vmatpush2.bf16.msra.mxu0 0
        %4513 = vmatprep.subr.bf16.mxu0 0
        %4514 = vmatpush2.bf16.msra.mxu0 0
        %4515 = vmatprep.subr.bf16.mxu0 0
        %4516 = vmatpush2.bf16.msra.mxu0 0
        %4517 = vmatprep.subr.bf16.mxu0 0
        %4518 = vmatpush2.bf16.msra.mxu0 0
        %4519 = vmatprep.mubr.bf16.mxu0 0
        %4520 = vmatmul.mubr.bf16.gmra.mxu0 %v1371
        %v4521 = vpop.f32.mrf.mxu0
        %v4522 = vadd.f32 %v4361, %v4521
        %v4523 = vpop.f32.mrf.mxu0
        %v4524 = vpop.f32.mrf.mxu0
        %v4525 = vadd.f32 %v4364, %v4524
        %v4526 = vpop.f32.mrf.mxu0
        %4527 = vmatprep.mubr.bf16.mxu0 0
        %4528 = vmatmul.mubr.bf16.gmra.mxu0 %v3557
        %v4529 = vpop.f32.mrf.mxu0
        %v4530 = vadd.f32 %v4369, %v4529
        %v4531 = vpop.f32.mrf.mxu0
        %v4532 = vpop.f32.mrf.mxu0
        %v4533 = vadd.f32 %v4372, %v4532
        %v4534 = vpop.f32.mrf.mxu0
        %4535 = vmatprep.mubr.bf16.mxu0 0
        %4536 = vmatmul.mubr.bf16.gmra.mxu0 %v3560
        %v4537 = vpop.f32.mrf.mxu0
        %v4538 = vadd.f32 %v4377, %v4537
        %v4539 = vpop.f32.mrf.mxu0
        %v4540 = vpop.f32.mrf.mxu0
        %v4541 = vadd.f32 %v4380, %v4540
        %v4542 = vpop.f32.mrf.mxu0
        %4543 = vmatprep.mubr.bf16.mxu0 0
        %4544 = vmatmul.mubr.bf16.gmra.mxu0 %v3563
        %v4545 = vpop.f32.mrf.mxu0
        %v4546 = vadd.f32 %v4385, %v4545
        %v4547 = vpop.f32.mrf.mxu0
        %v4548 = vpop.f32.mrf.mxu0
        %v4549 = vadd.f32 %v4388, %v4548
        %v4550 = vpop.f32.mrf.mxu0
        %4551 = vmatprep.mubr.bf16.mxu0 0
        %4552 = vmatmul.mubr.bf16.gmra.mxu0 %v3566
        %v4553 = vpop.f32.mrf.mxu0
        %v4554 = vadd.f32 %v4393, %v4553
        %v4555 = vpop.f32.mrf.mxu0
        %v4556 = vpop.f32.mrf.mxu0
        %v4557 = vadd.f32 %v4396, %v4556
        %v4558 = vpop.f32.mrf.mxu0
        %4559 = vmatprep.mubr.bf16.mxu0 0
        %4560 = vmatmul.mubr.bf16.gmra.mxu0 %v3569
        %v4561 = vpop.f32.mrf.mxu0
        %v4562 = vadd.f32 %v4401, %v4561
        %v4563 = vpop.f32.mrf.mxu0
        %v4564 = vpop.f32.mrf.mxu0
        %v4565 = vadd.f32 %v4404, %v4564
        %v4566 = vpop.f32.mrf.mxu0
        %4567 = vmatprep.mubr.bf16.mxu0 0
        %4568 = vmatmul.mubr.bf16.gmra.mxu0 %v3572
        %v4569 = vpop.f32.mrf.mxu0
        %v4570 = vadd.f32 %v4409, %v4569
        %v4571 = vpop.f32.mrf.mxu0
        %v4572 = vpop.f32.mrf.mxu0
        %v4573 = vadd.f32 %v4412, %v4572
        %v4574 = vpop.f32.mrf.mxu0
        %4575 = vmatprep.mubr.bf16.mxu0 0
        %4576 = vmatmul.mubr.bf16.gmra.mxu0 %v3575
        %v4577 = vpop.f32.mrf.mxu0
        %v4578 = vadd.f32 %v4417, %v4577
        %v4579 = vpop.f32.mrf.mxu0
        %v4580 = vpop.f32.mrf.mxu0
        %v4581 = vadd.f32 %v4420, %v4580
        %v4582 = vpop.f32.mrf.mxu0
        %4583 = vmatprep.mubr.bf16.mxu0 0
        %4584 = vmatmul.mubr.bf16.gmra.mxu0 %v3578
        %v4585 = vpop.f32.mrf.mxu0
        %v4586 = vadd.f32 %v4425, %v4585
        %v4587 = vpop.f32.mrf.mxu0
        %v4588 = vpop.f32.mrf.mxu0
        %v4589 = vadd.f32 %v4428, %v4588
        %v4590 = vpop.f32.mrf.mxu0
        %4591 = vmatprep.mubr.bf16.mxu0 0
        %4592 = vmatmul.mubr.bf16.gmra.mxu0 %v3581
        %v4593 = vpop.f32.mrf.mxu0
        %v4594 = vadd.f32 %v4433, %v4593
        %v4595 = vpop.f32.mrf.mxu0
        %v4596 = vpop.f32.mrf.mxu0
        %v4597 = vadd.f32 %v4436, %v4596
        %v4598 = vpop.f32.mrf.mxu0
        %4599 = vmatprep.mubr.bf16.mxu0 0
        %4600 = vmatmul.mubr.bf16.gmra.mxu0 %v3584
        %v4601 = vpop.f32.mrf.mxu0
        %v4602 = vadd.f32 %v4441, %v4601
        %v4603 = vpop.f32.mrf.mxu0
        %v4604 = vpop.f32.mrf.mxu0
        %v4605 = vadd.f32 %v4444, %v4604
        %v4606 = vpop.f32.mrf.mxu0
        %4607 = vmatprep.mubr.bf16.mxu0 0
        %4608 = vmatmul.mubr.bf16.gmra.mxu0 %v3587
        %v4609 = vpop.f32.mrf.mxu0
        %v4610 = vadd.f32 %v4449, %v4609
        %v4611 = vpop.f32.mrf.mxu0
        %v4612 = vpop.f32.mrf.mxu0
        %v4613 = vadd.f32 %v4452, %v4612
        %v4614 = vpop.f32.mrf.mxu0
        %4615 = vmatprep.mubr.bf16.mxu0 0
        %4616 = vmatmul.mubr.bf16.gmra.mxu0 %v3590
        %v4617 = vpop.f32.mrf.mxu0
        %v4618 = vadd.f32 %v4457, %v4617
        %v4619 = vpop.f32.mrf.mxu0
        %v4620 = vpop.f32.mrf.mxu0
        %v4621 = vadd.f32 %v4460, %v4620
        %v4622 = vpop.f32.mrf.mxu0
        %4623 = vmatprep.mubr.bf16.mxu0 0
        %4624 = vmatmul.mubr.bf16.gmra.mxu0 %v3593
        %v4625 = vpop.f32.mrf.mxu0
        %v4626 = vadd.f32 %v4465, %v4625
        %v4627 = vpop.f32.mrf.mxu0
        %v4628 = vpop.f32.mrf.mxu0
        %v4629 = vadd.f32 %v4468, %v4628
        %v4630 = vpop.f32.mrf.mxu0
        %4631 = vmatprep.mubr.bf16.mxu0 0
        %4632 = vmatmul.mubr.bf16.gmra.mxu0 %v3596
        %v4633 = vpop.f32.mrf.mxu0
        %v4634 = vadd.f32 %v4473, %v4633
        %v4635 = vpop.f32.mrf.mxu0
        %v4636 = vpop.f32.mrf.mxu0
        %v4637 = vadd.f32 %v4476, %v4636
        %v4638 = vpop.f32.mrf.mxu0
        %4639 = vmatprep.mubr.bf16.mxu0 0
        %4640 = vmatmul.mubr.bf16.gmra.mxu0 %v3599
        %v4641 = vpop.f32.mrf.mxu0
        %v4642 = vadd.f32 %v4481, %v4641
        %v4643 = vpop.f32.mrf.mxu0
        %v4644 = vpop.f32.mrf.mxu0
        %v4645 = vadd.f32 %v4484, %v4644
        %v4646 = vpop.f32.mrf.mxu0
        %4647 = vdwg.mxu0
        %s4648 = scalar_lea.vmem [#allocation7], 384
        %v4649 = vld [vmem:[%s4648] sm:$0xf]
        %v4650 = vld [vmem:[%s4648 + $0x4] sm:$0xf]
        %v4651 = vld [vmem:[%s4648 + $0x8] sm:$0xf]
        %v4652 = vld [vmem:[%s4648 + $0xc] sm:$0xf]
        %v4653 = vld [vmem:[%s4648 + $0x10] sm:$0xf]
        %v4654 = vld [vmem:[%s4648 + $0x14] sm:$0xf]
        %v4655 = vld [vmem:[%s4648 + $0x18] sm:$0xf]
        %v4656 = vld [vmem:[%s4648 + $0x1c] sm:$0xf]
        %v4657 = vld [vmem:[%s4648 + $0x20] sm:$0xf]
        %v4658 = vld [vmem:[%s4648 + $0x24] sm:$0xf]
        %v4659 = vld [vmem:[%s4648 + $0x28] sm:$0xf]
        %v4660 = vld [vmem:[%s4648 + $0x2c] sm:$0xf]
        %v4661 = vld [vmem:[%s4648 + $0x30] sm:$0xf]
        %v4662 = vld [vmem:[%s4648 + $0x34] sm:$0xf]
        %v4663 = vld [vmem:[%s4648 + $0x38] sm:$0xf]
        %v4664 = vld [vmem:[%s4648 + $0x3c] sm:$0xf]
        %v4665 = vld [vmem:[%s4648 + $0x40] sm:$0xf]
        %v4666 = vld [vmem:[%s4648 + $0x44] sm:$0xf]
        %v4667 = vld [vmem:[%s4648 + $0x48] sm:$0xf]
        %v4668 = vld [vmem:[%s4648 + $0x4c] sm:$0xf]
        %v4669 = vld [vmem:[%s4648 + $0x50] sm:$0xf]
        %v4670 = vld [vmem:[%s4648 + $0x54] sm:$0xf]
        %v4671 = vld [vmem:[%s4648 + $0x58] sm:$0xf]
        %v4672 = vld [vmem:[%s4648 + $0x5c] sm:$0xf]
        %v4673 = vld [vmem:[%s4648 + $0x60] sm:$0xf]
        %v4674 = vld [vmem:[%s4648 + $0x64] sm:$0xf]
        %v4675 = vld [vmem:[%s4648 + $0x68] sm:$0xf]
        %v4676 = vld [vmem:[%s4648 + $0x6c] sm:$0xf]
        %v4677 = vld [vmem:[%s4648 + $0x70] sm:$0xf]
        %v4678 = vld [vmem:[%s4648 + $0x74] sm:$0xf]
        %v4679 = vld [vmem:[%s4648 + $0x78] sm:$0xf]
        %v4680 = vld [vmem:[%s4648 + $0x7c] sm:$0xf]
        %v4681 = vld [vmem:[%s4648 + $0x80] sm:$0xf]
        %v4682 = vld [vmem:[%s4648 + $0x84] sm:$0xf]
        %v4683 = vld [vmem:[%s4648 + $0x88] sm:$0xf]
        %v4684 = vld [vmem:[%s4648 + $0x8c] sm:$0xf]
        %v4685 = vld [vmem:[%s4648 + $0x90] sm:$0xf]
        %v4686 = vld [vmem:[%s4648 + $0x94] sm:$0xf]
        %v4687 = vld [vmem:[%s4648 + $0x98] sm:$0xf]
        %v4688 = vld [vmem:[%s4648 + $0x9c] sm:$0xf]
        %v4689 = vld [vmem:[%s4648 + $0xa0] sm:$0xf]
        %v4690 = vld [vmem:[%s4648 + $0xa4] sm:$0xf]
        %v4691 = vld [vmem:[%s4648 + $0xa8] sm:$0xf]
        %v4692 = vld [vmem:[%s4648 + $0xac] sm:$0xf]
        %v4693 = vld [vmem:[%s4648 + $0xb0] sm:$0xf]
        %v4694 = vld [vmem:[%s4648 + $0xb4] sm:$0xf]
        %v4695 = vld [vmem:[%s4648 + $0xb8] sm:$0xf]
        %v4696 = vld [vmem:[%s4648 + $0xbc] sm:$0xf]
        %v4745 = vunpack.c.l.b16 %v4649
        %v4746 = vunpack.c.l.b16 %v4650
        %v4747 = vunpack.c.l.b16 %v4651
        %v4748 = vunpack.c.l.b16 %v4652
        %v4749 = vunpack.c.l.b16 %v4653
        %v4750 = vunpack.c.l.b16 %v4654
        %v4751 = vunpack.c.l.b16 %v4655
        %v4752 = vunpack.c.l.b16 %v4656
        %v4753 = vunpack.c.l.b16 %v4657
        %v4754 = vunpack.c.l.b16 %v4658
        %v4755 = vunpack.c.l.b16 %v4659
        %v4756 = vunpack.c.l.b16 %v4660
        %v4757 = vunpack.c.l.b16 %v4661
        %v4758 = vunpack.c.l.b16 %v4662
        %v4759 = vunpack.c.l.b16 %v4663
        %v4760 = vunpack.c.l.b16 %v4664
        %v4761 = vunpack.c.l.b16 %v4665
        %v4762 = vunpack.c.l.b16 %v4666
        %v4763 = vunpack.c.l.b16 %v4667
        %v4764 = vunpack.c.l.b16 %v4668
        %v4765 = vunpack.c.l.b16 %v4669
        %v4766 = vunpack.c.l.b16 %v4670
        %v4767 = vunpack.c.l.b16 %v4671
        %v4768 = vunpack.c.l.b16 %v4672
        %v4769 = vunpack.c.l.b16 %v4673
        %v4770 = vunpack.c.l.b16 %v4674
        %v4771 = vunpack.c.l.b16 %v4675
        %v4772 = vunpack.c.l.b16 %v4676
        %v4773 = vunpack.c.l.b16 %v4677
        %v4774 = vunpack.c.l.b16 %v4678
        %v4775 = vunpack.c.l.b16 %v4679
        %v4776 = vunpack.c.l.b16 %v4680
        %v4777 = vunpack.c.l.b16 %v4681
        %v4778 = vunpack.c.l.b16 %v4682
        %v4779 = vunpack.c.l.b16 %v4683
        %v4780 = vunpack.c.l.b16 %v4684
        %v4781 = vunpack.c.l.b16 %v4685
        %v4782 = vunpack.c.l.b16 %v4686
        %v4783 = vunpack.c.l.b16 %v4687
        %v4784 = vunpack.c.l.b16 %v4688
        %v4785 = vunpack.c.l.b16 %v4689
        %v4786 = vunpack.c.l.b16 %v4690
        %v4787 = vunpack.c.l.b16 %v4691
        %v4788 = vunpack.c.l.b16 %v4692
        %v4789 = vunpack.c.l.b16 %v4693
        %v4790 = vunpack.c.l.b16 %v4694
        %v4791 = vunpack.c.l.b16 %v4695
        %v4792 = vunpack.c.l.b16 %v4696
        %v4793 = vpack.c.b16 %v4746, %v4745
        %v4794 = vpack.c.b16 %v4748, %v4747
        %v4795 = vpack.c.b16 %v4750, %v4749
        %v4796 = vpack.c.b16 %v4752, %v4751
        %v4797 = vpack.c.b16 %v4754, %v4753
        %v4798 = vpack.c.b16 %v4756, %v4755
        %v4799 = vpack.c.b16 %v4758, %v4757
        %v4800 = vpack.c.b16 %v4760, %v4759
        %v4801 = vpack.c.b16 %v4762, %v4761
        %v4802 = vpack.c.b16 %v4764, %v4763
        %v4803 = vpack.c.b16 %v4766, %v4765
        %v4804 = vpack.c.b16 %v4768, %v4767
        %v4805 = vpack.c.b16 %v4770, %v4769
        %v4806 = vpack.c.b16 %v4772, %v4771
        %v4807 = vpack.c.b16 %v4774, %v4773
        %v4808 = vpack.c.b16 %v4776, %v4775
        %v4809 = vpack.c.b16 %v4778, %v4777
        %v4810 = vpack.c.b16 %v4780, %v4779
        %v4811 = vpack.c.b16 %v4782, %v4781
        %v4812 = vpack.c.b16 %v4784, %v4783
        %v4813 = vpack.c.b16 %v4786, %v4785
        %v4814 = vpack.c.b16 %v4788, %v4787
        %v4815 = vpack.c.b16 %v4790, %v4789
        %v4816 = vpack.c.b16 %v4792, %v4791
        %4841 = vmatprep.subr.bf16.mxu0 0
        %4842 = vmatpush1.bf16.msra.mxu0 %v4800
        %4843 = vmatprep.subr.bf16.mxu0 0
        %4844 = vmatpush1.bf16.msra.mxu0 %v4799
        %4845 = vmatprep.subr.bf16.mxu0 0
        %4846 = vmatpush1.bf16.msra.mxu0 %v4798
        %4847 = vmatprep.subr.bf16.mxu0 0
        %4848 = vmatpush1.bf16.msra.mxu0 %v4797
        %4849 = vmatprep.subr.bf16.mxu0 0
        %4850 = vmatpush1.bf16.msra.mxu0 %v4796
        %4851 = vmatprep.subr.bf16.mxu0 0
        %4852 = vmatpush1.bf16.msra.mxu0 %v4795
        %4853 = vmatprep.subr.bf16.mxu0 0
        %4854 = vmatpush1.bf16.msra.mxu0 %v4794
        %4855 = vmatprep.subr.bf16.mxu0 0
        %4856 = vmatpush1.bf16.msra.mxu0 %v4793
        %4857 = vmatprep.subr.bf16.mxu0 0
        %4858 = vmatpush2.bf16.msra.mxu0 %v4808
        %4859 = vmatprep.subr.bf16.mxu0 0
        %4860 = vmatpush2.bf16.msra.mxu0 %v4807
        %4861 = vmatprep.subr.bf16.mxu0 0
        %4862 = vmatpush2.bf16.msra.mxu0 %v4806
        %4863 = vmatprep.subr.bf16.mxu0 0
        %4864 = vmatpush2.bf16.msra.mxu0 %v4805
        %4865 = vmatprep.subr.bf16.mxu0 0
        %4866 = vmatpush2.bf16.msra.mxu0 %v4804
        %4867 = vmatprep.subr.bf16.mxu0 0
        %4868 = vmatpush2.bf16.msra.mxu0 %v4803
        %4869 = vmatprep.subr.bf16.mxu0 0
        %4870 = vmatpush2.bf16.msra.mxu0 %v4802
        %4871 = vmatprep.subr.bf16.mxu0 0
        %4872 = vmatpush2.bf16.msra.mxu0 %v4801
        %4873 = vmatprep.mubr.bf16.mxu0 %v3338
        %4874 = vmatmul.mubr.bf16.gmra.mxu0 %v3284
        %v4875 = vpop.f32.mrf.mxu0
        %v4876 = vadd.f32 0.0, %v4875
        %v4877 = vpop.f32.mrf.mxu0
        %v4878 = vpop.f32.mrf.mxu0
        %v4879 = vadd.f32 0.0, %v4878
        %v4880 = vpop.f32.mrf.mxu0
        %4881 = vmatprep.mubr.bf16.mxu0 %v3350
        %4882 = vmatmul.mubr.bf16.gmra.mxu0 %v3285
        %v4883 = vpop.f32.mrf.mxu0
        %v4884 = vadd.f32 0.0, %v4883
        %v4885 = vpop.f32.mrf.mxu0
        %v4886 = vpop.f32.mrf.mxu0
        %v4887 = vadd.f32 0.0, %v4886
        %v4888 = vpop.f32.mrf.mxu0
        %4889 = vmatprep.mubr.bf16.mxu0 %v3362
        %4890 = vmatmul.mubr.bf16.gmra.mxu0 %v3286
        %v4891 = vpop.f32.mrf.mxu0
        %v4892 = vadd.f32 0.0, %v4891
        %v4893 = vpop.f32.mrf.mxu0
        %v4894 = vpop.f32.mrf.mxu0
        %v4895 = vadd.f32 0.0, %v4894
        %v4896 = vpop.f32.mrf.mxu0
        %4897 = vmatprep.mubr.bf16.mxu0 %v3374
        %4898 = vmatmul.mubr.bf16.gmra.mxu0 %v3287
        %v4899 = vpop.f32.mrf.mxu0
        %v4900 = vadd.f32 0.0, %v4899
        %v4901 = vpop.f32.mrf.mxu0
        %v4902 = vpop.f32.mrf.mxu0
        %v4903 = vadd.f32 0.0, %v4902
        %v4904 = vpop.f32.mrf.mxu0
        %4905 = vmatprep.mubr.bf16.mxu0 %v3386
        %4906 = vmatmul.mubr.bf16.gmra.mxu0 %v3288
        %v4907 = vpop.f32.mrf.mxu0
        %v4908 = vadd.f32 0.0, %v4907
        %v4909 = vpop.f32.mrf.mxu0
        %v4910 = vpop.f32.mrf.mxu0
        %v4911 = vadd.f32 0.0, %v4910
        %v4912 = vpop.f32.mrf.mxu0
        %4913 = vmatprep.mubr.bf16.mxu0 %v3398
        %4914 = vmatmul.mubr.bf16.gmra.mxu0 %v3289
        %v4915 = vpop.f32.mrf.mxu0
        %v4916 = vadd.f32 0.0, %v4915
        %v4917 = vpop.f32.mrf.mxu0
        %v4918 = vpop.f32.mrf.mxu0
        %v4919 = vadd.f32 0.0, %v4918
        %v4920 = vpop.f32.mrf.mxu0
        %4921 = vmatprep.mubr.bf16.mxu0 %v3410
        %4922 = vmatmul.mubr.bf16.gmra.mxu0 %v3290
        %v4923 = vpop.f32.mrf.mxu0
        %v4924 = vadd.f32 0.0, %v4923
        %v4925 = vpop.f32.mrf.mxu0
        %v4926 = vpop.f32.mrf.mxu0
        %v4927 = vadd.f32 0.0, %v4926
        %v4928 = vpop.f32.mrf.mxu0
        %4929 = vmatprep.mubr.bf16.mxu0 %v3422
        %4930 = vmatmul.mubr.bf16.gmra.mxu0 %v3291
        %v4931 = vpop.f32.mrf.mxu0
        %v4932 = vadd.f32 0.0, %v4931
        %v4933 = vpop.f32.mrf.mxu0
        %v4934 = vpop.f32.mrf.mxu0
        %v4935 = vadd.f32 0.0, %v4934
        %v4936 = vpop.f32.mrf.mxu0
        %4937 = vmatprep.mubr.bf16.mxu0 %v3434
        %4938 = vmatmul.mubr.bf16.gmra.mxu0 %v3292
        %v4939 = vpop.f32.mrf.mxu0
        %v4940 = vadd.f32 0.0, %v4939
        %v4941 = vpop.f32.mrf.mxu0
        %v4942 = vpop.f32.mrf.mxu0
        %v4943 = vadd.f32 0.0, %v4942
        %v4944 = vpop.f32.mrf.mxu0
        %4945 = vmatprep.mubr.bf16.mxu0 %v3446
        %4946 = vmatmul.mubr.bf16.gmra.mxu0 %v3293
        %v4947 = vpop.f32.mrf.mxu0
        %v4948 = vadd.f32 0.0, %v4947
        %v4949 = vpop.f32.mrf.mxu0
        %v4950 = vpop.f32.mrf.mxu0
        %v4951 = vadd.f32 0.0, %v4950
        %v4952 = vpop.f32.mrf.mxu0
        %4953 = vmatprep.mubr.bf16.mxu0 %v3458
        %4954 = vmatmul.mubr.bf16.gmra.mxu0 %v3294
        %v4955 = vpop.f32.mrf.mxu0
        %v4956 = vadd.f32 0.0, %v4955
        %v4957 = vpop.f32.mrf.mxu0
        %v4958 = vpop.f32.mrf.mxu0
        %v4959 = vadd.f32 0.0, %v4958
        %v4960 = vpop.f32.mrf.mxu0
        %4961 = vmatprep.mubr.bf16.mxu0 %v3470
        %4962 = vmatmul.mubr.bf16.gmra.mxu0 %v3295
        %v4963 = vpop.f32.mrf.mxu0
        %v4964 = vadd.f32 0.0, %v4963
        %v4965 = vpop.f32.mrf.mxu0
        %v4966 = vpop.f32.mrf.mxu0
        %v4967 = vadd.f32 0.0, %v4966
        %v4968 = vpop.f32.mrf.mxu0
        %4969 = vmatprep.mubr.bf16.mxu0 %v3482
        %4970 = vmatmul.mubr.bf16.gmra.mxu0 %v3296
        %v4971 = vpop.f32.mrf.mxu0
        %v4972 = vadd.f32 0.0, %v4971
        %v4973 = vpop.f32.mrf.mxu0
        %v4974 = vpop.f32.mrf.mxu0
        %v4975 = vadd.f32 0.0, %v4974
        %v4976 = vpop.f32.mrf.mxu0
        %4977 = vmatprep.mubr.bf16.mxu0 %v3494
        %4978 = vmatmul.mubr.bf16.gmra.mxu0 %v3297
        %v4979 = vpop.f32.mrf.mxu0
        %v4980 = vadd.f32 0.0, %v4979
        %v4981 = vpop.f32.mrf.mxu0
        %v4982 = vpop.f32.mrf.mxu0
        %v4983 = vadd.f32 0.0, %v4982
        %v4984 = vpop.f32.mrf.mxu0
        %4985 = vmatprep.mubr.bf16.mxu0 %v3506
        %4986 = vmatmul.mubr.bf16.gmra.mxu0 %v3298
        %v4987 = vpop.f32.mrf.mxu0
        %v4988 = vadd.f32 0.0, %v4987
        %v4989 = vpop.f32.mrf.mxu0
        %v4990 = vpop.f32.mrf.mxu0
        %v4991 = vadd.f32 0.0, %v4990
        %v4992 = vpop.f32.mrf.mxu0
        %4993 = vmatprep.mubr.bf16.mxu0 %v1126
        %4994 = vmatmul.mubr.bf16.gmra.mxu0 0
        %v4995 = vpop.f32.mrf.mxu0
        %v4996 = vadd.f32 0.0, %v4995
        %v4997 = vpop.f32.mrf.mxu0
        %v4998 = vpop.f32.mrf.mxu0
        %v4999 = vadd.f32 0.0, %v4998
        %v5000 = vpop.f32.mrf.mxu0
        %5001 = vdwg.mxu0
        %5002 = vmatprep.subr.bf16.mxu0 0
        %5003 = vmatpush1.bf16.msra.mxu0 %v4816
        %5004 = vmatprep.subr.bf16.mxu0 0
        %5005 = vmatpush1.bf16.msra.mxu0 %v4815
        %5006 = vmatprep.subr.bf16.mxu0 0
        %5007 = vmatpush1.bf16.msra.mxu0 %v4814
        %5008 = vmatprep.subr.bf16.mxu0 0
        %5009 = vmatpush1.bf16.msra.mxu0 %v4813
        %5010 = vmatprep.subr.bf16.mxu0 0
        %5011 = vmatpush1.bf16.msra.mxu0 %v4812
        %5012 = vmatprep.subr.bf16.mxu0 0
        %5013 = vmatpush1.bf16.msra.mxu0 %v4811
        %5014 = vmatprep.subr.bf16.mxu0 0
        %5015 = vmatpush1.bf16.msra.mxu0 %v4810
        %5016 = vmatprep.subr.bf16.mxu0 0
        %5017 = vmatpush1.bf16.msra.mxu0 %v4809
        %5018 = vmatprep.subr.bf16.mxu0 0
        %5019 = vmatpush2.bf16.msra.mxu0 0
        %5020 = vmatprep.subr.bf16.mxu0 0
        %5021 = vmatpush2.bf16.msra.mxu0 0
        %5022 = vmatprep.subr.bf16.mxu0 0
        %5023 = vmatpush2.bf16.msra.mxu0 0
        %5024 = vmatprep.subr.bf16.mxu0 0
        %5025 = vmatpush2.bf16.msra.mxu0 0
        %5026 = vmatprep.subr.bf16.mxu0 0
        %5027 = vmatpush2.bf16.msra.mxu0 0
        %5028 = vmatprep.subr.bf16.mxu0 0
        %5029 = vmatpush2.bf16.msra.mxu0 0
        %5030 = vmatprep.subr.bf16.mxu0 0
        %5031 = vmatpush2.bf16.msra.mxu0 0
        %5032 = vmatprep.subr.bf16.mxu0 0
        %5033 = vmatpush2.bf16.msra.mxu0 0
        %5034 = vmatprep.mubr.bf16.mxu0 0
        %5035 = vmatmul.mubr.bf16.gmra.mxu0 %v3560
        %v5036 = vpop.f32.mrf.mxu0
        %v5037 = vadd.f32 %v4876, %v5036
        %v5038 = vpop.f32.mrf.mxu0
        %v5039 = vpop.f32.mrf.mxu0
        %v5040 = vadd.f32 %v4879, %v5039
        %v5041 = vpop.f32.mrf.mxu0
        %5042 = vmatprep.mubr.bf16.mxu0 0
        %5043 = vmatmul.mubr.bf16.gmra.mxu0 %v3563
        %v5044 = vpop.f32.mrf.mxu0
        %v5045 = vadd.f32 %v4884, %v5044
        %v5046 = vpop.f32.mrf.mxu0
        %v5047 = vpop.f32.mrf.mxu0
        %v5048 = vadd.f32 %v4887, %v5047
        %v5049 = vpop.f32.mrf.mxu0
        %5050 = vmatprep.mubr.bf16.mxu0 0
        %5051 = vmatmul.mubr.bf16.gmra.mxu0 %v3566
        %v5052 = vpop.f32.mrf.mxu0
        %v5053 = vadd.f32 %v4892, %v5052
        %v5054 = vpop.f32.mrf.mxu0
        %v5055 = vpop.f32.mrf.mxu0
        %v5056 = vadd.f32 %v4895, %v5055
        %v5057 = vpop.f32.mrf.mxu0
        %5058 = vmatprep.mubr.bf16.mxu0 0
        %5059 = vmatmul.mubr.bf16.gmra.mxu0 %v3569
        %v5060 = vpop.f32.mrf.mxu0
        %v5061 = vadd.f32 %v4900, %v5060
        %v5062 = vpop.f32.mrf.mxu0
        %v5063 = vpop.f32.mrf.mxu0
        %v5064 = vadd.f32 %v4903, %v5063
        %v5065 = vpop.f32.mrf.mxu0
        %5066 = vmatprep.mubr.bf16.mxu0 0
        %5067 = vmatmul.mubr.bf16.gmra.mxu0 %v3572
        %v5068 = vpop.f32.mrf.mxu0
        %v5069 = vadd.f32 %v4908, %v5068
        %v5070 = vpop.f32.mrf.mxu0
        %v5071 = vpop.f32.mrf.mxu0
        %v5072 = vadd.f32 %v4911, %v5071
        %v5073 = vpop.f32.mrf.mxu0
        %5074 = vmatprep.mubr.bf16.mxu0 0
        %5075 = vmatmul.mubr.bf16.gmra.mxu0 %v3575
        %v5076 = vpop.f32.mrf.mxu0
        %v5077 = vadd.f32 %v4916, %v5076
        %v5078 = vpop.f32.mrf.mxu0
        %v5079 = vpop.f32.mrf.mxu0
        %v5080 = vadd.f32 %v4919, %v5079
        %v5081 = vpop.f32.mrf.mxu0
        %5082 = vmatprep.mubr.bf16.mxu0 0
        %5083 = vmatmul.mubr.bf16.gmra.mxu0 %v3578
        %v5084 = vpop.f32.mrf.mxu0
        %v5085 = vadd.f32 %v4924, %v5084
        %v5086 = vpop.f32.mrf.mxu0
        %v5087 = vpop.f32.mrf.mxu0
        %v5088 = vadd.f32 %v4927, %v5087
        %v5089 = vpop.f32.mrf.mxu0
        %5090 = vmatprep.mubr.bf16.mxu0 0
        %5091 = vmatmul.mubr.bf16.gmra.mxu0 %v3581
        %v5092 = vpop.f32.mrf.mxu0
        %v5093 = vadd.f32 %v4932, %v5092
        %v5094 = vpop.f32.mrf.mxu0
        %v5095 = vpop.f32.mrf.mxu0
        %v5096 = vadd.f32 %v4935, %v5095
        %v5097 = vpop.f32.mrf.mxu0
        %5098 = vmatprep.mubr.bf16.mxu0 0
        %5099 = vmatmul.mubr.bf16.gmra.mxu0 %v3584
        %v5100 = vpop.f32.mrf.mxu0
        %v5101 = vadd.f32 %v4940, %v5100
        %v5102 = vpop.f32.mrf.mxu0
        %v5103 = vpop.f32.mrf.mxu0
        %v5104 = vadd.f32 %v4943, %v5103
        %v5105 = vpop.f32.mrf.mxu0
        %5106 = vmatprep.mubr.bf16.mxu0 0
        %5107 = vmatmul.mubr.bf16.gmra.mxu0 %v3587
        %v5108 = vpop.f32.mrf.mxu0
        %v5109 = vadd.f32 %v4948, %v5108
        %v5110 = vpop.f32.mrf.mxu0
        %v5111 = vpop.f32.mrf.mxu0
        %v5112 = vadd.f32 %v4951, %v5111
        %v5113 = vpop.f32.mrf.mxu0
        %5114 = vmatprep.mubr.bf16.mxu0 0
        %5115 = vmatmul.mubr.bf16.gmra.mxu0 %v3590
        %v5116 = vpop.f32.mrf.mxu0
        %v5117 = vadd.f32 %v4956, %v5116
        %v5118 = vpop.f32.mrf.mxu0
        %v5119 = vpop.f32.mrf.mxu0
        %v5120 = vadd.f32 %v4959, %v5119
        %v5121 = vpop.f32.mrf.mxu0
        %5122 = vmatprep.mubr.bf16.mxu0 0
        %5123 = vmatmul.mubr.bf16.gmra.mxu0 %v3593
        %v5124 = vpop.f32.mrf.mxu0
        %v5125 = vadd.f32 %v4964, %v5124
        %v5126 = vpop.f32.mrf.mxu0
        %v5127 = vpop.f32.mrf.mxu0
        %v5128 = vadd.f32 %v4967, %v5127
        %v5129 = vpop.f32.mrf.mxu0
        %5130 = vmatprep.mubr.bf16.mxu0 0
        %5131 = vmatmul.mubr.bf16.gmra.mxu0 %v3596
        %v5132 = vpop.f32.mrf.mxu0
        %v5133 = vadd.f32 %v4972, %v5132
        %v5134 = vpop.f32.mrf.mxu0
        %v5135 = vpop.f32.mrf.mxu0
        %v5136 = vadd.f32 %v4975, %v5135
        %v5137 = vpop.f32.mrf.mxu0
        %5138 = vmatprep.mubr.bf16.mxu0 0
        %5139 = vmatmul.mubr.bf16.gmra.mxu0 %v3599
        %v5140 = vpop.f32.mrf.mxu0
        %v5141 = vadd.f32 %v4980, %v5140
        %v5142 = vpop.f32.mrf.mxu0
        %v5143 = vpop.f32.mrf.mxu0
        %v5144 = vadd.f32 %v4983, %v5143
        %v5145 = vpop.f32.mrf.mxu0
        %5146 = vmatprep.mubr.bf16.mxu0 0
        %5147 = vmatmul.mubr.bf16.gmra.mxu0 %v3602
        %v5148 = vpop.f32.mrf.mxu0
        %v5149 = vadd.f32 %v4988, %v5148
        %v5150 = vpop.f32.mrf.mxu0
        %v5151 = vpop.f32.mrf.mxu0
        %v5152 = vadd.f32 %v4991, %v5151
        %v5153 = vpop.f32.mrf.mxu0
        %5154 = vmatprep.mubr.bf16.mxu0 0
        %5155 = vmatmul.mubr.bf16.gmra.mxu0 %v1371
        %v5156 = vpop.f32.mrf.mxu0
        %v5157 = vadd.f32 %v4996, %v5156
        %v5158 = vpop.f32.mrf.mxu0
        %v5159 = vpop.f32.mrf.mxu0
        %v5160 = vadd.f32 %v4999, %v5159
        %v5161 = vpop.f32.mrf.mxu0
        %5162 = vdwg.mxu0
        %v5163 = vadd.f32 %v4522, %v5037
        %v5164 = vadd.f32 %v4525, %v5040
        %v5165 = vadd.f32 %v4530, %v5045
        %v5166 = vadd.f32 %v4533, %v5048
        %v5167 = vadd.f32 %v4538, %v5053
        %v5168 = vadd.f32 %v4541, %v5056
        %v5169 = vadd.f32 %v4546, %v5061
        %v5170 = vadd.f32 %v4549, %v5064
        %v5171 = vadd.f32 %v4554, %v5069
        %v5172 = vadd.f32 %v4557, %v5072
        %v5173 = vadd.f32 %v4562, %v5077
        %v5174 = vadd.f32 %v4565, %v5080
        %v5175 = vadd.f32 %v4570, %v5085
        %v5176 = vadd.f32 %v4573, %v5088
        %v5177 = vadd.f32 %v4578, %v5093
        %v5178 = vadd.f32 %v4581, %v5096
        %v5179 = vadd.f32 %v4586, %v5101
        %v5180 = vadd.f32 %v4589, %v5104
        %v5181 = vadd.f32 %v4594, %v5109
        %v5182 = vadd.f32 %v4597, %v5112
        %v5183 = vadd.f32 %v4602, %v5117
        %v5184 = vadd.f32 %v4605, %v5120
        %v5185 = vadd.f32 %v4610, %v5125
        %v5186 = vadd.f32 %v4613, %v5128
        %v5187 = vadd.f32 %v4618, %v5133
        %v5188 = vadd.f32 %v4621, %v5136
        %v5189 = vadd.f32 %v4626, %v5141
        %v5190 = vadd.f32 %v4629, %v5144
        %v5191 = vadd.f32 %v4634, %v5149
        %v5192 = vadd.f32 %v4637, %v5152
        %v5193 = vadd.f32 %v4642, %v5157
        %v5194 = vadd.f32 %v4645, %v5160
        %v5195 = vld [vmem:[%s394] sm:$0xff]
        %v5196 = vld [vmem:[%s394 + $0x8] sm:$0xff]
        %v5197 = vld [vmem:[%s394 + $0x10] sm:$0xff]
        %v5198 = vld [vmem:[%s394 + $0x18] sm:$0xff]
        %v5199 = vld [vmem:[%s394 + $0x20] sm:$0xff]
        %v5200 = vld [vmem:[%s394 + $0x28] sm:$0xff]
        %v5201 = vld [vmem:[%s394 + $0x30] sm:$0xff]
        %v5202 = vld [vmem:[%s394 + $0x38] sm:$0xff]
        %v5203 = vld [vmem:[%s394 + $0x40] sm:$0xff]
        %v5204 = vld [vmem:[%s394 + $0x48] sm:$0xff]
        %v5205 = vld [vmem:[%s394 + $0x50] sm:$0xff]
        %v5206 = vld [vmem:[%s394 + $0x58] sm:$0xff]
        %v5207 = vld [vmem:[%s394 + $0x60] sm:$0xff]
        %v5208 = vld [vmem:[%s394 + $0x68] sm:$0xff]
        %v5209 = vld [vmem:[%s394 + $0x70] sm:$0xff]
        %v5210 = vld [vmem:[%s394 + $0x78] sm:$0xff]
        %v5211 = vld [vmem:[%s394 + $0x80] sm:$0xff]
        %v5212 = vld [vmem:[%s394 + $0x88] sm:$0xff]
        %v5213 = vld [vmem:[%s394 + $0x90] sm:$0xff]
        %v5214 = vld [vmem:[%s394 + $0x98] sm:$0xff]
        %v5215 = vld [vmem:[%s394 + $0xa0] sm:$0xff]
        %v5216 = vld [vmem:[%s394 + $0xa8] sm:$0xff]
        %v5217 = vld [vmem:[%s394 + $0xb0] sm:$0xff]
        %v5218 = vld [vmem:[%s394 + $0xb8] sm:$0xff]
        %v5219 = vld [vmem:[%s394 + $0xc0] sm:$0xff]
        %v5220 = vld [vmem:[%s394 + $0xc8] sm:$0xff]
        %v5221 = vld [vmem:[%s394 + $0xd0] sm:$0xff]
        %v5222 = vld [vmem:[%s394 + $0xd8] sm:$0xff]
        %v5223 = vld [vmem:[%s394 + $0xe0] sm:$0xff]
        %v5224 = vld [vmem:[%s394 + $0xe8] sm:$0xff]
        %v5225 = vld [vmem:[%s394 + $0xf0] sm:$0xff]
        %v5226 = vld [vmem:[%s394 + $0xf8] sm:$0xff]
        %v5227 = vld [vmem:[%s8] sm:$0x1]
        %v5229 = vlaneseq
        %v5230 = vshrl.u32 %v5229, 7
        %v5231 = vsub.s32 0, %v5230
        %v5232 = vrot.slane %v5227, %v5231
        %v5234 = vadd.f32 %v5163, %v5232
        %v5235 = vadd.f32 %v5164, %v5232
        %v5236 = vadd.f32 %v5165, %v5232
        %v5237 = vadd.f32 %v5166, %v5232
        %v5238 = vadd.f32 %v5167, %v5232
        %v5239 = vadd.f32 %v5168, %v5232
        %v5240 = vadd.f32 %v5169, %v5232
        %v5241 = vadd.f32 %v5170, %v5232
        %v5242 = vadd.f32 %v5171, %v5232
        %v5243 = vadd.f32 %v5172, %v5232
        %v5244 = vadd.f32 %v5173, %v5232
        %v5245 = vadd.f32 %v5174, %v5232
        %v5246 = vadd.f32 %v5175, %v5232
        %v5247 = vadd.f32 %v5176, %v5232
        %v5248 = vadd.f32 %v5177, %v5232
        %v5249 = vadd.f32 %v5178, %v5232
        %v5250 = vadd.f32 %v5179, %v5232
        %v5251 = vadd.f32 %v5180, %v5232
        %v5252 = vadd.f32 %v5181, %v5232
        %v5253 = vadd.f32 %v5182, %v5232
        %v5254 = vadd.f32 %v5183, %v5232
        %v5255 = vadd.f32 %v5184, %v5232
        %v5256 = vadd.f32 %v5185, %v5232
        %v5257 = vadd.f32 %v5186, %v5232
        %v5258 = vadd.f32 %v5187, %v5232
        %v5259 = vadd.f32 %v5188, %v5232
        %v5260 = vadd.f32 %v5189, %v5232
        %v5261 = vadd.f32 %v5190, %v5232
        %v5262 = vadd.f32 %v5191, %v5232
        %v5263 = vadd.f32 %v5192, %v5232
        %v5264 = vadd.f32 %v5193, %v5232
        %v5265 = vadd.f32 %v5194, %v5232
        %v5266 = vadd.f32 %v5195, %v5234
        %v5267 = vadd.f32 %v5196, %v5235
        %v5268 = vadd.f32 %v5197, %v5236
        %v5269 = vadd.f32 %v5198, %v5237
        %v5270 = vadd.f32 %v5199, %v5238
        %v5271 = vadd.f32 %v5200, %v5239
        %v5272 = vadd.f32 %v5201, %v5240
        %v5273 = vadd.f32 %v5202, %v5241
        %v5274 = vadd.f32 %v5203, %v5242
        %v5275 = vadd.f32 %v5204, %v5243
        %v5276 = vadd.f32 %v5205, %v5244
        %v5277 = vadd.f32 %v5206, %v5245
        %v5278 = vadd.f32 %v5207, %v5246
        %v5279 = vadd.f32 %v5208, %v5247
        %v5280 = vadd.f32 %v5209, %v5248
        %v5281 = vadd.f32 %v5210, %v5249
        %v5282 = vadd.f32 %v5211, %v5250
        %v5283 = vadd.f32 %v5212, %v5251
        %v5284 = vadd.f32 %v5213, %v5252
        %v5285 = vadd.f32 %v5214, %v5253
        %v5286 = vadd.f32 %v5215, %v5254
        %v5287 = vadd.f32 %v5216, %v5255
        %v5288 = vadd.f32 %v5217, %v5256
        %v5289 = vadd.f32 %v5218, %v5257
        %v5290 = vadd.f32 %v5219, %v5258
        %v5291 = vadd.f32 %v5220, %v5259
        %v5292 = vadd.f32 %v5221, %v5260
        %v5293 = vadd.f32 %v5222, %v5261
        %v5294 = vadd.f32 %v5223, %v5262
        %v5295 = vadd.f32 %v5224, %v5263
        %v5296 = vadd.f32 %v5225, %v5264
        %v5297 = vadd.f32 %v5226, %v5265
        %5298 = vst [vmem:[%s394] sm:$0xff] %v5266
        %5299 = vst [vmem:[%s394 + $0x8] sm:$0xff] %v5267
        %5300 = vst [vmem:[%s394 + $0x10] sm:$0xff] %v5268
        %5301 = vst [vmem:[%s394 + $0x18] sm:$0xff] %v5269
        %5302 = vst [vmem:[%s394 + $0x20] sm:$0xff] %v5270
        %5303 = vst [vmem:[%s394 + $0x28] sm:$0xff] %v5271
        %5304 = vst [vmem:[%s394 + $0x30] sm:$0xff] %v5272
        %5305 = vst [vmem:[%s394 + $0x38] sm:$0xff] %v5273
        %5306 = vst [vmem:[%s394 + $0x40] sm:$0xff] %v5274
        %5307 = vst [vmem:[%s394 + $0x48] sm:$0xff] %v5275
        %5308 = vst [vmem:[%s394 + $0x50] sm:$0xff] %v5276
        %5309 = vst [vmem:[%s394 + $0x58] sm:$0xff] %v5277
        %5310 = vst [vmem:[%s394 + $0x60] sm:$0xff] %v5278
        %5311 = vst [vmem:[%s394 + $0x68] sm:$0xff] %v5279
        %5312 = vst [vmem:[%s394 + $0x70] sm:$0xff] %v5280
        %5313 = vst [vmem:[%s394 + $0x78] sm:$0xff] %v5281
        %5314 = vst [vmem:[%s394 + $0x80] sm:$0xff] %v5282
        %5315 = vst [vmem:[%s394 + $0x88] sm:$0xff] %v5283
        %5316 = vst [vmem:[%s394 + $0x90] sm:$0xff] %v5284
        %5317 = vst [vmem:[%s394 + $0x98] sm:$0xff] %v5285
        %5318 = vst [vmem:[%s394 + $0xa0] sm:$0xff] %v5286
        %5319 = vst [vmem:[%s394 + $0xa8] sm:$0xff] %v5287
        %5320 = vst [vmem:[%s394 + $0xb0] sm:$0xff] %v5288
        %5321 = vst [vmem:[%s394 + $0xb8] sm:$0xff] %v5289
        %5322 = vst [vmem:[%s394 + $0xc0] sm:$0xff] %v5290
        %5323 = vst [vmem:[%s394 + $0xc8] sm:$0xff] %v5291
        %5324 = vst [vmem:[%s394 + $0xd0] sm:$0xff] %v5292
        %5325 = vst [vmem:[%s394 + $0xd8] sm:$0xff] %v5293
        %5326 = vst [vmem:[%s394 + $0xe0] sm:$0xff] %v5294
        %5327 = vst [vmem:[%s394 + $0xe8] sm:$0xff] %v5295
        %5328 = vst [vmem:[%s394 + $0xf0] sm:$0xff] %v5296
        %5329 = vst [vmem:[%s394 + $0xf8] sm:$0xff] %v5297
        %s5330 = sand.u32 %s230, 1
        %s5331 = scalar_lea.sflag [#allocation4], %s5330
        %s5332 = sand.u32 %s230, 1
        %s5333 = smul.addr %s5332, 256
        %s5334 = scalar_lea.vmem [#allocation10], %s5333
        // Predicated region
        $region73: #{tpu_custom_call.1} parent=55 // pred_check
          %p5335 = pneg %p240
        $region74: #{tpu_custom_call.1} parent=55 // pred_check_branch
          %5337 = sbr.rel (%p5335) target = $region76
        $region75: #{tpu_custom_call.1} parent=55 // pred_region
          %s5339 = ssub.s32 4096, 4096
          %5340 = vsyncadd %s5331, %s5339
          %s5341 = smul.addr %s28, 32
          %s5342 = smul.addr %s5341, 128
          %s5343 = scalar_lea.hbm %s9, %s5342
          %s5344 = sshll.u32 %s5334, 4
          %s5345 = int_to_ptr.vmem [resolvable:$true] %s5344
          %5350 = dma.vmem_to_hbm [thread:$0]  %s5345, 4096, %s5343, %s5331, 128, 128, 8
        $region76: #{tpu_custom_call.1} parent=55 // pred_fallthru
          _
      $region56: #{tpu_custom_call.1} parent=5 // pred_fallthru
        _
      %p5351 = scmp.le.s32.totalorder 2, %s23
      // Predicated region
      $region77: #{tpu_custom_call.1} parent=5 // pred_check
        %p5352 = pneg %p5351
      $region78: #{tpu_custom_call.1} parent=5 // pred_check_branch
        %5354 = sbr.rel (%p5352) target = $region80
      $region79: #{tpu_custom_call.1} parent=5 // pred_region
        %s5355 = ssub.s32 %s23, 2
        // Predicated region
        $region81: #{tpu_custom_call.1} parent=79 // pred_check
          %p5356 = pneg %p246
        $region82: #{tpu_custom_call.1} parent=79 // pred_check_branch
          %5358 = sbr.rel (%p5356) target = $region84
        $region83: #{tpu_custom_call.1} parent=79 // pred_region
          %s5359 = sand.u32 %s231, 1
          %s5360 = scalar_lea.sflag [#allocation4], %s5359
          %s5361 = sand.u32 %s231, 1
          %s5362 = smul.addr %s5361, 256
          %s5363 = scalar_lea.vmem [#allocation10], %s5362
          %5364 = dma.done %s5360, 4096
        $region84: #{tpu_custom_call.1} parent=79 // pred_fallthru
          _
      $region80: #{tpu_custom_call.1} parent=5 // pred_fallthru
        _
    $region6: #{tpu_custom_call.1} parent=1 // loop_footer
      %s27 = sadd.s32 1, %s23
    $region7: #{tpu_custom_call.1} parent=1 // loop_footer_branch
      %22 = sbr.rel target = $region3
    $region8: #{tpu_custom_call.1} parent=1 // loop_exit
      _
    %5365 = vsyncpa [#allocation3], 1
    %s5366 = scalar_lea.sflag [#allocation3], 1
    %5367 = vsyncpa %s5366, 1
    %5368 = vsyncpa [#allocation6], 1
    %5369 = vsyncpa [#allocation9], 1
    %5370 = vsyncpa [#allocation4], 1
    %s5371 = scalar_lea.sflag [#allocation4], 1
    %5372 = vsyncpa %s5371, 1

</llo_original>
